<compile_context>
chip_gen: v6e
topology: v6e:2x2x1
jax: 0.10.0
libtpu: 0.0.40
codegen_flags: <defaults>
</compile_context>

<pallas_src>
import functools

import jax
import jax.numpy as jnp
from jax import lax
from jax.experimental import pallas as pl
from jax.experimental.pallas import tpu as pltpu

NODE_STATE_DIM = 32
EDGE_FEAT_DIM = 64
MSG_SIZES = (2 * NODE_STATE_DIM + EDGE_FEAT_DIM, 8, 64, 64)   # [128, 8, 64, 64]
NODE_SIZES = (64 + NODE_STATE_DIM, 5, 32, NODE_STATE_DIM)     # [96, 5, 32, 32]

_E_H1 = 2 * MSG_SIZES[1]      # 16  : fused fwd+rev edge hidden-1
_E_H2 = 2 * MSG_SIZES[2]      # 128 : fused fwd+rev edge hidden-2
_MSG = MSG_SIZES[3]           # 64  : per-direction message width
_PAD = 128                    # lane-dense width for node-state / message slabs
_PAD_IDX = -(2 ** 30)         # sentinel index for padded edges (never matches)


def _round_up(x, m):
    return (x + m - 1) // m * m


def _edge_message_kernel(idx_ref, ef_ref, ns_ref, w_e1_ref, w_23_ref, b_ref,
                         acc_out_ref, acc_ref, *, n_real_tiles):
    """Gather -> fused fwd/rev edge MLP -> fused scatter-sum for one edge tile."""
    e = pl.program_id(1)
    last = pl.num_programs(1) - 1

    @pl.when(e == 0)
    def _init():
        acc_ref[...] = jnp.zeros_like(acc_ref)

    # Global tile id; tiles >= n_real_tiles contain only padded edges -> skip.
    tile_id = pl.program_id(0) * pl.num_programs(1) + e

    @pl.when(tile_id < n_real_tiles)
    def _compute():
        ns_bf = ns_ref[...]                       # [n_pad, 128] bf16 (cols 32:128 = 0)
        n_pad = ns_bf.shape[0]
        te = ef_ref.shape[0]
        fidx = idx_ref[:, 0:1]                    # [TE, 1] int32
        tidx = idx_ref[:, 1:2]

        # One-hot gather matrices (0/1 exact in bf16); sentinel rows are all zero.
        iota_n = lax.broadcasted_iota(jnp.int32, (te, n_pad), 1)
        from_oh = (iota_n == fidx).astype(jnp.bfloat16)        # [TE, n_pad]
        to_oh = (iota_n == tidx).astype(jnp.bfloat16)          # [TE, n_pad]

        from_pad = jnp.dot(from_oh, ns_bf,
                           preferred_element_type=jnp.float32).astype(jnp.bfloat16)
        to_pad = jnp.dot(to_oh, ns_bf,
                         preferred_element_type=jnp.float32).astype(jnp.bfloat16)

        w_e1 = w_e1_ref[...]                      # [128, 48] bf16
        b = b_ref[...]                            # [8, 128] f32 packed biases

        # Fused fwd+rev edge MLP layer 1 (split weights instead of input concat).
        # TODO(synk): pack [from | rolled-to | edge] into one [TE,128] operand via
        # pltpu.roll and use one matmul if a bundle dump shows MXU-push-bound.
        h1 = (jnp.dot(from_pad, w_e1[:, 0:_E_H1],
                      preferred_element_type=jnp.float32)
              + jnp.dot(to_pad, w_e1[:, _E_H1:2 * _E_H1],
                        preferred_element_type=jnp.float32)
              + jnp.dot(ef_ref[...], w_e1[0:EDGE_FEAT_DIM, 2 * _E_H1:3 * _E_H1],
                        preferred_element_type=jnp.float32)
              + b[0:1, 0:_E_H1])
        h1 = jnp.maximum(h1, 0.0).astype(jnp.bfloat16)          # [TE, 16]

        # Layers 2/3: block-diagonal (forward | reverse), 128-lane-dense.
        h2 = jnp.dot(h1, w_23_ref[0:_E_H1, :],
                     preferred_element_type=jnp.float32) + b[1:2, :]
        h2 = jnp.maximum(h2, 0.0).astype(jnp.bfloat16)          # [TE, 128]
        msgs = (jnp.dot(h2, w_23_ref[_E_H1:_E_H1 + _E_H2, :],
                        preferred_element_type=jnp.float32) + b[2:3, :]
                ).astype(jnp.bfloat16)                          # [TE, 128] = [fwd|rev]

        # Fused scatter-sum on the MXU: rows 0:n_pad keyed by to_idx (forward
        # aggregate), rows n_pad:2*n_pad keyed by from_idx (reverse aggregate).
        iota_2n = lax.broadcasted_iota(jnp.int32, (te, 2 * n_pad), 1)
        scat_oh = ((iota_2n == tidx) | (iota_2n == (fidx + n_pad))
                   ).astype(jnp.bfloat16)                       # [TE, 2*n_pad]
        acc_ref[...] += lax.dot_general(scat_oh, msgs, (((0,), (0,)), ((), ())),
                                        preferred_element_type=jnp.float32)

    @pl.when(e == last)
    def _writeback():
        acc_out_ref[...] = acc_ref[...]


def _pack_edge_weights(msg_params, rev_params):
    """Pack the 12 small forward/reverse edge-MLP params into 3 fused slabs."""
    mw1, mb1, mw2, mb2, mw3, mb3 = msg_params
    rw1, rb1, rw2, rb2, rw3, rb3 = rev_params
    D = NODE_STATE_DIM            # 32
    H = MSG_SIZES[1]              # 8

    # Layer 1: columns [W1_from | W1_to | W1_edge], each 16 wide (fwd 0:8, rev 8:16).
    # Forward input order: [from, to, edge]; reverse: [to, from, edge].
    w1f = jnp.zeros((_PAD, _E_H1), jnp.float32)
    w1f = w1f.at[:D, 0:H].set(mw1[0:D]).at[:D, H:2 * H].set(rw1[D:2 * D])
    w1t = jnp.zeros((_PAD, _E_H1), jnp.float32)
    w1t = w1t.at[:D, 0:H].set(mw1[D:2 * D]).at[:D, H:2 * H].set(rw1[0:D])
    w1e = jnp.zeros((_PAD, _E_H1), jnp.float32)
    w1e = (w1e.at[:EDGE_FEAT_DIM, 0:H].set(mw1[2 * D:])
              .at[:EDGE_FEAT_DIM, H:2 * H].set(rw1[2 * D:]))
    w_e1 = jnp.concatenate([w1f, w1t, w1e], axis=1).astype(jnp.bfloat16)  # [128, 48]

    # Layers 2/3: block-diagonal (forward lanes 0:64, reverse lanes 64:128).
    w2bd = jnp.zeros((_E_H1, _E_H2), jnp.float32)
    w2bd = w2bd.at[0:H, 0:_MSG].set(mw2).at[H:2 * H, _MSG:2 * _MSG].set(rw2)
    w3bd = jnp.zeros((_E_H2, _E_H2), jnp.float32)
    w3bd = (w3bd.at[0:_MSG, 0:_MSG].set(mw3)
                 .at[_MSG:2 * _MSG, _MSG:2 * _MSG].set(rw3))
    w_23 = jnp.concatenate([w2bd, w3bd], axis=0).astype(jnp.bfloat16)     # [144, 128]

    biases = jnp.zeros((8, _PAD), jnp.float32)
    biases = biases.at[0, 0:H].set(mb1[0]).at[0, H:2 * H].set(rb1[0])
    biases = biases.at[1, 0:_MSG].set(mb2[0]).at[1, _MSG:2 * _MSG].set(rb2[0])
    biases = biases.at[2, 0:_MSG].set(mb3[0]).at[2, _MSG:2 * _MSG].set(rb3[0])
    return w_e1, w_23, biases


def _vmem_limit_bytes(n_pad, edge_tile):
    """Per-core VMEM budget from actual residency, clamped under capacity.

    Residency is ~2.25 KiB per padded node (node slab + fused accumulator +
    output block, before double buffering).
    TODO(synk): for very large graphs add a node-block grid axis (tile the
    accumulator/output over node blocks) instead of relying on this limit.
    """
    def padded(rows, cols, itemsize):
        return _round_up(rows, 8) * _round_up(cols, 128) * itemsize

    resident = (padded(edge_tile, 2, 4)                      # edge-index tile
                + padded(edge_tile, EDGE_FEAT_DIM, 2)        # edge-feature tile
                + padded(n_pad, _PAD, 2)                     # node-state slab (bf16)
                + padded(_PAD, 3 * _E_H1, 2)                 # w_e1
                + padded(_E_H1 + _E_H2, _E_H2, 2)            # w_23
                + padded(8, _PAD, 4)                         # biases
                + padded(2 * n_pad, _PAD, 4))                # partial-acc output block
    need = 2 * resident + padded(2 * n_pad, _PAD, 4)         # double buffers + scratch
    need += 8 * padded(edge_tile, 2 * n_pad, 4)              # in-flight one-hot/matmul temps
    try:
        info = pltpu.get_tpu_info()
        cap = getattr(info, "vmem_capacity_bytes", None) or (64 * 1024 * 1024)
    except Exception:
        cap = 64 * 1024 * 1024   # assume the smallest-VMEM generation (v7x: 64 MiB/TC)
    headroom = 16 * 1024 * 1024
    return int(min(max(2 * need, 32 * 1024 * 1024), cap - headroom))


@functools.partial(jax.jit, static_argnames=("edge_tile", "num_splits"))
def graph_prop_layer(node_states, from_idx, to_idx, edge_features,
                     msg_params, rev_params, node_params, *,
                     edge_tile=256, num_splits=2):
    """One GraphPropLayer forward pass (residual update, reverse direction on).

    edge_tile: 256 for v6e/v7x, 128 recommended on v5e (must be a multiple of 16).
    num_splits: leading "parallel" grid axis; 2 shards the edge loop across the
    two v7x TensorCores (harmless on 1-core v5e/v6e).
    """
    assert edge_tile % 16 == 0 and num_splits >= 1
    n_nodes, d = node_states.shape
    n_edges = from_idx.shape[0]
    n_pad = _round_up(n_nodes, 16)
    e_pad = _round_up(max(n_edges, 1), edge_tile * num_splits)
    tps = e_pad // (edge_tile * num_splits)           # edge tiles per split
    n_real_tiles = -(-n_edges // edge_tile)           # tiles containing real edges

    w_e1, w_23, biases = _pack_edge_weights(msg_params, rev_params)

    # Lane-dense padded node-state slab for the MXU one-hot gather.
    ns_bf16 = (jnp.zeros((n_pad, _PAD), jnp.float32)
               .at[:n_nodes, :d].set(node_states.astype(jnp.float32))
               ).astype(jnp.bfloat16)

    # Merged [E, 2] = (from, to) edge indices; sentinel rows contribute nothing.
    idx = (jnp.full((e_pad, 2), _PAD_IDX, jnp.int32)
           .at[:n_edges, 0].set(from_idx.astype(jnp.int32))
           .at[:n_edges, 1].set(to_idx.astype(jnp.int32)))
    ef = jnp.zeros((e_pad, EDGE_FEAT_DIM), jnp.bfloat16).at[:n_edges].set(
        edge_features.astype(jnp.bfloat16))

    edge_map = lambda s, e: (s * tps + e, 0)
    resident = lambda s, e: (0, 0)

    # TODO(synk): mark the grid-invariant slabs with pipeline_mode=pl.Buffered(1)
    # once single-buffered pipeline_mode is confirmed on the target jaxlib; it
    # halves their VMEM footprint for large graphs.
    partials = pl.pallas_call(
        functools.partial(_edge_message_kernel, n_real_tiles=n_real_tiles),
        out_shape=jax.ShapeDtypeStruct((num_splits, 2 * n_pad, _PAD), jnp.float32),
        grid_spec=pltpu.PrefetchScalarGridSpec(
            num_scalar_prefetch=0,
            grid=(num_splits, tps),
            in_specs=[
                pl.BlockSpec((edge_tile, 2), edge_map),                  # edge indices
                pl.BlockSpec((edge_tile, EDGE_FEAT_DIM), edge_map),      # edge features
                pl.BlockSpec((n_pad, _PAD), resident),                   # node states bf16
                pl.BlockSpec((_PAD, 3 * _E_H1), resident),               # w_e1
                pl.BlockSpec((_E_H1 + _E_H2, _E_H2), resident),          # w_23
                pl.BlockSpec((8, _PAD), resident),                       # biases
            ],
            out_specs=pl.BlockSpec((None, 2 * n_pad, _PAD),
                                   lambda s, e: (s, 0, 0)),
            scratch_shapes=[pltpu.VMEM((2 * n_pad, _PAD), jnp.float32)]),
        compiler_params=pltpu.CompilerParams(
            dimension_semantics=("parallel", "arbitrary"),
            vmem_limit_bytes=_vmem_limit_bytes(n_pad, edge_tile)),
    )(idx, ef, ns_bf16, w_e1, w_23, biases)

    # Exact-f32 epilogue: combine per-split partial aggregates, node-update MLP,
    # residual. O(n_nodes * 128) work, intentionally left to XLA.
    acc = partials.sum(axis=0)                                   # [2*n_pad, 128]
    agg = acc[:n_nodes, :_MSG] + acc[n_pad:n_pad + n_nodes, _MSG:2 * _MSG]
    nw1, nb1, nw2, nb2, nw3, nb3 = node_params
    x = jnp.concatenate([agg, node_states.astype(jnp.float32)], axis=-1)  # [n, 96]
    h = jax.nn.relu(x @ nw1 + nb1[0])
    h = jax.nn.relu(h @ nw2 + nb2[0])
    upd = h @ nw3 + nb3[0]
    return (node_states.astype(jnp.float32) + upd).astype(node_states.dtype)


def init_mlp_params(key, sizes, scale=0.1):
    params = []
    for i in range(len(sizes) - 1):
        key, kw, kb = jax.random.split(key, 3)
        w = jax.random.normal(kw, (sizes[i], sizes[i + 1]), jnp.float32) * scale
        b = jax.random.normal(kb, (1, sizes[i + 1]), jnp.float32) * scale
        params += [w, b]
    return params, key


def reference_forward(node_states, from_idx, to_idx, edge_features,
                      msg_params, rev_params, node_params):
    """Pure-JAX f32 reference mirroring the PyTorch forward semantics."""
    def mlp(x, p):
        for i in range(0, len(p), 2):
            x = x @ p[i] + p[i + 1][0]
            if i < len(p) - 2:
                x = jax.nn.relu(x)
        return x

    from_s = node_states[from_idx]
    to_s = node_states[to_idx]
    msgs = mlp(jnp.concatenate([from_s, to_s, edge_features], -1), msg_params)
    agg = jnp.zeros((node_states.shape[0], msgs.shape[1]), jnp.float32)
    agg = agg.at[to_idx].add(msgs)                     # scatter_sum over to_idx
    msgs_r = mlp(jnp.concatenate([to_s, from_s, edge_features], -1), rev_params)
    agg = agg.at[from_idx].add(msgs_r)                 # reverse direction
    upd = mlp(jnp.concatenate([agg, node_states], -1), node_params)
    return node_states + upd                           # residual node update


if __name__ == "__main__":
    key = jax.random.PRNGKey(0)
    n_nodes, n_edges = 60, 200   # exercises node padding (60->64) and all-pad-tile skip

    key, k1, k2, k3, k4 = jax.random.split(key, 5)
    node_states = jax.random.normal(k1, (n_nodes, NODE_STATE_DIM), jnp.float32)
    edge_features = jax.random.normal(k2, (n_edges, EDGE_FEAT_DIM), jnp.float32)
    from_idx = jax.random.randint(k3, (n_edges,), 0, n_nodes, jnp.int32)
    to_idx = jax.random.randint(k4, (n_edges,), 0, n_nodes, jnp.int32)

    msg_params, key = init_mlp_params(key, MSG_SIZES)
    rev_params, key = init_mlp_params(key, MSG_SIZES)   # different reverse params
    node_params, key = init_mlp_params(key, NODE_SIZES)

    ref = reference_forward(node_states, from_idx, to_idx, edge_features,
                            msg_params, rev_params, node_params)

    # Default config: edge_tile=256 (v6e/v7x sweet spot; use 128 on v5e),
    # 2 edge splits feeding the v7x dual-TensorCore "parallel" axis.
    out = graph_prop_layer(node_states, from_idx, to_idx, edge_features,
                           msg_params, rev_params, node_params,
                           edge_tile=256, num_splits=2)
    out = jax.block_until_ready(out)
    assert out.shape == (n_nodes, NODE_STATE_DIM)
    max_err = float(jnp.max(jnp.abs(out - ref)))
    # bf16 MXU operands with f32 accumulation vs. an all-f32 reference.
    assert jnp.allclose(out, ref, atol=3e-2, rtol=3e-2), (
        f"mismatch vs reference (max abs err {max_err})")

    # Small-tile config: exercises multi-tile accumulation within each split.
    out2 = graph_prop_layer(node_states, from_idx, to_idx, edge_features,
                            msg_params, rev_params, node_params,
                            edge_tile=64, num_splits=2)
    out2 = jax.block_until_ready(out2)
    max_err2 = float(jnp.max(jnp.abs(out2 - ref)))
    assert jnp.allclose(out2, ref, atol=3e-2, rtol=3e-2), (
        f"mismatch vs reference, small tiles (max abs err {max_err2})")

    print("KERNEL_OK")
</pallas_src>

<mosaic_0001>
module attributes {stable_mosaic.version = 11 : i64} {
  func.func @_edge_message_kernel(%arg0: i32, %arg1: i32, %arg2: memref<256x2xi32, #tpu.memory_space<vmem>>, %arg3: memref<256x64xbf16, #tpu.memory_space<vmem>>, %arg4: memref<64x128xbf16, #tpu.memory_space<vmem>>, %arg5: memref<128x48xbf16, #tpu.memory_space<vmem>>, %arg6: memref<144x128xbf16, #tpu.memory_space<vmem>>, %arg7: memref<8x128xf32, #tpu.memory_space<vmem>>, %arg8: memref<1x128x128xf32, #tpu.memory_space<vmem>>, %arg9: memref<128x128xf32, #tpu.memory_space<vmem>>) attributes {dimension_semantics = [#tpu.dimension_semantics<parallel>, #tpu.dimension_semantics<arbitrary>], iteration_bounds = array<i64: 2, 1>, scalar_prefetch = 0 : i64, scratch_operands = 1 : i64, tpu.core_type = #tpu.core_type<tc>, window_params = [{transform_indices = @transform_0, window_bounds = array<i64: 256, 2>}, {transform_indices = @transform_1, window_bounds = array<i64: 256, 64>}, {pipeline_mode = #tpu.pipeline_mode<synchronous>, transform_indices = @transform_2, window_bounds = array<i64: 64, 128>}, {pipeline_mode = #tpu.pipeline_mode<synchronous>, transform_indices = @transform_3, window_bounds = array<i64: 128, 48>}, {pipeline_mode = #tpu.pipeline_mode<synchronous>, transform_indices = @transform_4, window_bounds = array<i64: 144, 128>}, {pipeline_mode = #tpu.pipeline_mode<synchronous>, transform_indices = @transform_5, window_bounds = array<i64: 8, 128>}, {transform_indices = @transform_6, window_bounds = array<i64: 1, 128, 128>}]} {
    %c0_i32 = arith.constant 0 : i32
    %0 = arith.cmpi eq, %arg1, %c0_i32 : i32
    %1 = arith.extui %0 : i1 to i32
    %c0_i32_0 = arith.constant 0 : i32
    %2 = arith.cmpi ne, %1, %c0_i32_0 : i32
    scf.if %2 {
      %cst = arith.constant 0.000000e+00 : f32
      %11 = vector.broadcast %cst : f32 to vector<128x128xf32>
      %c0 = arith.constant 0 : index
      %c0_5 = arith.constant 0 : index
      %12 = vector.load %arg9[%c0, %c0_5] : memref<128x128xf32, #tpu.memory_space<vmem>>, vector<128x128xf32>
      tpu.vector_store %arg9[%c0, %c0_5], %11 {strides = array<i32>} : memref<128x128xf32, #tpu.memory_space<vmem>>, vector<128x128xf32>,
    } else {
    }
    %c1_i32 = arith.constant 1 : i32
    %3 = arith.muli %arg0, %c1_i32 : i32
    %4 = arith.addi %3, %arg1 : i32
    %c1_i32_1 = arith.constant 1 : i32
    %5 = arith.cmpi slt, %4, %c1_i32_1 : i32
    %6 = arith.extui %5 : i1 to i32
    %c0_i32_2 = arith.constant 0 : i32
    %7 = arith.cmpi ne, %6, %c0_i32_2 : i32
    scf.if %7 {
      %c0 = arith.constant 0 : index
      %c0_5 = arith.constant 0 : index
      %11 = vector.load %arg4[%c0, %c0_5] : memref<64x128xbf16, #tpu.memory_space<vmem>>, vector<64x128xbf16>
      %c0_6 = arith.constant 0 : index
      %c0_7 = arith.constant 0 : index
      %12 = vector.load %arg2[%c0_6, %c0_7] : memref<256x2xi32, #tpu.memory_space<vmem>>, vector<256x1xi32>
      %c0_8 = arith.constant 0 : index
      %c1 = arith.constant 1 : index
      %13 = vector.load %arg2[%c0_8, %c1] : memref<256x2xi32, #tpu.memory_space<vmem>>, vector<256x1xi32>
      %14 = tpu.iota {dimensions = array<i32: 1>} : vector<256x64xi32>
      %15 = vector.broadcast %12 : vector<256x1xi32> to vector<256x64xi32>
      %16 = arith.cmpi eq, %14, %15 : vector<256x64xi32>
      %17 = arith.extui %16 : vector<256x64xi1> to vector<256x64xi32>
      %18 = arith.sitofp %17 : vector<256x64xi32> to vector<256x64xf32>
      %19 = arith.truncf %18 : vector<256x64xf32> to vector<256x64xbf16>
      %20 = vector.broadcast %13 : vector<256x1xi32> to vector<256x64xi32>
      %21 = arith.cmpi eq, %14, %20 : vector<256x64xi32>
      %22 = arith.extui %21 : vector<256x64xi1> to vector<256x64xi32>
      %23 = arith.sitofp %22 : vector<256x64xi32> to vector<256x64xf32>
      %24 = arith.truncf %23 : vector<256x64xf32> to vector<256x64xbf16>
      %cst = arith.constant dense<0.000000e+00> : vector<256x128xf32>
      %25 = tpu.matmul %19, %11, %cst {dimension_numbers = #tpu.dot_dimension_numbers<[1], [0], [0], [1], [0, 0, 1, 1], [], []>} : vector<256x64xbf16>, vector<64x128xbf16>, vector<256x128xf32> -> vector<256x128xf32>
      %26 = arith.truncf %25 : vector<256x128xf32> to vector<256x128xbf16>
      %cst_9 = arith.constant dense<0.000000e+00> : vector<256x128xf32>
      %27 = tpu.matmul %24, %11, %cst_9 {dimension_numbers = #tpu.dot_dimension_numbers<[1], [0], [0], [1], [0, 0, 1, 1], [], []>} : vector<256x64xbf16>, vector<64x128xbf16>, vector<256x128xf32> -> vector<256x128xf32>
      %28 = arith.truncf %27 : vector<256x128xf32> to vector<256x128xbf16>
      %c0_10 = arith.constant 0 : index
      %c0_11 = arith.constant 0 : index
      %29 = vector.load %arg5[%c0_10, %c0_11] : memref<128x48xbf16, #tpu.memory_space<vmem>>, vector<128x48xbf16>
      %c0_12 = arith.constant 0 : index
      %c0_13 = arith.constant 0 : index
      %30 = vector.load %arg7[%c0_12, %c0_13] : memref<8x128xf32, #tpu.memory_space<vmem>>, vector<8x128xf32>
      %31 = vector.extract_strided_slice %29 {offsets = [0, 0], sizes = [128, 16], strides = [1, 1]} : vector<128x48xbf16> to vector<128x16xbf16>
      %cst_14 = arith.constant dense<0.000000e+00> : vector<256x16xf32>
      %32 = tpu.matmul %26, %31, %cst_14 {dimension_numbers = #tpu.dot_dimension_numbers<[1], [0], [0], [1], [0, 0, 1, 1], [], []>} : vector<256x128xbf16>, vector<128x16xbf16>, vector<256x16xf32> -> vector<256x16xf32>
      %33 = vector.extract_strided_slice %29 {offsets = [0, 16], sizes = [128, 16], strides = [1, 1]} : vector<128x48xbf16> to vector<128x16xbf16>
      %cst_15 = arith.constant dense<0.000000e+00> : vector<256x16xf32>
      %34 = tpu.matmul %28, %33, %cst_15 {dimension_numbers = #tpu.dot_dimension_numbers<[1], [0], [0], [1], [0, 0, 1, 1], [], []>} : vector<256x128xbf16>, vector<128x16xbf16>, vector<256x16xf32> -> vector<256x16xf32>
      %35 = arith.addf %32, %34 : vector<256x16xf32>
      %c0_16 = arith.constant 0 : index
      %c0_17 = arith.constant 0 : index
      %36 = vector.load %arg3[%c0_16, %c0_17] : memref<256x64xbf16, #tpu.memory_space<vmem>>, vector<256x64xbf16>
      %37 = vector.extract_strided_slice %29 {offsets = [0, 32], sizes = [64, 16], strides = [1, 1]} : vector<128x48xbf16> to vector<64x16xbf16>
      %cst_18 = arith.constant dense<0.000000e+00> : vector<256x16xf32>
      %38 = tpu.matmul %36, %37, %cst_18 {dimension_numbers = #tpu.dot_dimension_numbers<[1], [0], [0], [1], [0, 0, 1, 1], [], []>} : vector<256x64xbf16>, vector<64x16xbf16>, vector<256x16xf32> -> vector<256x16xf32>
      %39 = arith.addf %35, %38 : vector<256x16xf32>
      %40 = vector.extract_strided_slice %30 {offsets = [0, 0], sizes = [1, 16], strides = [1, 1]} : vector<8x128xf32> to vector<1x16xf32>
      %41 = vector.broadcast %40 : vector<1x16xf32> to vector<256x16xf32>
      %42 = arith.addf %39, %41 : vector<256x16xf32>
      %cst_19 = arith.constant 0.000000e+00 : f32
      %43 = vector.broadcast %cst_19 : f32 to vector<256x16xf32>
      %44 = arith.maximumf %42, %43 : vector<256x16xf32>
      %45 = arith.truncf %44 : vector<256x16xf32> to vector<256x16xbf16>
      %c0_20 = arith.constant 0 : index
      %c0_21 = arith.constant 0 : index
      %46 = vector.load %arg6[%c0_20, %c0_21] : memref<144x128xbf16, #tpu.memory_space<vmem>>, vector<16x128xbf16>
      %cst_22 = arith.constant dense<0.000000e+00> : vector<256x128xf32>
      %47 = tpu.matmul %45, %46, %cst_22 {dimension_numbers = #tpu.dot_dimension_numbers<[1], [0], [0], [1], [0, 0, 1, 1], [], []>} : vector<256x16xbf16>, vector<16x128xbf16>, vector<256x128xf32> -> vector<256x128xf32>
      %48 = vector.extract_strided_slice %30 {offsets = [1, 0], sizes = [1, 128], strides = [1, 1]} : vector<8x128xf32> to vector<1x128xf32>
      %49 = vector.broadcast %48 : vector<1x128xf32> to vector<256x128xf32>
      %50 = arith.addf %47, %49 : vector<256x128xf32>
      %cst_23 = arith.constant 0.000000e+00 : f32
      %51 = vector.broadcast %cst_23 : f32 to vector<256x128xf32>
      %52 = arith.maximumf %50, %51 : vector<256x128xf32>
      %53 = arith.truncf %52 : vector<256x128xf32> to vector<256x128xbf16>
      %c16 = arith.constant 16 : index
      %c0_24 = arith.constant 0 : index
      %54 = vector.load %arg6[%c16, %c0_24] : memref<144x128xbf16, #tpu.memory_space<vmem>>, vector<128x128xbf16>
      %cst_25 = arith.constant dense<0.000000e+00> : vector<256x128xf32>
      %55 = tpu.matmul %53, %54, %cst_25 {dimension_numbers = #tpu.dot_dimension_numbers<[1], [0], [0], [1], [0, 0, 1, 1], [], []>} : vector<256x128xbf16>, vector<128x128xbf16>, vector<256x128xf32> -> vector<256x128xf32>
      %56 = vector.extract_strided_slice %30 {offsets = [2, 0], sizes = [1, 128], strides = [1, 1]} : vector<8x128xf32> to vector<1x128xf32>
      %57 = vector.broadcast %56 : vector<1x128xf32> to vector<256x128xf32>
      %58 = arith.addf %55, %57 : vector<256x128xf32>
      %59 = arith.truncf %58 : vector<256x128xf32> to vector<256x128xbf16>
      %60 = tpu.iota {dimensions = array<i32: 1>} : vector<256x128xi32>
      %61 = vector.broadcast %13 : vector<256x1xi32> to vector<256x128xi32>
      %62 = arith.cmpi eq, %60, %61 : vector<256x128xi32>
      %c64_i32 = arith.constant 64 : i32
      %63 = vector.broadcast %c64_i32 : i32 to vector<256x1xi32>
      %64 = arith.addi %12, %63 : vector<256x1xi32>
      %65 = vector.broadcast %64 : vector<256x1xi32> to vector<256x128xi32>
      %66 = arith.cmpi eq, %60, %65 : vector<256x128xi32>
      %67 = arith.ori %62, %66 : vector<256x128xi1>
      %68 = arith.extui %67 : vector<256x128xi1> to vector<256x128xi32>
      %69 = arith.sitofp %68 : vector<256x128xi32> to vector<256x128xf32>
      %70 = arith.truncf %69 : vector<256x128xf32> to vector<256x128xbf16>
      %c0_26 = arith.constant 0 : index
      %c0_27 = arith.constant 0 : index
      %71 = vector.load %arg9[%c0_26, %c0_27] : memref<128x128xf32, #tpu.memory_space<vmem>>, vector<128x128xf32>
      %cst_28 = arith.constant dense<0.000000e+00> : vector<128x128xf32>
      %72 = tpu.matmul %70, %59, %cst_28 {dimension_numbers = #tpu.dot_dimension_numbers<[0], [0], [1], [1], [0, 1, 1, 1], [], []>} : vector<256x128xbf16>, vector<256x128xbf16>, vector<128x128xf32> -> vector<128x128xf32>
      %73 = arith.addf %71, %72 : vector<128x128xf32>
      %c0_29 = arith.constant 0 : index
      %c0_30 = arith.constant 0 : index
      %74 = vector.load %arg9[%c0_29, %c0_30] : memref<128x128xf32, #tpu.memory_space<vmem>>, vector<128x128xf32>
      tpu.vector_store %arg9[%c0_29, %c0_30], %73 {strides = array<i32>} : memref<128x128xf32, #tpu.memory_space<vmem>>, vector<128x128xf32>,
    } else {
    }
    %c0_i32_3 = arith.constant 0 : i32
    %8 = arith.cmpi eq, %arg1, %c0_i32_3 : i32
    %9 = arith.extui %8 : i1 to i32
    %c0_i32_4 = arith.constant 0 : i32
    %10 = arith.cmpi ne, %9, %c0_i32_4 : i32
    scf.if %10 {
      %c0 = arith.constant 0 : index
      %c0_5 = arith.constant 0 : index
      %11 = vector.load %arg9[%c0, %c0_5] : memref<128x128xf32, #tpu.memory_space<vmem>>, vector<128x128xf32>
      %c0_6 = arith.constant 0 : index
      %c0_7 = arith.constant 0 : index
      %c0_8 = arith.constant 0 : index
      %12 = vector.load %arg8[%c0_6, %c0_7, %c0_8] : memref<1x128x128xf32, #tpu.memory_space<vmem>>, vector<1x128x128xf32>
      %13 = vector.shape_cast %12 : vector<1x128x128xf32> to vector<128x128xf32>
      %14 = vector.shape_cast %11 : vector<128x128xf32> to vector<1x128x128xf32>
      tpu.vector_store %arg8[%c0_6, %c0_7, %c0_8], %14 {strides = array<i32>} : memref<1x128x128xf32, #tpu.memory_space<vmem>>, vector<1x128x128xf32>,
    } else {
    }
    return
  }
  func.func @transform_0(%arg0: i32, %arg1: i32) -> (i32, i32) {
    %c1_i32 = arith.constant 1 : i32
    %0 = arith.muli %arg0, %c1_i32 : i32
    %1 = arith.addi %0, %arg1 : i32
    %c0_i32 = arith.constant 0 : i32
    %c0_i32_0 = arith.constant 0 : i32
    return %1, %c0_i32 : i32, i32
  }
  func.func @transform_1(%arg0: i32, %arg1: i32) -> (i32, i32) {
    %c1_i32 = arith.constant 1 : i32
    %0 = arith.muli %arg0, %c1_i32 : i32
    %1 = arith.addi %0, %arg1 : i32
    %c0_i32 = arith.constant 0 : i32
    %c0_i32_0 = arith.constant 0 : i32
    return %1, %c0_i32 : i32, i32
  }
  func.func @transform_2(%arg0: i32, %arg1: i32) -> (i32, i32) {
    %c0_i32 = arith.constant 0 : i32
    %c0_i32_0 = arith.constant 0 : i32
    %c0_i32_1 = arith.constant 0 : i32
    return %c0_i32, %c0_i32_0 : i32, i32
  }
  func.func @transform_3(%arg0: i32, %arg1: i32) -> (i32, i32) {
    %c0_i32 = arith.constant 0 : i32
    %c0_i32_0 = arith.constant 0 : i32
    %c0_i32_1 = arith.constant 0 : i32
    return %c0_i32, %c0_i32_0 : i32, i32
  }
  func.func @transform_4(%arg0: i32, %arg1: i32) -> (i32, i32) {
    %c0_i32 = arith.constant 0 : i32
    %c0_i32_0 = arith.constant 0 : i32
    %c0_i32_1 = arith.constant 0 : i32
    return %c0_i32, %c0_i32_0 : i32, i32
  }
  func.func @transform_5(%arg0: i32, %arg1: i32) -> (i32, i32) {
    %c0_i32 = arith.constant 0 : i32
    %c0_i32_0 = arith.constant 0 : i32
    %c0_i32_1 = arith.constant 0 : i32
    return %c0_i32, %c0_i32_0 : i32, i32
  }
  func.func @transform_6(%arg0: i32, %arg1: i32) -> (i32, i32, i32) {
    %c0_i32 = arith.constant 0 : i32
    %c0_i32_0 = arith.constant 0 : i32
    %c0_i32_1 = arith.constant 0 : i32
    return %arg0, %c0_i32, %c0_i32_0 : i32, i32, i32
  }
}

</mosaic_0001>

<llo_original>
// kernel: graph_prop_layer.1
$region0: #{graph_prop_layer.1}
  #allocation0 [shape = 'u32[]', space=smem, size = 0x4, offset = 0x4, fixed_abs, tag = 'smem constant byte address 0x4 - core index']
  #allocation1 [shape = 'u32[144,128]{1,0:T(1,128)}', space=vmem, size = 0x12000, scoped, tag = 'internal scratch']
  #allocation2 [shape = 'f32[128,128]{1,0:T(8,128)}', space=vmem, size = 0x10000, scoped, tag = 'scratch operand']
  %s0 = inlined_call_operand.vmem [shape: s32[512,2], index: 0, kind: input, shape index: {}]
  %s1 = inlined_call_operand.vmem [shape: bf16[512,64], index: 1, kind: input, shape index: {}]
  %s2 = inlined_call_operand.vmem [shape: bf16[64,128], index: 2, kind: input, shape index: {}]
  %s3 = inlined_call_operand.vmem [shape: bf16[128,48], index: 3, kind: input, shape index: {}]
  %s4 = inlined_call_operand.vmem [shape: bf16[144,128], index: 4, kind: input, shape index: {}]
  %s5 = inlined_call_operand.vmem [shape: f32[8,128], index: 5, kind: input, shape index: {}]
  %s6 = inlined_call_operand.vmem [shape: f32[2,128,128], index: 6, kind: output, shape index: {}]
  %s7 = sld [smem:[#allocation0]]
  $region69: #{graph_prop_layer.1} parent=0
    _
  %s9 = ssub.s32 1, %s7
  %s10 = scalar_select 0, %s9, %s7
  loop: start=0, step=1, limit=4
  $region2: #{graph_prop_layer.1} parent=0 // loop_pre_header
    _
  $region3: #{graph_prop_layer.1} parent=0 // loop_header
    %s12 = sphi 0, %s16
    %p13 = scmp.ge.s32.totalorder %s12, 4
    %s19 = sphi 0, %s31
    %s20 = sphi 0, %s27
    %s21 = sphi 0, %s19
    %s22 = sphi 0, %s20
    %s23 = sphi 0, %s21
    %s24 = sphi 0, %s22
    %s36 = sphi 0, %s38
    %s39 = sphi 0, %s36
    %s40 = sphi 0, %s39
    %s56 = sphi 0, %s40
    %s64 = sphi 0, %s66
    %s67 = sphi 0, %s64
    %s68 = sphi 0, %s67
    %s84 = sphi 0, %s68
    %s88 = sphi 0, %s88
    %s90 = sphi 0, %s88
    %s91 = sphi 0, %s90
    %s105 = sphi 0, %s91
    %s109 = sphi 0, %s109
    %s111 = sphi 0, %s109
    %s112 = sphi 0, %s111
    %s126 = sphi 0, %s112
    %s130 = sphi 0, %s130
    %s132 = sphi 0, %s130
    %s133 = sphi 0, %s132
    %s147 = sphi 0, %s133
    %s151 = sphi 0, %s151
    %s153 = sphi 0, %s151
    %s154 = sphi 0, %s153
    %s168 = sphi 0, %s154
    %s174 = sphi 0, %s176
    %s177 = sphi 0, %s174
    %s178 = sphi 0, %s177
    %s194 = sphi 0, %s178
  $region4: #{graph_prop_layer.1} parent=0 // loop_header_branch
    %15 = sbr.rel (%p13) target = $region8
  $region5: #{graph_prop_layer.1} parent=0 // loop_body
    %s17 = ssub.s32 %s12, 1
    %s18 = ssub.s32 %s12, 2
    %s25 = sadd.s32 1, %s20
    %p26 = scmp.ge.s32.totalorder %s25, 1
    %s27 = scalar_select %p26, 0, %s25
    %s28 = sadd.s32 1, %s19
    %s29 = scalar_select %p26, %s28, %s19
    %p30 = scmp.ge.s32.totalorder %s29, 2
    %s31 = scalar_select %p30, 0, %s29
    %s32 = sadd.s32 %s19, %s20
    %s33 = sadd.s32 %s31, %s27
    %s34 = ssub.s32 %s32, %s33
    %p35 = scmp.eq.s32.totalorder %s34, 0
    %s37 = sadd.s32 %s36, 1
    %s38 = scalar_select %p35, %s36, %s37
    %p41 = pneg %p35
    %p42 = scmp.eq.s32.totalorder %s12, 1
    %p43 = por %p41, %p42
    %p44 = scmp.ne.s32.totalorder %s36, %s39
    %p45 = scmp.eq.s32.totalorder %s12, 0
    %p46 = por %p44, %p45
    %p47 = scmp.ne.s32.totalorder %s36, %s39
    %p48 = scmp.eq.s32.totalorder %s17, 1
    %p49 = por %p47, %p48
    %p50 = scmp.ne.s32.totalorder %s39, %s40
    %p51 = scmp.eq.s32.totalorder %s17, 0
    %p52 = por %p50, %p51
    %p53 = scmp.ne.s32.totalorder %s39, %s40
    %p54 = scmp.eq.s32.totalorder %s18, 1
    %p55 = por %p53, %p54
    %p57 = scmp.ne.s32.totalorder %s40, %s56
    %p58 = scmp.eq.s32.totalorder %s18, 0
    %p59 = por %p57, %p58
    %s60 = sadd.s32 %s19, %s20
    %s61 = sadd.s32 %s31, %s27
    %s62 = ssub.s32 %s60, %s61
    %p63 = scmp.eq.s32.totalorder %s62, 0
    %s65 = sadd.s32 %s64, 1
    %s66 = scalar_select %p63, %s64, %s65
    %p69 = pneg %p63
    %p70 = scmp.eq.s32.totalorder %s12, 1
    %p71 = por %p69, %p70
    %p72 = scmp.ne.s32.totalorder %s64, %s67
    %p73 = scmp.eq.s32.totalorder %s12, 0
    %p74 = por %p72, %p73
    %p75 = scmp.ne.s32.totalorder %s64, %s67
    %p76 = scmp.eq.s32.totalorder %s17, 1
    %p77 = por %p75, %p76
    %p78 = scmp.ne.s32.totalorder %s67, %s68
    %p79 = scmp.eq.s32.totalorder %s17, 0
    %p80 = por %p78, %p79
    %p81 = scmp.ne.s32.totalorder %s67, %s68
    %p82 = scmp.eq.s32.totalorder %s18, 1
    %p83 = por %p81, %p82
    %p85 = scmp.ne.s32.totalorder %s68, %s84
    %p86 = scmp.eq.s32.totalorder %s18, 0
    %p87 = por %p85, %p86
    %s89 = sadd.s32 %s88, 1
    %p92 = scmp.eq.s32.totalorder %s12, 1
    %p93 = scmp.ne.s32.totalorder %s88, %s90
    %p94 = scmp.eq.s32.totalorder %s12, 0
    %p95 = por %p93, %p94
    %p96 = scmp.ne.s32.totalorder %s88, %s90
    %p97 = scmp.eq.s32.totalorder %s17, 1
    %p98 = por %p96, %p97
    %p99 = scmp.ne.s32.totalorder %s90, %s91
    %p100 = scmp.eq.s32.totalorder %s17, 0
    %p101 = por %p99, %p100
    %p102 = scmp.ne.s32.totalorder %s90, %s91
    %p103 = scmp.eq.s32.totalorder %s18, 1
    %p104 = por %p102, %p103
    %p106 = scmp.ne.s32.totalorder %s91, %s105
    %p107 = scmp.eq.s32.totalorder %s18, 0
    %p108 = por %p106, %p107
    %s110 = sadd.s32 %s109, 1
    %p113 = scmp.eq.s32.totalorder %s12, 1
    %p114 = scmp.ne.s32.totalorder %s109, %s111
    %p115 = scmp.eq.s32.totalorder %s12, 0
    %p116 = por %p114, %p115
    %p117 = scmp.ne.s32.totalorder %s109, %s111
    %p118 = scmp.eq.s32.totalorder %s17, 1
    %p119 = por %p117, %p118
    %p120 = scmp.ne.s32.totalorder %s111, %s112
    %p121 = scmp.eq.s32.totalorder %s17, 0
    %p122 = por %p120, %p121
    %p123 = scmp.ne.s32.totalorder %s111, %s112
    %p124 = scmp.eq.s32.totalorder %s18, 1
    %p125 = por %p123, %p124
    %p127 = scmp.ne.s32.totalorder %s112, %s126
    %p128 = scmp.eq.s32.totalorder %s18, 0
    %p129 = por %p127, %p128
    %s131 = sadd.s32 %s130, 1
    %p134 = scmp.eq.s32.totalorder %s12, 1
    %p135 = scmp.ne.s32.totalorder %s130, %s132
    %p136 = scmp.eq.s32.totalorder %s12, 0
    %p137 = por %p135, %p136
    %p138 = scmp.ne.s32.totalorder %s130, %s132
    %p139 = scmp.eq.s32.totalorder %s17, 1
    %p140 = por %p138, %p139
    %p141 = scmp.ne.s32.totalorder %s132, %s133
    %p142 = scmp.eq.s32.totalorder %s17, 0
    %p143 = por %p141, %p142
    %p144 = scmp.ne.s32.totalorder %s132, %s133
    %p145 = scmp.eq.s32.totalorder %s18, 1
    %p146 = por %p144, %p145
    %p148 = scmp.ne.s32.totalorder %s133, %s147
    %p149 = scmp.eq.s32.totalorder %s18, 0
    %p150 = por %p148, %p149
    %s152 = sadd.s32 %s151, 1
    %p155 = scmp.eq.s32.totalorder %s12, 1
    %p156 = scmp.ne.s32.totalorder %s151, %s153
    %p157 = scmp.eq.s32.totalorder %s12, 0
    %p158 = por %p156, %p157
    %p159 = scmp.ne.s32.totalorder %s151, %s153
    %p160 = scmp.eq.s32.totalorder %s17, 1
    %p161 = por %p159, %p160
    %p162 = scmp.ne.s32.totalorder %s153, %s154
    %p163 = scmp.eq.s32.totalorder %s17, 0
    %p164 = por %p162, %p163
    %p165 = scmp.ne.s32.totalorder %s153, %s154
    %p166 = scmp.eq.s32.totalorder %s18, 1
    %p167 = por %p165, %p166
    %p169 = scmp.ne.s32.totalorder %s154, %s168
    %p170 = scmp.eq.s32.totalorder %s18, 0
    %p171 = por %p169, %p170
    %s172 = ssub.s32 %s19, %s31
    %p173 = scmp.eq.s32.totalorder %s172, 0
    %s175 = sadd.s32 %s174, 1
    %s176 = scalar_select %p173, %s174, %s175
    %p179 = pneg %p173
    %p180 = scmp.eq.s32.totalorder %s12, 1
    %p181 = por %p179, %p180
    %p182 = scmp.ne.s32.totalorder %s174, %s177
    %p183 = scmp.eq.s32.totalorder %s12, 0
    %p184 = por %p182, %p183
    %p185 = scmp.ne.s32.totalorder %s174, %s177
    %p186 = scmp.eq.s32.totalorder %s17, 1
    %p187 = por %p185, %p186
    %p188 = scmp.ne.s32.totalorder %s177, %s178
    %p189 = scmp.eq.s32.totalorder %s17, 0
    %p190 = por %p188, %p189
    %p191 = scmp.ne.s32.totalorder %s177, %s178
    %p192 = scmp.eq.s32.totalorder %s18, 1
    %p193 = por %p191, %p192
    %p195 = scmp.ne.s32.totalorder %s178, %s194
    %p196 = scmp.eq.s32.totalorder %s18, 0
    %p197 = por %p195, %p196
    %p198 = scmp.le.s32.totalorder 1, %s12
    %p199 = scmp.lt.s32.totalorder %s12, 3
    %p200 = pnand %p198, %p199
    %p201 = pneg %p200
    // Predicated region
    $region9: #{graph_prop_layer.1} parent=5 // pred_check
      _
    $region10: #{graph_prop_layer.1} parent=5 // pred_check_branch
      %203 = sbr.rel (%p200) target = $region12
    $region11: #{graph_prop_layer.1} parent=5 // pred_region
      %s204 = ssub.s32 %s12, 1
      // Predicated region
      $region13: #{graph_prop_layer.1} parent=11 // pred_check
        %p205 = pneg %p101
      $region14: #{graph_prop_layer.1} parent=11 // pred_check_branch
        %207 = sbr.rel (%p205) target = $region16
      $region15: #{graph_prop_layer.1} parent=11 // pred_region
        _
      $region16: #{graph_prop_layer.1} parent=11 // pred_fallthru
        _
      // Predicated region
      $region17: #{graph_prop_layer.1} parent=11 // pred_check
        %p208 = pneg %p122
      $region18: #{graph_prop_layer.1} parent=11 // pred_check_branch
        %210 = sbr.rel (%p208) target = $region20
      $region19: #{graph_prop_layer.1} parent=11 // pred_region
        _
      $region20: #{graph_prop_layer.1} parent=11 // pred_fallthru
        _
      // Predicated region
      $region21: #{graph_prop_layer.1} parent=11 // pred_check
        %p211 = pneg %p143
      $region22: #{graph_prop_layer.1} parent=11 // pred_check_branch
        %213 = sbr.rel (%p211) target = $region24
      $region23: #{graph_prop_layer.1} parent=11 // pred_region
        _
      $region24: #{graph_prop_layer.1} parent=11 // pred_fallthru
        _
      // Predicated region
      $region25: #{graph_prop_layer.1} parent=11 // pred_check
        %p214 = pneg %p164
      $region26: #{graph_prop_layer.1} parent=11 // pred_check_branch
        %216 = sbr.rel (%p214) target = $region28
      $region27: #{graph_prop_layer.1} parent=11 // pred_region
        _
      $region28: #{graph_prop_layer.1} parent=11 // pred_fallthru
        _
    $region12: #{graph_prop_layer.1} parent=5 // pred_fallthru
      _
    %p217 = scmp.lt.s32.totalorder %s12, 2
    // Predicated region
    $region29: #{graph_prop_layer.1} parent=5 // pred_check
      %p218 = pneg %p217
    $region30: #{graph_prop_layer.1} parent=5 // pred_check_branch
      %220 = sbr.rel (%p218) target = $region32
    $region31: #{graph_prop_layer.1} parent=5 // pred_region
      // Predicated region
      $region33: #{graph_prop_layer.1} parent=31 // pred_check
        %p221 = pneg %p46
      $region34: #{graph_prop_layer.1} parent=31 // pred_check_branch
        %223 = sbr.rel (%p221) target = $region36
      $region35: #{graph_prop_layer.1} parent=31 // pred_region
        %s224 = sadd.s32 %s19, %s20
        %s225 = smul.u32 32, %s224
        %p226 = scmp.lt.s32.totalorder %s225, 63
        %s227 = scalar_select %p226, %s225, 63
        %s228 = smul.addr %s227, 8
        %s229 = scalar_lea.vmem %s0, %s228
        %s230 = sadd.s32 %s19, %s20
        %s231 = smul.u32 32, %s230
      $region36: #{graph_prop_layer.1} parent=31 // pred_fallthru
        _
      // Predicated region
      $region37: #{graph_prop_layer.1} parent=31 // pred_check
        %p232 = pneg %p74
      $region38: #{graph_prop_layer.1} parent=31 // pred_check_branch
        %234 = sbr.rel (%p232) target = $region40
      $region39: #{graph_prop_layer.1} parent=31 // pred_region
        %s235 = sadd.s32 %s19, %s20
        %s236 = smul.u32 32, %s235
        %p237 = scmp.lt.s32.totalorder %s236, 63
        %s238 = scalar_select %p237, %s236, 63
        %s239 = smul.addr %s238, 4
        %s240 = scalar_lea.vmem %s1, %s239
        %s241 = sadd.s32 %s19, %s20
        %s242 = smul.u32 32, %s241
      $region40: #{graph_prop_layer.1} parent=31 // pred_fallthru
        _
    $region32: #{graph_prop_layer.1} parent=5 // pred_fallthru
      _
    %p243 = scmp.le.s32.totalorder 1, %s12
    %p244 = scmp.lt.s32.totalorder %s12, 3
    %p245 = pnand %p243, %p244
    %p246 = pneg %p245
    // Predicated region
    $region41: #{graph_prop_layer.1} parent=5 // pred_check
      _
    $region42: #{graph_prop_layer.1} parent=5 // pred_check_branch
      %248 = sbr.rel (%p245) target = $region44
    $region43: #{graph_prop_layer.1} parent=5 // pred_region
      %s249 = ssub.s32 %s12, 1
      %s250 = sadd.s32 %s21, %s22
      %s251 = smul.u32 32, %s250
      %p252 = scmp.lt.s32.totalorder %s251, 63
      %s253 = scalar_select %p252, %s251, 63
      %s254 = smul.addr %s253, 8
      %s255 = scalar_lea.vmem %s0, %s254
      %p256 = pneg %p52
      %p257 = pneg %p49
      %s258 = sadd.s32 %s21, %s22
      %s259 = smul.u32 32, %s258
      %p260 = scmp.lt.s32.totalorder %s259, 63
      %s261 = scalar_select %p260, %s259, 63
      %s262 = smul.addr %s261, 4
      %s263 = scalar_lea.vmem %s1, %s262
      %p264 = pneg %p80
      %p265 = pneg %p77
      %p266 = pneg %p101
      %p267 = pneg %p98
      %p268 = pneg %p122
      %p269 = pneg %p119
      %p270 = pneg %p143
      %p271 = pneg %p140
      %p272 = pneg %p164
      %p273 = pneg %p161
      %p274 = pneg %p190
      %p275 = pneg %p187
      %p276 = scmp.lt.s32.totalorder %s21, 1
      %s277 = scalar_select %p276, %s21, 1
      %s278 = smul.addr %s277, 16
      %s279 = smul.addr %s278, 8
      %s280 = scalar_lea.vmem %s6, %s279
      %s281 = sadd.s32 %s21, %s22
      %s282 = smul.u32 32, %s281
      %p283 = scmp.lt.s32.totalorder %s282, 63
      %s284 = scalar_select %p283, %s282, 63
      %s285 = smul.addr %s284, 8
      %s286 = scalar_lea.vmem %s0, %s285
      %s287 = sadd.s32 %s21, %s22
      %s288 = smul.u32 32, %s287
      %s289 = sadd.s32 %s21, %s22
      %s290 = smul.u32 32, %s289
      %p291 = scmp.lt.s32.totalorder %s290, 63
      %s292 = scalar_select %p291, %s290, 63
      %s293 = smul.addr %s292, 4
      %s294 = scalar_lea.vmem %s1, %s293
      %s295 = sadd.s32 %s21, %s22
      %s296 = smul.u32 32, %s295
      %p297 = scmp.lt.s32.totalorder %s21, 1
      %s298 = scalar_select %p297, %s21, 1
      %s299 = smul.addr %s298, 16
      %s300 = smul.addr %s299, 8
      %s301 = scalar_lea.vmem %s6, %s300
      %p303 = scmp.eq.s32.totalorder %s22, 0
      // Predicated region
      $region45: #{graph_prop_layer.1} parent=43 // pred_check
        %p304 = pneg %p303
      $region46: #{graph_prop_layer.1} parent=43 // pred_check_branch
        %306 = sbr.rel (%p304) target = $region48
      $region47: #{graph_prop_layer.1} parent=43 // pred_region
        %307 = vst [vmem:[#allocation2] sm:$0xff] 0.0
        %308 = vst [vmem:[#allocation2 + $0x8] sm:$0xff] 0.0
        %309 = vst [vmem:[#allocation2 + $0x10] sm:$0xff] 0.0
        %310 = vst [vmem:[#allocation2 + $0x18] sm:$0xff] 0.0
        %311 = vst [vmem:[#allocation2 + $0x20] sm:$0xff] 0.0
        %312 = vst [vmem:[#allocation2 + $0x28] sm:$0xff] 0.0
        %313 = vst [vmem:[#allocation2 + $0x30] sm:$0xff] 0.0
        %314 = vst [vmem:[#allocation2 + $0x38] sm:$0xff] 0.0
        %315 = vst [vmem:[#allocation2 + $0x40] sm:$0xff] 0.0
        %316 = vst [vmem:[#allocation2 + $0x48] sm:$0xff] 0.0
        %317 = vst [vmem:[#allocation2 + $0x50] sm:$0xff] 0.0
        %318 = vst [vmem:[#allocation2 + $0x58] sm:$0xff] 0.0
        %319 = vst [vmem:[#allocation2 + $0x60] sm:$0xff] 0.0
        %320 = vst [vmem:[#allocation2 + $0x68] sm:$0xff] 0.0
        %321 = vst [vmem:[#allocation2 + $0x70] sm:$0xff] 0.0
        %322 = vst [vmem:[#allocation2 + $0x78] sm:$0xff] 0.0
      $region48: #{graph_prop_layer.1} parent=43 // pred_fallthru
        _
      %s323 = sadd.s32 %s21, %s22
      %p324 = scmp.lt.s32.totalorder %s323, 1
      // Predicated region
      $region49: #{graph_prop_layer.1} parent=43 // pred_check
        %p325 = pneg %p324
      $region50: #{graph_prop_layer.1} parent=43 // pred_check_branch
        %327 = sbr.rel (%p325) target = $region52
      $region51: #{graph_prop_layer.1} parent=43 // pred_region
        %v328 = vld [vmem:[%s2] sm:$0xf]
        %v329 = vld [vmem:[%s2 + $0x4] sm:$0xf]
        %v330 = vld [vmem:[%s2 + $0x8] sm:$0xf]
        %v331 = vld [vmem:[%s2 + $0xc] sm:$0xf]
        %v332 = vld [vmem:[%s2 + $0x10] sm:$0xf]
        %v333 = vld [vmem:[%s2 + $0x14] sm:$0xf]
        %v334 = vld [vmem:[%s2 + $0x18] sm:$0xf]
        %v335 = vld [vmem:[%s2 + $0x1c] sm:$0xf]
        %v336 = vld [vmem:[%s286] sm:$0xff]
        %v337 = vld [vmem:[%s286 + $0x8] sm:$0xff]
        %v338 = vld [vmem:[%s286 + $0x10] sm:$0xff]
        %v339 = vld [vmem:[%s286 + $0x18] sm:$0xff]
        %v340 = vld [vmem:[%s286 + $0x20] sm:$0xff]
        %v341 = vld [vmem:[%s286 + $0x28] sm:$0xff]
        %v342 = vld [vmem:[%s286 + $0x30] sm:$0xff]
        %v343 = vld [vmem:[%s286 + $0x38] sm:$0xff]
        %v344 = vld [vmem:[%s286 + $0x40] sm:$0xff]
        %v345 = vld [vmem:[%s286 + $0x48] sm:$0xff]
        %v346 = vld [vmem:[%s286 + $0x50] sm:$0xff]
        %v347 = vld [vmem:[%s286 + $0x58] sm:$0xff]
        %v348 = vld [vmem:[%s286 + $0x60] sm:$0xff]
        %v349 = vld [vmem:[%s286 + $0x68] sm:$0xff]
        %v350 = vld [vmem:[%s286 + $0x70] sm:$0xff]
        %v351 = vld [vmem:[%s286 + $0x78] sm:$0xff]
        %v352 = vld [vmem:[%s286 + $0x80] sm:$0xff]
        %v353 = vld [vmem:[%s286 + $0x88] sm:$0xff]
        %v354 = vld [vmem:[%s286 + $0x90] sm:$0xff]
        %v355 = vld [vmem:[%s286 + $0x98] sm:$0xff]
        %v356 = vld [vmem:[%s286 + $0xa0] sm:$0xff]
        %v357 = vld [vmem:[%s286 + $0xa8] sm:$0xff]
        %v358 = vld [vmem:[%s286 + $0xb0] sm:$0xff]
        %v359 = vld [vmem:[%s286 + $0xb8] sm:$0xff]
        %v360 = vld [vmem:[%s286 + $0xc0] sm:$0xff]
        %v361 = vld [vmem:[%s286 + $0xc8] sm:$0xff]
        %v362 = vld [vmem:[%s286 + $0xd0] sm:$0xff]
        %v363 = vld [vmem:[%s286 + $0xd8] sm:$0xff]
        %v364 = vld [vmem:[%s286 + $0xe0] sm:$0xff]
        %v365 = vld [vmem:[%s286 + $0xe8] sm:$0xff]
        %v366 = vld [vmem:[%s286 + $0xf0] sm:$0xff]
        %v367 = vld [vmem:[%s286 + $0xf8] sm:$0xff]
        %v368 = vlaneseq
        %v369 = vand.u32 %v368, 127
        %370 = vset.pattern.permute.xlu0 0
        %371 = vperm.xlu0 %370, %v336
        %v372 = vpop.permute.xlu0 %371
        %373 = vset.pattern.permute.xlu0 0
        %374 = vperm.xlu0 %373, %v337
        %v375 = vpop.permute.xlu0 %374
        %376 = vset.pattern.permute.xlu0 0
        %377 = vperm.xlu0 %376, %v338
        %v378 = vpop.permute.xlu0 %377
        %379 = vset.pattern.permute.xlu0 0
        %380 = vperm.xlu0 %379, %v339
        %v381 = vpop.permute.xlu0 %380
        %382 = vset.pattern.permute.xlu0 0
        %383 = vperm.xlu0 %382, %v340
        %v384 = vpop.permute.xlu0 %383
        %385 = vset.pattern.permute.xlu0 0
        %386 = vperm.xlu0 %385, %v341
        %v387 = vpop.permute.xlu0 %386
        %388 = vset.pattern.permute.xlu0 0
        %389 = vperm.xlu0 %388, %v342
        %v390 = vpop.permute.xlu0 %389
        %391 = vset.pattern.permute.xlu0 0
        %392 = vperm.xlu0 %391, %v343
        %v393 = vpop.permute.xlu0 %392
        %394 = vset.pattern.permute.xlu0 0
        %395 = vperm.xlu0 %394, %v344
        %v396 = vpop.permute.xlu0 %395
        %397 = vset.pattern.permute.xlu0 0
        %398 = vperm.xlu0 %397, %v345
        %v399 = vpop.permute.xlu0 %398
        %400 = vset.pattern.permute.xlu0 0
        %401 = vperm.xlu0 %400, %v346
        %v402 = vpop.permute.xlu0 %401
        %403 = vset.pattern.permute.xlu0 0
        %404 = vperm.xlu0 %403, %v347
        %v405 = vpop.permute.xlu0 %404
        %406 = vset.pattern.permute.xlu0 0
        %407 = vperm.xlu0 %406, %v348
        %v408 = vpop.permute.xlu0 %407
        %409 = vset.pattern.permute.xlu0 0
        %410 = vperm.xlu0 %409, %v349
        %v411 = vpop.permute.xlu0 %410
        %412 = vset.pattern.permute.xlu0 0
        %413 = vperm.xlu0 %412, %v350
        %v414 = vpop.permute.xlu0 %413
        %415 = vset.pattern.permute.xlu0 0
        %416 = vperm.xlu0 %415, %v351
        %v417 = vpop.permute.xlu0 %416
        %418 = vset.pattern.permute.xlu0 0
        %419 = vperm.xlu0 %418, %v352
        %v420 = vpop.permute.xlu0 %419
        %421 = vset.pattern.permute.xlu0 0
        %422 = vperm.xlu0 %421, %v353
        %v423 = vpop.permute.xlu0 %422
        %424 = vset.pattern.permute.xlu0 0
        %425 = vperm.xlu0 %424, %v354
        %v426 = vpop.permute.xlu0 %425
        %427 = vset.pattern.permute.xlu0 0
        %428 = vperm.xlu0 %427, %v355
        %v429 = vpop.permute.xlu0 %428
        %430 = vset.pattern.permute.xlu0 0
        %431 = vperm.xlu0 %430, %v356
        %v432 = vpop.permute.xlu0 %431
        %433 = vset.pattern.permute.xlu0 0
        %434 = vperm.xlu0 %433, %v357
        %v435 = vpop.permute.xlu0 %434
        %436 = vset.pattern.permute.xlu0 0
        %437 = vperm.xlu0 %436, %v358
        %v438 = vpop.permute.xlu0 %437
        %439 = vset.pattern.permute.xlu0 0
        %440 = vperm.xlu0 %439, %v359
        %v441 = vpop.permute.xlu0 %440
        %442 = vset.pattern.permute.xlu0 0
        %443 = vperm.xlu0 %442, %v360
        %v444 = vpop.permute.xlu0 %443
        %445 = vset.pattern.permute.xlu0 0
        %446 = vperm.xlu0 %445, %v361
        %v447 = vpop.permute.xlu0 %446
        %448 = vset.pattern.permute.xlu0 0
        %449 = vperm.xlu0 %448, %v362
        %v450 = vpop.permute.xlu0 %449
        %451 = vset.pattern.permute.xlu0 0
        %452 = vperm.xlu0 %451, %v363
        %v453 = vpop.permute.xlu0 %452
        %454 = vset.pattern.permute.xlu0 0
        %455 = vperm.xlu0 %454, %v364
        %v456 = vpop.permute.xlu0 %455
        %457 = vset.pattern.permute.xlu0 0
        %458 = vperm.xlu0 %457, %v365
        %v459 = vpop.permute.xlu0 %458
        %460 = vset.pattern.permute.xlu0 0
        %461 = vperm.xlu0 %460, %v366
        %v462 = vpop.permute.xlu0 %461
        %463 = vset.pattern.permute.xlu0 0
        %464 = vperm.xlu0 %463, %v367
        %v465 = vpop.permute.xlu0 %464
        %vm466 = vcmp.eq.s32.totalorder %v369, %v372
        %vm467 = vcmp.eq.s32.totalorder %v369, %v375
        %vm468 = vcmp.eq.s32.totalorder %v369, %v378
        %vm469 = vcmp.eq.s32.totalorder %v369, %v381
        %vm470 = vcmp.eq.s32.totalorder %v369, %v384
        %vm471 = vcmp.eq.s32.totalorder %v369, %v387
        %vm472 = vcmp.eq.s32.totalorder %v369, %v390
        %vm473 = vcmp.eq.s32.totalorder %v369, %v393
        %vm474 = vcmp.eq.s32.totalorder %v369, %v396
        %vm475 = vcmp.eq.s32.totalorder %v369, %v399
        %vm476 = vcmp.eq.s32.totalorder %v369, %v402
        %vm477 = vcmp.eq.s32.totalorder %v369, %v405
        %vm478 = vcmp.eq.s32.totalorder %v369, %v408
        %vm479 = vcmp.eq.s32.totalorder %v369, %v411
        %vm480 = vcmp.eq.s32.totalorder %v369, %v414
        %vm481 = vcmp.eq.s32.totalorder %v369, %v417
        %vm482 = vcmp.eq.s32.totalorder %v369, %v420
        %vm483 = vcmp.eq.s32.totalorder %v369, %v423
        %vm484 = vcmp.eq.s32.totalorder %v369, %v426
        %vm485 = vcmp.eq.s32.totalorder %v369, %v429
        %vm486 = vcmp.eq.s32.totalorder %v369, %v432
        %vm487 = vcmp.eq.s32.totalorder %v369, %v435
        %vm488 = vcmp.eq.s32.totalorder %v369, %v438
        %vm489 = vcmp.eq.s32.totalorder %v369, %v441
        %vm490 = vcmp.eq.s32.totalorder %v369, %v444
        %vm491 = vcmp.eq.s32.totalorder %v369, %v447
        %vm492 = vcmp.eq.s32.totalorder %v369, %v450
        %vm493 = vcmp.eq.s32.totalorder %v369, %v453
        %vm494 = vcmp.eq.s32.totalorder %v369, %v456
        %vm495 = vcmp.eq.s32.totalorder %v369, %v459
        %vm496 = vcmp.eq.s32.totalorder %v369, %v462
        %vm497 = vcmp.eq.s32.totalorder %v369, %v465
        %v498 = vsel %vm466, 1, 0
        %v499 = vsel %vm467, 1, 0
        %v500 = vsel %vm468, 1, 0
        %v501 = vsel %vm469, 1, 0
        %v502 = vsel %vm470, 1, 0
        %v503 = vsel %vm471, 1, 0
        %v504 = vsel %vm472, 1, 0
        %v505 = vsel %vm473, 1, 0
        %v506 = vsel %vm474, 1, 0
        %v507 = vsel %vm475, 1, 0
        %v508 = vsel %vm476, 1, 0
        %v509 = vsel %vm477, 1, 0
        %v510 = vsel %vm478, 1, 0
        %v511 = vsel %vm479, 1, 0
        %v512 = vsel %vm480, 1, 0
        %v513 = vsel %vm481, 1, 0
        %v514 = vsel %vm482, 1, 0
        %v515 = vsel %vm483, 1, 0
        %v516 = vsel %vm484, 1, 0
        %v517 = vsel %vm485, 1, 0
        %v518 = vsel %vm486, 1, 0
        %v519 = vsel %vm487, 1, 0
        %v520 = vsel %vm488, 1, 0
        %v521 = vsel %vm489, 1, 0
        %v522 = vsel %vm490, 1, 0
        %v523 = vsel %vm491, 1, 0
        %v524 = vsel %vm492, 1, 0
        %v525 = vsel %vm493, 1, 0
        %v526 = vsel %vm494, 1, 0
        %v527 = vsel %vm495, 1, 0
        %v528 = vsel %vm496, 1, 0
        %v529 = vsel %vm497, 1, 0
        %v530 = vcvt.s32.f32 %v498
        %v531 = vcvt.s32.f32 %v499
        %v532 = vcvt.s32.f32 %v500
        %v533 = vcvt.s32.f32 %v501
        %v534 = vcvt.s32.f32 %v502
        %v535 = vcvt.s32.f32 %v503
        %v536 = vcvt.s32.f32 %v504
        %v537 = vcvt.s32.f32 %v505
        %v538 = vcvt.s32.f32 %v506
        %v539 = vcvt.s32.f32 %v507
        %v540 = vcvt.s32.f32 %v508
        %v541 = vcvt.s32.f32 %v509
        %v542 = vcvt.s32.f32 %v510
        %v543 = vcvt.s32.f32 %v511
        %v544 = vcvt.s32.f32 %v512
        %v545 = vcvt.s32.f32 %v513
        %v546 = vcvt.s32.f32 %v514
        %v547 = vcvt.s32.f32 %v515
        %v548 = vcvt.s32.f32 %v516
        %v549 = vcvt.s32.f32 %v517
        %v550 = vcvt.s32.f32 %v518
        %v551 = vcvt.s32.f32 %v519
        %v552 = vcvt.s32.f32 %v520
        %v553 = vcvt.s32.f32 %v521
        %v554 = vcvt.s32.f32 %v522
        %v555 = vcvt.s32.f32 %v523
        %v556 = vcvt.s32.f32 %v524
        %v557 = vcvt.s32.f32 %v525
        %v558 = vcvt.s32.f32 %v526
        %v559 = vcvt.s32.f32 %v527
        %v560 = vcvt.s32.f32 %v528
        %v561 = vcvt.s32.f32 %v529
        %v562 = vpack.c.bf16 %v531, %v530
        %v563 = vpack.c.bf16 %v533, %v532
        %v564 = vpack.c.bf16 %v535, %v534
        %v565 = vpack.c.bf16 %v537, %v536
        %v566 = vpack.c.bf16 %v539, %v538
        %v567 = vpack.c.bf16 %v541, %v540
        %v568 = vpack.c.bf16 %v543, %v542
        %v569 = vpack.c.bf16 %v545, %v544
        %v570 = vpack.c.bf16 %v547, %v546
        %v571 = vpack.c.bf16 %v549, %v548
        %v572 = vpack.c.bf16 %v551, %v550
        %v573 = vpack.c.bf16 %v553, %v552
        %v574 = vpack.c.bf16 %v555, %v554
        %v575 = vpack.c.bf16 %v557, %v556
        %v576 = vpack.c.bf16 %v559, %v558
        %v577 = vpack.c.bf16 %v561, %v560
        %578 = vset.pattern.permute.xlu0 1
        %579 = vperm.xlu0 %578, %v336
        %v580 = vpop.permute.xlu0 %579
        %581 = vset.pattern.permute.xlu0 1
        %582 = vperm.xlu0 %581, %v337
        %v583 = vpop.permute.xlu0 %582
        %584 = vset.pattern.permute.xlu0 1
        %585 = vperm.xlu0 %584, %v338
        %v586 = vpop.permute.xlu0 %585
        %587 = vset.pattern.permute.xlu0 1
        %588 = vperm.xlu0 %587, %v339
        %v589 = vpop.permute.xlu0 %588
        %590 = vset.pattern.permute.xlu0 1
        %591 = vperm.xlu0 %590, %v340
        %v592 = vpop.permute.xlu0 %591
        %593 = vset.pattern.permute.xlu0 1
        %594 = vperm.xlu0 %593, %v341
        %v595 = vpop.permute.xlu0 %594
        %596 = vset.pattern.permute.xlu0 1
        %597 = vperm.xlu0 %596, %v342
        %v598 = vpop.permute.xlu0 %597
        %599 = vset.pattern.permute.xlu0 1
        %600 = vperm.xlu0 %599, %v343
        %v601 = vpop.permute.xlu0 %600
        %602 = vset.pattern.permute.xlu0 1
        %603 = vperm.xlu0 %602, %v344
        %v604 = vpop.permute.xlu0 %603
        %605 = vset.pattern.permute.xlu0 1
        %606 = vperm.xlu0 %605, %v345
        %v607 = vpop.permute.xlu0 %606
        %608 = vset.pattern.permute.xlu0 1
        %609 = vperm.xlu0 %608, %v346
        %v610 = vpop.permute.xlu0 %609
        %611 = vset.pattern.permute.xlu0 1
        %612 = vperm.xlu0 %611, %v347
        %v613 = vpop.permute.xlu0 %612
        %614 = vset.pattern.permute.xlu0 1
        %615 = vperm.xlu0 %614, %v348
        %v616 = vpop.permute.xlu0 %615
        %617 = vset.pattern.permute.xlu0 1
        %618 = vperm.xlu0 %617, %v349
        %v619 = vpop.permute.xlu0 %618
        %620 = vset.pattern.permute.xlu0 1
        %621 = vperm.xlu0 %620, %v350
        %v622 = vpop.permute.xlu0 %621
        %623 = vset.pattern.permute.xlu0 1
        %624 = vperm.xlu0 %623, %v351
        %v625 = vpop.permute.xlu0 %624
        %626 = vset.pattern.permute.xlu0 1
        %627 = vperm.xlu0 %626, %v352
        %v628 = vpop.permute.xlu0 %627
        %629 = vset.pattern.permute.xlu0 1
        %630 = vperm.xlu0 %629, %v353
        %v631 = vpop.permute.xlu0 %630
        %632 = vset.pattern.permute.xlu0 1
        %633 = vperm.xlu0 %632, %v354
        %v634 = vpop.permute.xlu0 %633
        %635 = vset.pattern.permute.xlu0 1
        %636 = vperm.xlu0 %635, %v355
        %v637 = vpop.permute.xlu0 %636
        %638 = vset.pattern.permute.xlu0 1
        %639 = vperm.xlu0 %638, %v356
        %v640 = vpop.permute.xlu0 %639
        %641 = vset.pattern.permute.xlu0 1
        %642 = vperm.xlu0 %641, %v357
        %v643 = vpop.permute.xlu0 %642
        %644 = vset.pattern.permute.xlu0 1
        %645 = vperm.xlu0 %644, %v358
        %v646 = vpop.permute.xlu0 %645
        %647 = vset.pattern.permute.xlu0 1
        %648 = vperm.xlu0 %647, %v359
        %v649 = vpop.permute.xlu0 %648
        %650 = vset.pattern.permute.xlu0 1
        %651 = vperm.xlu0 %650, %v360
        %v652 = vpop.permute.xlu0 %651
        %653 = vset.pattern.permute.xlu0 1
        %654 = vperm.xlu0 %653, %v361
        %v655 = vpop.permute.xlu0 %654
        %656 = vset.pattern.permute.xlu0 1
        %657 = vperm.xlu0 %656, %v362
        %v658 = vpop.permute.xlu0 %657
        %659 = vset.pattern.permute.xlu0 1
        %660 = vperm.xlu0 %659, %v363
        %v661 = vpop.permute.xlu0 %660
        %662 = vset.pattern.permute.xlu0 1
        %663 = vperm.xlu0 %662, %v364
        %v664 = vpop.permute.xlu0 %663
        %665 = vset.pattern.permute.xlu0 1
        %666 = vperm.xlu0 %665, %v365
        %v667 = vpop.permute.xlu0 %666
        %668 = vset.pattern.permute.xlu0 1
        %669 = vperm.xlu0 %668, %v366
        %v670 = vpop.permute.xlu0 %669
        %671 = vset.pattern.permute.xlu0 1
        %672 = vperm.xlu0 %671, %v367
        %v673 = vpop.permute.xlu0 %672
        %vm674 = vcmp.eq.s32.totalorder %v369, %v580
        %vm675 = vcmp.eq.s32.totalorder %v369, %v583
        %vm676 = vcmp.eq.s32.totalorder %v369, %v586
        %vm677 = vcmp.eq.s32.totalorder %v369, %v589
        %vm678 = vcmp.eq.s32.totalorder %v369, %v592
        %vm679 = vcmp.eq.s32.totalorder %v369, %v595
        %vm680 = vcmp.eq.s32.totalorder %v369, %v598
        %vm681 = vcmp.eq.s32.totalorder %v369, %v601
        %vm682 = vcmp.eq.s32.totalorder %v369, %v604
        %vm683 = vcmp.eq.s32.totalorder %v369, %v607
        %vm684 = vcmp.eq.s32.totalorder %v369, %v610
        %vm685 = vcmp.eq.s32.totalorder %v369, %v613
        %vm686 = vcmp.eq.s32.totalorder %v369, %v616
        %vm687 = vcmp.eq.s32.totalorder %v369, %v619
        %vm688 = vcmp.eq.s32.totalorder %v369, %v622
        %vm689 = vcmp.eq.s32.totalorder %v369, %v625
        %vm690 = vcmp.eq.s32.totalorder %v369, %v628
        %vm691 = vcmp.eq.s32.totalorder %v369, %v631
        %vm692 = vcmp.eq.s32.totalorder %v369, %v634
        %vm693 = vcmp.eq.s32.totalorder %v369, %v637
        %vm694 = vcmp.eq.s32.totalorder %v369, %v640
        %vm695 = vcmp.eq.s32.totalorder %v369, %v643
        %vm696 = vcmp.eq.s32.totalorder %v369, %v646
        %vm697 = vcmp.eq.s32.totalorder %v369, %v649
        %vm698 = vcmp.eq.s32.totalorder %v369, %v652
        %vm699 = vcmp.eq.s32.totalorder %v369, %v655
        %vm700 = vcmp.eq.s32.totalorder %v369, %v658
        %vm701 = vcmp.eq.s32.totalorder %v369, %v661
        %vm702 = vcmp.eq.s32.totalorder %v369, %v664
        %vm703 = vcmp.eq.s32.totalorder %v369, %v667
        %vm704 = vcmp.eq.s32.totalorder %v369, %v670
        %vm705 = vcmp.eq.s32.totalorder %v369, %v673
        %v706 = vsel %vm674, 1, 0
        %v707 = vsel %vm675, 1, 0
        %v708 = vsel %vm676, 1, 0
        %v709 = vsel %vm677, 1, 0
        %v710 = vsel %vm678, 1, 0
        %v711 = vsel %vm679, 1, 0
        %v712 = vsel %vm680, 1, 0
        %v713 = vsel %vm681, 1, 0
        %v714 = vsel %vm682, 1, 0
        %v715 = vsel %vm683, 1, 0
        %v716 = vsel %vm684, 1, 0
        %v717 = vsel %vm685, 1, 0
        %v718 = vsel %vm686, 1, 0
        %v719 = vsel %vm687, 1, 0
        %v720 = vsel %vm688, 1, 0
        %v721 = vsel %vm689, 1, 0
        %v722 = vsel %vm690, 1, 0
        %v723 = vsel %vm691, 1, 0
        %v724 = vsel %vm692, 1, 0
        %v725 = vsel %vm693, 1, 0
        %v726 = vsel %vm694, 1, 0
        %v727 = vsel %vm695, 1, 0
        %v728 = vsel %vm696, 1, 0
        %v729 = vsel %vm697, 1, 0
        %v730 = vsel %vm698, 1, 0
        %v731 = vsel %vm699, 1, 0
        %v732 = vsel %vm700, 1, 0
        %v733 = vsel %vm701, 1, 0
        %v734 = vsel %vm702, 1, 0
        %v735 = vsel %vm703, 1, 0
        %v736 = vsel %vm704, 1, 0
        %v737 = vsel %vm705, 1, 0
        %v738 = vcvt.s32.f32 %v706
        %v739 = vcvt.s32.f32 %v707
        %v740 = vcvt.s32.f32 %v708
        %v741 = vcvt.s32.f32 %v709
        %v742 = vcvt.s32.f32 %v710
        %v743 = vcvt.s32.f32 %v711
        %v744 = vcvt.s32.f32 %v712
        %v745 = vcvt.s32.f32 %v713
        %v746 = vcvt.s32.f32 %v714
        %v747 = vcvt.s32.f32 %v715
        %v748 = vcvt.s32.f32 %v716
        %v749 = vcvt.s32.f32 %v717
        %v750 = vcvt.s32.f32 %v718
        %v751 = vcvt.s32.f32 %v719
        %v752 = vcvt.s32.f32 %v720
        %v753 = vcvt.s32.f32 %v721
        %v754 = vcvt.s32.f32 %v722
        %v755 = vcvt.s32.f32 %v723
        %v756 = vcvt.s32.f32 %v724
        %v757 = vcvt.s32.f32 %v725
        %v758 = vcvt.s32.f32 %v726
        %v759 = vcvt.s32.f32 %v727
        %v760 = vcvt.s32.f32 %v728
        %v761 = vcvt.s32.f32 %v729
        %v762 = vcvt.s32.f32 %v730
        %v763 = vcvt.s32.f32 %v731
        %v764 = vcvt.s32.f32 %v732
        %v765 = vcvt.s32.f32 %v733
        %v766 = vcvt.s32.f32 %v734
        %v767 = vcvt.s32.f32 %v735
        %v768 = vcvt.s32.f32 %v736
        %v769 = vcvt.s32.f32 %v737
        %v770 = vpack.c.bf16 %v739, %v738
        %v771 = vpack.c.bf16 %v741, %v740
        %v772 = vpack.c.bf16 %v743, %v742
        %v773 = vpack.c.bf16 %v745, %v744
        %v774 = vpack.c.bf16 %v747, %v746
        %v775 = vpack.c.bf16 %v749, %v748
        %v776 = vpack.c.bf16 %v751, %v750
        %v777 = vpack.c.bf16 %v753, %v752
        %v778 = vpack.c.bf16 %v755, %v754
        %v779 = vpack.c.bf16 %v757, %v756
        %v780 = vpack.c.bf16 %v759, %v758
        %v781 = vpack.c.bf16 %v761, %v760
        %v782 = vpack.c.bf16 %v763, %v762
        %v783 = vpack.c.bf16 %v765, %v764
        %v784 = vpack.c.bf16 %v767, %v766
        %v785 = vpack.c.bf16 %v769, %v768
        %v794 = vunpack.c.l.b16 %v328
        %v795 = vunpack.c.l.b16 %v329
        %v796 = vunpack.c.l.b16 %v330
        %v797 = vunpack.c.l.b16 %v331
        %v798 = vunpack.c.l.b16 %v332
        %v799 = vunpack.c.l.b16 %v333
        %v800 = vunpack.c.l.b16 %v334
        %v801 = vunpack.c.l.b16 %v335
        %v802 = vpack.c.b16 %v795, %v794
        %v803 = vpack.c.b16 %v797, %v796
        %v804 = vpack.c.b16 %v799, %v798
        %v805 = vpack.c.b16 %v801, %v800
        %vm810 = vcmask 523264
        %v812 = vsel %vm810, %v562, 0
        %v815 = vsel %vm810, %v563, 0
        %v818 = vsel %vm810, %v564, 0
        %v821 = vsel %vm810, %v565, 0
        %v824 = vsel %vm810, %v566, 0
        %v827 = vsel %vm810, %v567, 0
        %v830 = vsel %vm810, %v568, 0
        %v833 = vsel %vm810, %v569, 0
        %v836 = vsel %vm810, %v570, 0
        %v839 = vsel %vm810, %v571, 0
        %v842 = vsel %vm810, %v572, 0
        %v845 = vsel %vm810, %v573, 0
        %v848 = vsel %vm810, %v574, 0
        %v851 = vsel %vm810, %v575, 0
        %v854 = vsel %vm810, %v576, 0
        %v857 = vsel %vm810, %v577, 0
        %859 = vmatprep.subr.bf16.mxu0 0
        %860 = vmatpush1.bf16.msra.mxu0 0
        %861 = vmatprep.subr.bf16.mxu0 0
        %862 = vmatpush1.bf16.msra.mxu0 0
        %863 = vmatprep.subr.bf16.mxu0 0
        %864 = vmatpush1.bf16.msra.mxu0 0
        %865 = vmatprep.subr.bf16.mxu0 0
        %866 = vmatpush1.bf16.msra.mxu0 0
        %867 = vmatprep.subr.bf16.mxu0 0
        %868 = vmatpush1.bf16.msra.mxu0 %v805
        %869 = vmatprep.subr.bf16.mxu0 0
        %870 = vmatpush1.bf16.msra.mxu0 %v804
        %871 = vmatprep.subr.bf16.mxu0 0
        %872 = vmatpush1.bf16.msra.mxu0 %v803
        %873 = vmatprep.subr.bf16.mxu0 0
        %874 = vmatpush1.bf16.msra.mxu0 %v802
        %875 = vmatprep.subr.bf16.mxu0 0
        %876 = vmatpush2.bf16.msra.mxu0 0
        %877 = vmatprep.subr.bf16.mxu0 0
        %878 = vmatpush2.bf16.msra.mxu0 0
        %879 = vmatprep.subr.bf16.mxu0 0
        %880 = vmatpush2.bf16.msra.mxu0 0
        %881 = vmatprep.subr.bf16.mxu0 0
        %882 = vmatpush2.bf16.msra.mxu0 0
        %883 = vmatprep.subr.bf16.mxu0 0
        %884 = vmatpush2.bf16.msra.mxu0 0
        %885 = vmatprep.subr.bf16.mxu0 0
        %886 = vmatpush2.bf16.msra.mxu0 0
        %887 = vmatprep.subr.bf16.mxu0 0
        %888 = vmatpush2.bf16.msra.mxu0 0
        %889 = vmatprep.subr.bf16.mxu0 0
        %890 = vmatpush2.bf16.msra.mxu0 0
        %891 = vmatprep.mubr.bf16.mxu0 0
        %892 = vmatmul.mubr.bf16.gmra.mxu0 %v812
        %v893 = vpop.f32.mrf.mxu0
        %v894 = vadd.f32 0.0, %v893
        %v895 = vpop.f32.mrf.mxu0
        %v896 = vpop.f32.mrf.mxu0
        %v897 = vadd.f32 0.0, %v896
        %v898 = vpop.f32.mrf.mxu0
        %899 = vmatprep.mubr.bf16.mxu0 0
        %900 = vmatmul.mubr.bf16.gmra.mxu0 %v815
        %v901 = vpop.f32.mrf.mxu0
        %v902 = vadd.f32 0.0, %v901
        %v903 = vpop.f32.mrf.mxu0
        %v904 = vpop.f32.mrf.mxu0
        %v905 = vadd.f32 0.0, %v904
        %v906 = vpop.f32.mrf.mxu0
        %907 = vmatprep.mubr.bf16.mxu0 0
        %908 = vmatmul.mubr.bf16.gmra.mxu0 %v818
        %v909 = vpop.f32.mrf.mxu0
        %v910 = vadd.f32 0.0, %v909
        %v911 = vpop.f32.mrf.mxu0
        %v912 = vpop.f32.mrf.mxu0
        %v913 = vadd.f32 0.0, %v912
        %v914 = vpop.f32.mrf.mxu0
        %915 = vmatprep.mubr.bf16.mxu0 0
        %916 = vmatmul.mubr.bf16.gmra.mxu0 %v821
        %v917 = vpop.f32.mrf.mxu0
        %v918 = vadd.f32 0.0, %v917
        %v919 = vpop.f32.mrf.mxu0
        %v920 = vpop.f32.mrf.mxu0
        %v921 = vadd.f32 0.0, %v920
        %v922 = vpop.f32.mrf.mxu0
        %923 = vmatprep.mubr.bf16.mxu0 0
        %924 = vmatmul.mubr.bf16.gmra.mxu0 %v824
        %v925 = vpop.f32.mrf.mxu0
        %v926 = vadd.f32 0.0, %v925
        %v927 = vpop.f32.mrf.mxu0
        %v928 = vpop.f32.mrf.mxu0
        %v929 = vadd.f32 0.0, %v928
        %v930 = vpop.f32.mrf.mxu0
        %931 = vmatprep.mubr.bf16.mxu0 0
        %932 = vmatmul.mubr.bf16.gmra.mxu0 %v827
        %v933 = vpop.f32.mrf.mxu0
        %v934 = vadd.f32 0.0, %v933
        %v935 = vpop.f32.mrf.mxu0
        %v936 = vpop.f32.mrf.mxu0
        %v937 = vadd.f32 0.0, %v936
        %v938 = vpop.f32.mrf.mxu0
        %939 = vmatprep.mubr.bf16.mxu0 0
        %940 = vmatmul.mubr.bf16.gmra.mxu0 %v830
        %v941 = vpop.f32.mrf.mxu0
        %v942 = vadd.f32 0.0, %v941
        %v943 = vpop.f32.mrf.mxu0
        %v944 = vpop.f32.mrf.mxu0
        %v945 = vadd.f32 0.0, %v944
        %v946 = vpop.f32.mrf.mxu0
        %947 = vmatprep.mubr.bf16.mxu0 0
        %948 = vmatmul.mubr.bf16.gmra.mxu0 %v833
        %v949 = vpop.f32.mrf.mxu0
        %v950 = vadd.f32 0.0, %v949
        %v951 = vpop.f32.mrf.mxu0
        %v952 = vpop.f32.mrf.mxu0
        %v953 = vadd.f32 0.0, %v952
        %v954 = vpop.f32.mrf.mxu0
        %955 = vmatprep.mubr.bf16.mxu0 0
        %956 = vmatmul.mubr.bf16.gmra.mxu0 %v836
        %v957 = vpop.f32.mrf.mxu0
        %v958 = vadd.f32 0.0, %v957
        %v959 = vpop.f32.mrf.mxu0
        %v960 = vpop.f32.mrf.mxu0
        %v961 = vadd.f32 0.0, %v960
        %v962 = vpop.f32.mrf.mxu0
        %963 = vmatprep.mubr.bf16.mxu0 0
        %964 = vmatmul.mubr.bf16.gmra.mxu0 %v839
        %v965 = vpop.f32.mrf.mxu0
        %v966 = vadd.f32 0.0, %v965
        %v967 = vpop.f32.mrf.mxu0
        %v968 = vpop.f32.mrf.mxu0
        %v969 = vadd.f32 0.0, %v968
        %v970 = vpop.f32.mrf.mxu0
        %971 = vmatprep.mubr.bf16.mxu0 0
        %972 = vmatmul.mubr.bf16.gmra.mxu0 %v842
        %v973 = vpop.f32.mrf.mxu0
        %v974 = vadd.f32 0.0, %v973
        %v975 = vpop.f32.mrf.mxu0
        %v976 = vpop.f32.mrf.mxu0
        %v977 = vadd.f32 0.0, %v976
        %v978 = vpop.f32.mrf.mxu0
        %979 = vmatprep.mubr.bf16.mxu0 0
        %980 = vmatmul.mubr.bf16.gmra.mxu0 %v845
        %v981 = vpop.f32.mrf.mxu0
        %v982 = vadd.f32 0.0, %v981
        %v983 = vpop.f32.mrf.mxu0
        %v984 = vpop.f32.mrf.mxu0
        %v985 = vadd.f32 0.0, %v984
        %v986 = vpop.f32.mrf.mxu0
        %987 = vmatprep.mubr.bf16.mxu0 0
        %988 = vmatmul.mubr.bf16.gmra.mxu0 %v848
        %v989 = vpop.f32.mrf.mxu0
        %v990 = vadd.f32 0.0, %v989
        %v991 = vpop.f32.mrf.mxu0
        %v992 = vpop.f32.mrf.mxu0
        %v993 = vadd.f32 0.0, %v992
        %v994 = vpop.f32.mrf.mxu0
        %995 = vmatprep.mubr.bf16.mxu0 0
        %996 = vmatmul.mubr.bf16.gmra.mxu0 %v851
        %v997 = vpop.f32.mrf.mxu0
        %v998 = vadd.f32 0.0, %v997
        %v999 = vpop.f32.mrf.mxu0
        %v1000 = vpop.f32.mrf.mxu0
        %v1001 = vadd.f32 0.0, %v1000
        %v1002 = vpop.f32.mrf.mxu0
        %1003 = vmatprep.mubr.bf16.mxu0 0
        %1004 = vmatmul.mubr.bf16.gmra.mxu0 %v854
        %v1005 = vpop.f32.mrf.mxu0
        %v1006 = vadd.f32 0.0, %v1005
        %v1007 = vpop.f32.mrf.mxu0
        %v1008 = vpop.f32.mrf.mxu0
        %v1009 = vadd.f32 0.0, %v1008
        %v1010 = vpop.f32.mrf.mxu0
        %1011 = vmatprep.mubr.bf16.mxu0 0
        %1012 = vmatmul.mubr.bf16.gmra.mxu0 %v857
        %v1013 = vpop.f32.mrf.mxu0
        %v1014 = vadd.f32 0.0, %v1013
        %v1015 = vpop.f32.mrf.mxu0
        %v1016 = vpop.f32.mrf.mxu0
        %v1017 = vadd.f32 0.0, %v1016
        %v1018 = vpop.f32.mrf.mxu0
        %1019 = vdwg.mxu0
        %v1020 = vpack.c.bf16 %v897, %v894
        %v1021 = vpack.c.bf16 %v905, %v902
        %v1022 = vpack.c.bf16 %v913, %v910
        %v1023 = vpack.c.bf16 %v921, %v918
        %v1024 = vpack.c.bf16 %v929, %v926
        %v1025 = vpack.c.bf16 %v937, %v934
        %v1026 = vpack.c.bf16 %v945, %v942
        %v1027 = vpack.c.bf16 %v953, %v950
        %v1028 = vpack.c.bf16 %v961, %v958
        %v1029 = vpack.c.bf16 %v969, %v966
        %v1030 = vpack.c.bf16 %v977, %v974
        %v1031 = vpack.c.bf16 %v985, %v982
        %v1032 = vpack.c.bf16 %v993, %v990
        %v1033 = vpack.c.bf16 %v1001, %v998
        %v1034 = vpack.c.bf16 %v1009, %v1006
        %v1035 = vpack.c.bf16 %v1017, %v1014
        %v1037 = vsel %vm810, %v770, 0
        %v1040 = vsel %vm810, %v771, 0
        %v1043 = vsel %vm810, %v772, 0
        %v1046 = vsel %vm810, %v773, 0
        %v1049 = vsel %vm810, %v774, 0
        %v1052 = vsel %vm810, %v775, 0
        %v1055 = vsel %vm810, %v776, 0
        %v1058 = vsel %vm810, %v777, 0
        %v1061 = vsel %vm810, %v778, 0
        %v1064 = vsel %vm810, %v779, 0
        %v1067 = vsel %vm810, %v780, 0
        %v1070 = vsel %vm810, %v781, 0
        %v1073 = vsel %vm810, %v782, 0
        %v1076 = vsel %vm810, %v783, 0
        %v1079 = vsel %vm810, %v784, 0
        %v1082 = vsel %vm810, %v785, 0
        %1084 = vmatprep.subr.bf16.mxu0 0
        %1085 = vmatpush1.bf16.msra.mxu0 0
        %1086 = vmatprep.subr.bf16.mxu0 0
        %1087 = vmatpush1.bf16.msra.mxu0 0
        %1088 = vmatprep.subr.bf16.mxu0 0
        %1089 = vmatpush1.bf16.msra.mxu0 0
        %1090 = vmatprep.subr.bf16.mxu0 0
        %1091 = vmatpush1.bf16.msra.mxu0 0
        %1092 = vmatprep.subr.bf16.mxu0 0
        %1093 = vmatpush1.bf16.msra.mxu0 %v805
        %1094 = vmatprep.subr.bf16.mxu0 0
        %1095 = vmatpush1.bf16.msra.mxu0 %v804
        %1096 = vmatprep.subr.bf16.mxu0 0
        %1097 = vmatpush1.bf16.msra.mxu0 %v803
        %1098 = vmatprep.subr.bf16.mxu0 0
        %1099 = vmatpush1.bf16.msra.mxu0 %v802
        %1100 = vmatprep.subr.bf16.mxu0 0
        %1101 = vmatpush2.bf16.msra.mxu0 0
        %1102 = vmatprep.subr.bf16.mxu0 0
        %1103 = vmatpush2.bf16.msra.mxu0 0
        %1104 = vmatprep.subr.bf16.mxu0 0
        %1105 = vmatpush2.bf16.msra.mxu0 0
        %1106 = vmatprep.subr.bf16.mxu0 0
        %1107 = vmatpush2.bf16.msra.mxu0 0
        %1108 = vmatprep.subr.bf16.mxu0 0
        %1109 = vmatpush2.bf16.msra.mxu0 0
        %1110 = vmatprep.subr.bf16.mxu0 0
        %1111 = vmatpush2.bf16.msra.mxu0 0
        %1112 = vmatprep.subr.bf16.mxu0 0
        %1113 = vmatpush2.bf16.msra.mxu0 0
        %1114 = vmatprep.subr.bf16.mxu0 0
        %1115 = vmatpush2.bf16.msra.mxu0 0
        %1116 = vmatprep.mubr.bf16.mxu0 0
        %1117 = vmatmul.mubr.bf16.gmra.mxu0 %v1037
        %v1118 = vpop.f32.mrf.mxu0
        %v1119 = vadd.f32 0.0, %v1118
        %v1120 = vpop.f32.mrf.mxu0
        %v1121 = vpop.f32.mrf.mxu0
        %v1122 = vadd.f32 0.0, %v1121
        %v1123 = vpop.f32.mrf.mxu0
        %1124 = vmatprep.mubr.bf16.mxu0 0
        %1125 = vmatmul.mubr.bf16.gmra.mxu0 %v1040
        %v1126 = vpop.f32.mrf.mxu0
        %v1127 = vadd.f32 0.0, %v1126
        %v1128 = vpop.f32.mrf.mxu0
        %v1129 = vpop.f32.mrf.mxu0
        %v1130 = vadd.f32 0.0, %v1129
        %v1131 = vpop.f32.mrf.mxu0
        %1132 = vmatprep.mubr.bf16.mxu0 0
        %1133 = vmatmul.mubr.bf16.gmra.mxu0 %v1043
        %v1134 = vpop.f32.mrf.mxu0
        %v1135 = vadd.f32 0.0, %v1134
        %v1136 = vpop.f32.mrf.mxu0
        %v1137 = vpop.f32.mrf.mxu0
        %v1138 = vadd.f32 0.0, %v1137
        %v1139 = vpop.f32.mrf.mxu0
        %1140 = vmatprep.mubr.bf16.mxu0 0
        %1141 = vmatmul.mubr.bf16.gmra.mxu0 %v1046
        %v1142 = vpop.f32.mrf.mxu0
        %v1143 = vadd.f32 0.0, %v1142
        %v1144 = vpop.f32.mrf.mxu0
        %v1145 = vpop.f32.mrf.mxu0
        %v1146 = vadd.f32 0.0, %v1145
        %v1147 = vpop.f32.mrf.mxu0
        %1148 = vmatprep.mubr.bf16.mxu0 0
        %1149 = vmatmul.mubr.bf16.gmra.mxu0 %v1049
        %v1150 = vpop.f32.mrf.mxu0
        %v1151 = vadd.f32 0.0, %v1150
        %v1152 = vpop.f32.mrf.mxu0
        %v1153 = vpop.f32.mrf.mxu0
        %v1154 = vadd.f32 0.0, %v1153
        %v1155 = vpop.f32.mrf.mxu0
        %1156 = vmatprep.mubr.bf16.mxu0 0
        %1157 = vmatmul.mubr.bf16.gmra.mxu0 %v1052
        %v1158 = vpop.f32.mrf.mxu0
        %v1159 = vadd.f32 0.0, %v1158
        %v1160 = vpop.f32.mrf.mxu0
        %v1161 = vpop.f32.mrf.mxu0
        %v1162 = vadd.f32 0.0, %v1161
        %v1163 = vpop.f32.mrf.mxu0
        %1164 = vmatprep.mubr.bf16.mxu0 0
        %1165 = vmatmul.mubr.bf16.gmra.mxu0 %v1055
        %v1166 = vpop.f32.mrf.mxu0
        %v1167 = vadd.f32 0.0, %v1166
        %v1168 = vpop.f32.mrf.mxu0
        %v1169 = vpop.f32.mrf.mxu0
        %v1170 = vadd.f32 0.0, %v1169
        %v1171 = vpop.f32.mrf.mxu0
        %1172 = vmatprep.mubr.bf16.mxu0 0
        %1173 = vmatmul.mubr.bf16.gmra.mxu0 %v1058
        %v1174 = vpop.f32.mrf.mxu0
        %v1175 = vadd.f32 0.0, %v1174
        %v1176 = vpop.f32.mrf.mxu0
        %v1177 = vpop.f32.mrf.mxu0
        %v1178 = vadd.f32 0.0, %v1177
        %v1179 = vpop.f32.mrf.mxu0
        %1180 = vmatprep.mubr.bf16.mxu0 0
        %1181 = vmatmul.mubr.bf16.gmra.mxu0 %v1061
        %v1182 = vpop.f32.mrf.mxu0
        %v1183 = vadd.f32 0.0, %v1182
        %v1184 = vpop.f32.mrf.mxu0
        %v1185 = vpop.f32.mrf.mxu0
        %v1186 = vadd.f32 0.0, %v1185
        %v1187 = vpop.f32.mrf.mxu0
        %1188 = vmatprep.mubr.bf16.mxu0 0
        %1189 = vmatmul.mubr.bf16.gmra.mxu0 %v1064
        %v1190 = vpop.f32.mrf.mxu0
        %v1191 = vadd.f32 0.0, %v1190
        %v1192 = vpop.f32.mrf.mxu0
        %v1193 = vpop.f32.mrf.mxu0
        %v1194 = vadd.f32 0.0, %v1193
        %v1195 = vpop.f32.mrf.mxu0
        %1196 = vmatprep.mubr.bf16.mxu0 0
        %1197 = vmatmul.mubr.bf16.gmra.mxu0 %v1067
        %v1198 = vpop.f32.mrf.mxu0
        %v1199 = vadd.f32 0.0, %v1198
        %v1200 = vpop.f32.mrf.mxu0
        %v1201 = vpop.f32.mrf.mxu0
        %v1202 = vadd.f32 0.0, %v1201
        %v1203 = vpop.f32.mrf.mxu0
        %1204 = vmatprep.mubr.bf16.mxu0 0
        %1205 = vmatmul.mubr.bf16.gmra.mxu0 %v1070
        %v1206 = vpop.f32.mrf.mxu0
        %v1207 = vadd.f32 0.0, %v1206
        %v1208 = vpop.f32.mrf.mxu0
        %v1209 = vpop.f32.mrf.mxu0
        %v1210 = vadd.f32 0.0, %v1209
        %v1211 = vpop.f32.mrf.mxu0
        %1212 = vmatprep.mubr.bf16.mxu0 0
        %1213 = vmatmul.mubr.bf16.gmra.mxu0 %v1073
        %v1214 = vpop.f32.mrf.mxu0
        %v1215 = vadd.f32 0.0, %v1214
        %v1216 = vpop.f32.mrf.mxu0
        %v1217 = vpop.f32.mrf.mxu0
        %v1218 = vadd.f32 0.0, %v1217
        %v1219 = vpop.f32.mrf.mxu0
        %1220 = vmatprep.mubr.bf16.mxu0 0
        %1221 = vmatmul.mubr.bf16.gmra.mxu0 %v1076
        %v1222 = vpop.f32.mrf.mxu0
        %v1223 = vadd.f32 0.0, %v1222
        %v1224 = vpop.f32.mrf.mxu0
        %v1225 = vpop.f32.mrf.mxu0
        %v1226 = vadd.f32 0.0, %v1225
        %v1227 = vpop.f32.mrf.mxu0
        %1228 = vmatprep.mubr.bf16.mxu0 0
        %1229 = vmatmul.mubr.bf16.gmra.mxu0 %v1079
        %v1230 = vpop.f32.mrf.mxu0
        %v1231 = vadd.f32 0.0, %v1230
        %v1232 = vpop.f32.mrf.mxu0
        %v1233 = vpop.f32.mrf.mxu0
        %v1234 = vadd.f32 0.0, %v1233
        %v1235 = vpop.f32.mrf.mxu0
        %1236 = vmatprep.mubr.bf16.mxu0 0
        %1237 = vmatmul.mubr.bf16.gmra.mxu0 %v1082
        %v1238 = vpop.f32.mrf.mxu0
        %v1239 = vadd.f32 0.0, %v1238
        %v1240 = vpop.f32.mrf.mxu0
        %v1241 = vpop.f32.mrf.mxu0
        %v1242 = vadd.f32 0.0, %v1241
        %v1243 = vpop.f32.mrf.mxu0
        %1244 = vdwg.mxu0
        %v1245 = vpack.c.bf16 %v1122, %v1119
        %v1246 = vpack.c.bf16 %v1130, %v1127
        %v1247 = vpack.c.bf16 %v1138, %v1135
        %v1248 = vpack.c.bf16 %v1146, %v1143
        %v1249 = vpack.c.bf16 %v1154, %v1151
        %v1250 = vpack.c.bf16 %v1162, %v1159
        %v1251 = vpack.c.bf16 %v1170, %v1167
        %v1252 = vpack.c.bf16 %v1178, %v1175
        %v1253 = vpack.c.bf16 %v1186, %v1183
        %v1254 = vpack.c.bf16 %v1194, %v1191
        %v1255 = vpack.c.bf16 %v1202, %v1199
        %v1256 = vpack.c.bf16 %v1210, %v1207
        %v1257 = vpack.c.bf16 %v1218, %v1215
        %v1258 = vpack.c.bf16 %v1226, %v1223
        %v1259 = vpack.c.bf16 %v1234, %v1231
        %v1260 = vpack.c.bf16 %v1242, %v1239
        %v1261 = vld [vmem:[%s3] sm:$0xf]
        %v1262 = vld [vmem:[%s3 + $0x4] sm:$0xf]
        %v1263 = vld [vmem:[%s3 + $0x8] sm:$0xf]
        %v1264 = vld [vmem:[%s3 + $0xc] sm:$0xf]
        %v1265 = vld [vmem:[%s3 + $0x10] sm:$0xf]
        %v1266 = vld [vmem:[%s3 + $0x14] sm:$0xf]
        %v1267 = vld [vmem:[%s3 + $0x18] sm:$0xf]
        %v1268 = vld [vmem:[%s3 + $0x1c] sm:$0xf]
        %v1269 = vld [vmem:[%s3 + $0x20] sm:$0xf]
        %v1270 = vld [vmem:[%s3 + $0x24] sm:$0xf]
        %v1271 = vld [vmem:[%s3 + $0x28] sm:$0xf]
        %v1272 = vld [vmem:[%s3 + $0x2c] sm:$0xf]
        %v1273 = vld [vmem:[%s3 + $0x30] sm:$0xf]
        %v1274 = vld [vmem:[%s3 + $0x34] sm:$0xf]
        %v1275 = vld [vmem:[%s3 + $0x38] sm:$0xf]
        %v1276 = vld [vmem:[%s3 + $0x3c] sm:$0xf]
        %v1277 = vld [vmem:[%s5] sm:$0xff]
        %v1294 = vunpack.c.l.b16 %v1261
        %v1295 = vunpack.c.l.b16 %v1262
        %v1296 = vunpack.c.l.b16 %v1263
        %v1297 = vunpack.c.l.b16 %v1264
        %v1298 = vunpack.c.l.b16 %v1265
        %v1299 = vunpack.c.l.b16 %v1266
        %v1300 = vunpack.c.l.b16 %v1267
        %v1301 = vunpack.c.l.b16 %v1268
        %v1302 = vunpack.c.l.b16 %v1269
        %v1303 = vunpack.c.l.b16 %v1270
        %v1304 = vunpack.c.l.b16 %v1271
        %v1305 = vunpack.c.l.b16 %v1272
        %v1306 = vunpack.c.l.b16 %v1273
        %v1307 = vunpack.c.l.b16 %v1274
        %v1308 = vunpack.c.l.b16 %v1275
        %v1309 = vunpack.c.l.b16 %v1276
        %v1310 = vpack.c.b16 %v1295, %v1294
        %v1311 = vpack.c.b16 %v1297, %v1296
        %v1312 = vpack.c.b16 %v1299, %v1298
        %v1313 = vpack.c.b16 %v1301, %v1300
        %v1314 = vpack.c.b16 %v1303, %v1302
        %v1315 = vpack.c.b16 %v1305, %v1304
        %v1316 = vpack.c.b16 %v1307, %v1306
        %v1317 = vpack.c.b16 %v1309, %v1308
        %1318 = vrot.lane.b32.xlu0 %v1310, 112
        %v1319 = vpop.permute.xlu0 %1318
        %1320 = vrot.lane.b32.xlu0 %v1311, 112
        %v1321 = vpop.permute.xlu0 %1320
        %1322 = vrot.lane.b32.xlu0 %v1312, 112
        %v1323 = vpop.permute.xlu0 %1322
        %1324 = vrot.lane.b32.xlu0 %v1313, 112
        %v1325 = vpop.permute.xlu0 %1324
        %1326 = vrot.lane.b32.xlu0 %v1314, 112
        %v1327 = vpop.permute.xlu0 %1326
        %1328 = vrot.lane.b32.xlu0 %v1315, 112
        %v1329 = vpop.permute.xlu0 %1328
        %1330 = vrot.lane.b32.xlu0 %v1316, 112
        %v1331 = vpop.permute.xlu0 %1330
        %1332 = vrot.lane.b32.xlu0 %v1317, 112
        %v1333 = vpop.permute.xlu0 %1332
        %1342 = vmatprep.subr.bf16.mxu0 0
        %1343 = vmatpush1.bf16.msra.mxu0 %v1333
        %1344 = vmatprep.subr.bf16.mxu0 0
        %1345 = vmatpush1.bf16.msra.mxu0 %v1331
        %1346 = vmatprep.subr.bf16.mxu0 0
        %1347 = vmatpush1.bf16.msra.mxu0 %v1329
        %1348 = vmatprep.subr.bf16.mxu0 0
        %1349 = vmatpush1.bf16.msra.mxu0 %v1327
        %1350 = vmatprep.subr.bf16.mxu0 0
        %1351 = vmatpush1.bf16.msra.mxu0 %v1325
        %1352 = vmatprep.subr.bf16.mxu0 0
        %1353 = vmatpush1.bf16.msra.mxu0 %v1323
        %1354 = vmatprep.subr.bf16.mxu0 0
        %1355 = vmatpush1.bf16.msra.mxu0 %v1321
        %1356 = vmatprep.subr.bf16.mxu0 0
        %1357 = vmatpush1.bf16.msra.mxu0 %v1319
        %1358 = vmatprep.subr.bf16.mxu0 0
        %1359 = vmatpush2.bf16.msra.mxu0 0
        %1360 = vmatprep.subr.bf16.mxu0 0
        %1361 = vmatpush2.bf16.msra.mxu0 0
        %1362 = vmatprep.subr.bf16.mxu0 0
        %1363 = vmatpush2.bf16.msra.mxu0 0
        %1364 = vmatprep.subr.bf16.mxu0 0
        %1365 = vmatpush2.bf16.msra.mxu0 0
        %1366 = vmatprep.subr.bf16.mxu0 0
        %1367 = vmatpush2.bf16.msra.mxu0 0
        %1368 = vmatprep.subr.bf16.mxu0 0
        %1369 = vmatpush2.bf16.msra.mxu0 0
        %1370 = vmatprep.subr.bf16.mxu0 0
        %1371 = vmatpush2.bf16.msra.mxu0 0
        %1372 = vmatprep.subr.bf16.mxu0 0
        %1373 = vmatpush2.bf16.msra.mxu0 0
        %1374 = vmatprep.mubr.bf16.mxu0 0
        %1375 = vmatmul.mubr.bf16.gmra.mxu0 %v1245
        %v1376 = vpop.f32.mrf.mxu0
        %v1377 = vadd.f32 0.0, %v1376
        %v1378 = vpop.f32.mrf.mxu0
        %v1379 = vpop.f32.mrf.mxu0
        %v1380 = vadd.f32 0.0, %v1379
        %v1381 = vpop.f32.mrf.mxu0
        %1382 = vmatprep.mubr.bf16.mxu0 0
        %1383 = vmatmul.mubr.bf16.gmra.mxu0 %v1246
        %v1384 = vpop.f32.mrf.mxu0
        %v1385 = vadd.f32 0.0, %v1384
        %v1386 = vpop.f32.mrf.mxu0
        %v1387 = vpop.f32.mrf.mxu0
        %v1388 = vadd.f32 0.0, %v1387
        %v1389 = vpop.f32.mrf.mxu0
        %1390 = vmatprep.mubr.bf16.mxu0 0
        %1391 = vmatmul.mubr.bf16.gmra.mxu0 %v1247
        %v1392 = vpop.f32.mrf.mxu0
        %v1393 = vadd.f32 0.0, %v1392
        %v1394 = vpop.f32.mrf.mxu0
        %v1395 = vpop.f32.mrf.mxu0
        %v1396 = vadd.f32 0.0, %v1395
        %v1397 = vpop.f32.mrf.mxu0
        %1398 = vmatprep.mubr.bf16.mxu0 0
        %1399 = vmatmul.mubr.bf16.gmra.mxu0 %v1248
        %v1400 = vpop.f32.mrf.mxu0
        %v1401 = vadd.f32 0.0, %v1400
        %v1402 = vpop.f32.mrf.mxu0
        %v1403 = vpop.f32.mrf.mxu0
        %v1404 = vadd.f32 0.0, %v1403
        %v1405 = vpop.f32.mrf.mxu0
        %1406 = vmatprep.mubr.bf16.mxu0 0
        %1407 = vmatmul.mubr.bf16.gmra.mxu0 %v1249
        %v1408 = vpop.f32.mrf.mxu0
        %v1409 = vadd.f32 0.0, %v1408
        %v1410 = vpop.f32.mrf.mxu0
        %v1411 = vpop.f32.mrf.mxu0
        %v1412 = vadd.f32 0.0, %v1411
        %v1413 = vpop.f32.mrf.mxu0
        %1414 = vmatprep.mubr.bf16.mxu0 0
        %1415 = vmatmul.mubr.bf16.gmra.mxu0 %v1250
        %v1416 = vpop.f32.mrf.mxu0
        %v1417 = vadd.f32 0.0, %v1416
        %v1418 = vpop.f32.mrf.mxu0
        %v1419 = vpop.f32.mrf.mxu0
        %v1420 = vadd.f32 0.0, %v1419
        %v1421 = vpop.f32.mrf.mxu0
        %1422 = vmatprep.mubr.bf16.mxu0 0
        %1423 = vmatmul.mubr.bf16.gmra.mxu0 %v1251
        %v1424 = vpop.f32.mrf.mxu0
        %v1425 = vadd.f32 0.0, %v1424
        %v1426 = vpop.f32.mrf.mxu0
        %v1427 = vpop.f32.mrf.mxu0
        %v1428 = vadd.f32 0.0, %v1427
        %v1429 = vpop.f32.mrf.mxu0
        %1430 = vmatprep.mubr.bf16.mxu0 0
        %1431 = vmatmul.mubr.bf16.gmra.mxu0 %v1252
        %v1432 = vpop.f32.mrf.mxu0
        %v1433 = vadd.f32 0.0, %v1432
        %v1434 = vpop.f32.mrf.mxu0
        %v1435 = vpop.f32.mrf.mxu0
        %v1436 = vadd.f32 0.0, %v1435
        %v1437 = vpop.f32.mrf.mxu0
        %1438 = vmatprep.mubr.bf16.mxu0 0
        %1439 = vmatmul.mubr.bf16.gmra.mxu0 %v1253
        %v1440 = vpop.f32.mrf.mxu0
        %v1441 = vadd.f32 0.0, %v1440
        %v1442 = vpop.f32.mrf.mxu0
        %v1443 = vpop.f32.mrf.mxu0
        %v1444 = vadd.f32 0.0, %v1443
        %v1445 = vpop.f32.mrf.mxu0
        %1446 = vmatprep.mubr.bf16.mxu0 0
        %1447 = vmatmul.mubr.bf16.gmra.mxu0 %v1254
        %v1448 = vpop.f32.mrf.mxu0
        %v1449 = vadd.f32 0.0, %v1448
        %v1450 = vpop.f32.mrf.mxu0
        %v1451 = vpop.f32.mrf.mxu0
        %v1452 = vadd.f32 0.0, %v1451
        %v1453 = vpop.f32.mrf.mxu0
        %1454 = vmatprep.mubr.bf16.mxu0 0
        %1455 = vmatmul.mubr.bf16.gmra.mxu0 %v1255
        %v1456 = vpop.f32.mrf.mxu0
        %v1457 = vadd.f32 0.0, %v1456
        %v1458 = vpop.f32.mrf.mxu0
        %v1459 = vpop.f32.mrf.mxu0
        %v1460 = vadd.f32 0.0, %v1459
        %v1461 = vpop.f32.mrf.mxu0
        %1462 = vmatprep.mubr.bf16.mxu0 0
        %1463 = vmatmul.mubr.bf16.gmra.mxu0 %v1256
        %v1464 = vpop.f32.mrf.mxu0
        %v1465 = vadd.f32 0.0, %v1464
        %v1466 = vpop.f32.mrf.mxu0
        %v1467 = vpop.f32.mrf.mxu0
        %v1468 = vadd.f32 0.0, %v1467
        %v1469 = vpop.f32.mrf.mxu0
        %1470 = vmatprep.mubr.bf16.mxu0 0
        %1471 = vmatmul.mubr.bf16.gmra.mxu0 %v1257
        %v1472 = vpop.f32.mrf.mxu0
        %v1473 = vadd.f32 0.0, %v1472
        %v1474 = vpop.f32.mrf.mxu0
        %v1475 = vpop.f32.mrf.mxu0
        %v1476 = vadd.f32 0.0, %v1475
        %v1477 = vpop.f32.mrf.mxu0
        %1478 = vmatprep.mubr.bf16.mxu0 0
        %1479 = vmatmul.mubr.bf16.gmra.mxu0 %v1258
        %v1480 = vpop.f32.mrf.mxu0
        %v1481 = vadd.f32 0.0, %v1480
        %v1482 = vpop.f32.mrf.mxu0
        %v1483 = vpop.f32.mrf.mxu0
        %v1484 = vadd.f32 0.0, %v1483
        %v1485 = vpop.f32.mrf.mxu0
        %1486 = vmatprep.mubr.bf16.mxu0 0
        %1487 = vmatmul.mubr.bf16.gmra.mxu0 %v1259
        %v1488 = vpop.f32.mrf.mxu0
        %v1489 = vadd.f32 0.0, %v1488
        %v1490 = vpop.f32.mrf.mxu0
        %v1491 = vpop.f32.mrf.mxu0
        %v1492 = vadd.f32 0.0, %v1491
        %v1493 = vpop.f32.mrf.mxu0
        %1494 = vmatprep.mubr.bf16.mxu0 0
        %1495 = vmatmul.mubr.bf16.gmra.mxu0 %v1260
        %v1496 = vpop.f32.mrf.mxu0
        %v1497 = vadd.f32 0.0, %v1496
        %v1498 = vpop.f32.mrf.mxu0
        %v1499 = vpop.f32.mrf.mxu0
        %v1500 = vadd.f32 0.0, %v1499
        %v1501 = vpop.f32.mrf.mxu0
        %1502 = vdwg.mxu0
        %1511 = vmatprep.subr.bf16.mxu0 0
        %1512 = vmatpush1.bf16.msra.mxu0 %v1317
        %1513 = vmatprep.subr.bf16.mxu0 0
        %1514 = vmatpush1.bf16.msra.mxu0 %v1316
        %1515 = vmatprep.subr.bf16.mxu0 0
        %1516 = vmatpush1.bf16.msra.mxu0 %v1315
        %1517 = vmatprep.subr.bf16.mxu0 0
        %1518 = vmatpush1.bf16.msra.mxu0 %v1314
        %1519 = vmatprep.subr.bf16.mxu0 0
        %1520 = vmatpush1.bf16.msra.mxu0 %v1313
        %1521 = vmatprep.subr.bf16.mxu0 0
        %1522 = vmatpush1.bf16.msra.mxu0 %v1312
        %1523 = vmatprep.subr.bf16.mxu0 0
        %1524 = vmatpush1.bf16.msra.mxu0 %v1311
        %1525 = vmatprep.subr.bf16.mxu0 0
        %1526 = vmatpush1.bf16.msra.mxu0 %v1310
        %1527 = vmatprep.subr.bf16.mxu0 0
        %1528 = vmatpush2.bf16.msra.mxu0 0
        %1529 = vmatprep.subr.bf16.mxu0 0
        %1530 = vmatpush2.bf16.msra.mxu0 0
        %1531 = vmatprep.subr.bf16.mxu0 0
        %1532 = vmatpush2.bf16.msra.mxu0 0
        %1533 = vmatprep.subr.bf16.mxu0 0
        %1534 = vmatpush2.bf16.msra.mxu0 0
        %1535 = vmatprep.subr.bf16.mxu0 0
        %1536 = vmatpush2.bf16.msra.mxu0 0
        %1537 = vmatprep.subr.bf16.mxu0 0
        %1538 = vmatpush2.bf16.msra.mxu0 0
        %1539 = vmatprep.subr.bf16.mxu0 0
        %1540 = vmatpush2.bf16.msra.mxu0 0
        %1541 = vmatprep.subr.bf16.mxu0 0
        %1542 = vmatpush2.bf16.msra.mxu0 0
        %1543 = vmatprep.mubr.bf16.mxu0 0
        %1544 = vmatmul.mubr.bf16.gmra.mxu0 %v1020
        %v1545 = vpop.f32.mrf.mxu0
        %v1546 = vadd.f32 %v1377, %v1545
        %v1547 = vpop.f32.mrf.mxu0
        %v1548 = vpop.f32.mrf.mxu0
        %v1549 = vadd.f32 %v1380, %v1548
        %v1550 = vpop.f32.mrf.mxu0
        %1551 = vmatprep.mubr.bf16.mxu0 0
        %1552 = vmatmul.mubr.bf16.gmra.mxu0 %v1021
        %v1553 = vpop.f32.mrf.mxu0
        %v1554 = vadd.f32 %v1385, %v1553
        %v1555 = vpop.f32.mrf.mxu0
        %v1556 = vpop.f32.mrf.mxu0
        %v1557 = vadd.f32 %v1388, %v1556
        %v1558 = vpop.f32.mrf.mxu0
        %1559 = vmatprep.mubr.bf16.mxu0 0
        %1560 = vmatmul.mubr.bf16.gmra.mxu0 %v1022
        %v1561 = vpop.f32.mrf.mxu0
        %v1562 = vadd.f32 %v1393, %v1561
        %v1563 = vpop.f32.mrf.mxu0
        %v1564 = vpop.f32.mrf.mxu0
        %v1565 = vadd.f32 %v1396, %v1564
        %v1566 = vpop.f32.mrf.mxu0
        %1567 = vmatprep.mubr.bf16.mxu0 0
        %1568 = vmatmul.mubr.bf16.gmra.mxu0 %v1023
        %v1569 = vpop.f32.mrf.mxu0
        %v1570 = vadd.f32 %v1401, %v1569
        %v1571 = vpop.f32.mrf.mxu0
        %v1572 = vpop.f32.mrf.mxu0
        %v1573 = vadd.f32 %v1404, %v1572
        %v1574 = vpop.f32.mrf.mxu0
        %1575 = vmatprep.mubr.bf16.mxu0 0
        %1576 = vmatmul.mubr.bf16.gmra.mxu0 %v1024
        %v1577 = vpop.f32.mrf.mxu0
        %v1578 = vadd.f32 %v1409, %v1577
        %v1579 = vpop.f32.mrf.mxu0
        %v1580 = vpop.f32.mrf.mxu0
        %v1581 = vadd.f32 %v1412, %v1580
        %v1582 = vpop.f32.mrf.mxu0
        %1583 = vmatprep.mubr.bf16.mxu0 0
        %1584 = vmatmul.mubr.bf16.gmra.mxu0 %v1025
        %v1585 = vpop.f32.mrf.mxu0
        %v1586 = vadd.f32 %v1417, %v1585
        %v1587 = vpop.f32.mrf.mxu0
        %v1588 = vpop.f32.mrf.mxu0
        %v1589 = vadd.f32 %v1420, %v1588
        %v1590 = vpop.f32.mrf.mxu0
        %1591 = vmatprep.mubr.bf16.mxu0 0
        %1592 = vmatmul.mubr.bf16.gmra.mxu0 %v1026
        %v1593 = vpop.f32.mrf.mxu0
        %v1594 = vadd.f32 %v1425, %v1593
        %v1595 = vpop.f32.mrf.mxu0
        %v1596 = vpop.f32.mrf.mxu0
        %v1597 = vadd.f32 %v1428, %v1596
        %v1598 = vpop.f32.mrf.mxu0
        %1599 = vmatprep.mubr.bf16.mxu0 0
        %1600 = vmatmul.mubr.bf16.gmra.mxu0 %v1027
        %v1601 = vpop.f32.mrf.mxu0
        %v1602 = vadd.f32 %v1433, %v1601
        %v1603 = vpop.f32.mrf.mxu0
        %v1604 = vpop.f32.mrf.mxu0
        %v1605 = vadd.f32 %v1436, %v1604
        %v1606 = vpop.f32.mrf.mxu0
        %1607 = vmatprep.mubr.bf16.mxu0 0
        %1608 = vmatmul.mubr.bf16.gmra.mxu0 %v1028
        %v1609 = vpop.f32.mrf.mxu0
        %v1610 = vadd.f32 %v1441, %v1609
        %v1611 = vpop.f32.mrf.mxu0
        %v1612 = vpop.f32.mrf.mxu0
        %v1613 = vadd.f32 %v1444, %v1612
        %v1614 = vpop.f32.mrf.mxu0
        %1615 = vmatprep.mubr.bf16.mxu0 0
        %1616 = vmatmul.mubr.bf16.gmra.mxu0 %v1029
        %v1617 = vpop.f32.mrf.mxu0
        %v1618 = vadd.f32 %v1449, %v1617
        %v1619 = vpop.f32.mrf.mxu0
        %v1620 = vpop.f32.mrf.mxu0
        %v1621 = vadd.f32 %v1452, %v1620
        %v1622 = vpop.f32.mrf.mxu0
        %1623 = vmatprep.mubr.bf16.mxu0 0
        %1624 = vmatmul.mubr.bf16.gmra.mxu0 %v1030
        %v1625 = vpop.f32.mrf.mxu0
        %v1626 = vadd.f32 %v1457, %v1625
        %v1627 = vpop.f32.mrf.mxu0
        %v1628 = vpop.f32.mrf.mxu0
        %v1629 = vadd.f32 %v1460, %v1628
        %v1630 = vpop.f32.mrf.mxu0
        %1631 = vmatprep.mubr.bf16.mxu0 0
        %1632 = vmatmul.mubr.bf16.gmra.mxu0 %v1031
        %v1633 = vpop.f32.mrf.mxu0
        %v1634 = vadd.f32 %v1465, %v1633
        %v1635 = vpop.f32.mrf.mxu0
        %v1636 = vpop.f32.mrf.mxu0
        %v1637 = vadd.f32 %v1468, %v1636
        %v1638 = vpop.f32.mrf.mxu0
        %1639 = vmatprep.mubr.bf16.mxu0 0
        %1640 = vmatmul.mubr.bf16.gmra.mxu0 %v1032
        %v1641 = vpop.f32.mrf.mxu0
        %v1642 = vadd.f32 %v1473, %v1641
        %v1643 = vpop.f32.mrf.mxu0
        %v1644 = vpop.f32.mrf.mxu0
        %v1645 = vadd.f32 %v1476, %v1644
        %v1646 = vpop.f32.mrf.mxu0
        %1647 = vmatprep.mubr.bf16.mxu0 0
        %1648 = vmatmul.mubr.bf16.gmra.mxu0 %v1033
        %v1649 = vpop.f32.mrf.mxu0
        %v1650 = vadd.f32 %v1481, %v1649
        %v1651 = vpop.f32.mrf.mxu0
        %v1652 = vpop.f32.mrf.mxu0
        %v1653 = vadd.f32 %v1484, %v1652
        %v1654 = vpop.f32.mrf.mxu0
        %1655 = vmatprep.mubr.bf16.mxu0 0
        %1656 = vmatmul.mubr.bf16.gmra.mxu0 %v1034
        %v1657 = vpop.f32.mrf.mxu0
        %v1658 = vadd.f32 %v1489, %v1657
        %v1659 = vpop.f32.mrf.mxu0
        %v1660 = vpop.f32.mrf.mxu0
        %v1661 = vadd.f32 %v1492, %v1660
        %v1662 = vpop.f32.mrf.mxu0
        %1663 = vmatprep.mubr.bf16.mxu0 0
        %1664 = vmatmul.mubr.bf16.gmra.mxu0 %v1035
        %v1665 = vpop.f32.mrf.mxu0
        %v1666 = vadd.f32 %v1497, %v1665
        %v1667 = vpop.f32.mrf.mxu0
        %v1668 = vpop.f32.mrf.mxu0
        %v1669 = vadd.f32 %v1500, %v1668
        %v1670 = vpop.f32.mrf.mxu0
        %1671 = vdwg.mxu0
        %v1672 = vld [vmem:[%s294] sm:$0xf]
        %v1673 = vld [vmem:[%s294 + $0x4] sm:$0xf]
        %v1674 = vld [vmem:[%s294 + $0x8] sm:$0xf]
        %v1675 = vld [vmem:[%s294 + $0xc] sm:$0xf]
        %v1676 = vld [vmem:[%s294 + $0x10] sm:$0xf]
        %v1677 = vld [vmem:[%s294 + $0x14] sm:$0xf]
        %v1678 = vld [vmem:[%s294 + $0x18] sm:$0xf]
        %v1679 = vld [vmem:[%s294 + $0x1c] sm:$0xf]
        %v1680 = vld [vmem:[%s294 + $0x20] sm:$0xf]
        %v1681 = vld [vmem:[%s294 + $0x24] sm:$0xf]
        %v1682 = vld [vmem:[%s294 + $0x28] sm:$0xf]
        %v1683 = vld [vmem:[%s294 + $0x2c] sm:$0xf]
        %v1684 = vld [vmem:[%s294 + $0x30] sm:$0xf]
        %v1685 = vld [vmem:[%s294 + $0x34] sm:$0xf]
        %v1686 = vld [vmem:[%s294 + $0x38] sm:$0xf]
        %v1687 = vld [vmem:[%s294 + $0x3c] sm:$0xf]
        %v1688 = vld [vmem:[%s294 + $0x40] sm:$0xf]
        %v1689 = vld [vmem:[%s294 + $0x44] sm:$0xf]
        %v1690 = vld [vmem:[%s294 + $0x48] sm:$0xf]
        %v1691 = vld [vmem:[%s294 + $0x4c] sm:$0xf]
        %v1692 = vld [vmem:[%s294 + $0x50] sm:$0xf]
        %v1693 = vld [vmem:[%s294 + $0x54] sm:$0xf]
        %v1694 = vld [vmem:[%s294 + $0x58] sm:$0xf]
        %v1695 = vld [vmem:[%s294 + $0x5c] sm:$0xf]
        %v1696 = vld [vmem:[%s294 + $0x60] sm:$0xf]
        %v1697 = vld [vmem:[%s294 + $0x64] sm:$0xf]
        %v1698 = vld [vmem:[%s294 + $0x68] sm:$0xf]
        %v1699 = vld [vmem:[%s294 + $0x6c] sm:$0xf]
        %v1700 = vld [vmem:[%s294 + $0x70] sm:$0xf]
        %v1701 = vld [vmem:[%s294 + $0x74] sm:$0xf]
        %v1702 = vld [vmem:[%s294 + $0x78] sm:$0xf]
        %v1703 = vld [vmem:[%s294 + $0x7c] sm:$0xf]
        %v1736 = vunpack.c.l.b16 %v1672
        %v1737 = vunpack.c.l.b16 %v1673
        %v1738 = vunpack.c.l.b16 %v1674
        %v1739 = vunpack.c.l.b16 %v1675
        %v1740 = vunpack.c.l.b16 %v1676
        %v1741 = vunpack.c.l.b16 %v1677
        %v1742 = vunpack.c.l.b16 %v1678
        %v1743 = vunpack.c.l.b16 %v1679
        %v1744 = vunpack.c.l.b16 %v1680
        %v1745 = vunpack.c.l.b16 %v1681
        %v1746 = vunpack.c.l.b16 %v1682
        %v1747 = vunpack.c.l.b16 %v1683
        %v1748 = vunpack.c.l.b16 %v1684
        %v1749 = vunpack.c.l.b16 %v1685
        %v1750 = vunpack.c.l.b16 %v1686
        %v1751 = vunpack.c.l.b16 %v1687
        %v1752 = vunpack.c.l.b16 %v1688
        %v1753 = vunpack.c.l.b16 %v1689
        %v1754 = vunpack.c.l.b16 %v1690
        %v1755 = vunpack.c.l.b16 %v1691
        %v1756 = vunpack.c.l.b16 %v1692
        %v1757 = vunpack.c.l.b16 %v1693
        %v1758 = vunpack.c.l.b16 %v1694
        %v1759 = vunpack.c.l.b16 %v1695
        %v1760 = vunpack.c.l.b16 %v1696
        %v1761 = vunpack.c.l.b16 %v1697
        %v1762 = vunpack.c.l.b16 %v1698
        %v1763 = vunpack.c.l.b16 %v1699
        %v1764 = vunpack.c.l.b16 %v1700
        %v1765 = vunpack.c.l.b16 %v1701
        %v1766 = vunpack.c.l.b16 %v1702
        %v1767 = vunpack.c.l.b16 %v1703
        %v1768 = vpack.c.b16 %v1737, %v1736
        %v1769 = vpack.c.b16 %v1739, %v1738
        %v1770 = vpack.c.b16 %v1741, %v1740
        %v1771 = vpack.c.b16 %v1743, %v1742
        %v1772 = vpack.c.b16 %v1745, %v1744
        %v1773 = vpack.c.b16 %v1747, %v1746
        %v1774 = vpack.c.b16 %v1749, %v1748
        %v1775 = vpack.c.b16 %v1751, %v1750
        %v1776 = vpack.c.b16 %v1753, %v1752
        %v1777 = vpack.c.b16 %v1755, %v1754
        %v1778 = vpack.c.b16 %v1757, %v1756
        %v1779 = vpack.c.b16 %v1759, %v1758
        %v1780 = vpack.c.b16 %v1761, %v1760
        %v1781 = vpack.c.b16 %v1763, %v1762
        %v1782 = vpack.c.b16 %v1765, %v1764
        %v1783 = vpack.c.b16 %v1767, %v1766
        %1784 = vrot.lane.b32.xlu0 %v1310, 96
        %v1785 = vpop.permute.xlu0 %1784
        %1786 = vrot.lane.b32.xlu0 %v1311, 96
        %v1787 = vpop.permute.xlu0 %1786
        %1788 = vrot.lane.b32.xlu0 %v1312, 96
        %v1789 = vpop.permute.xlu0 %1788
        %1790 = vrot.lane.b32.xlu0 %v1313, 96
        %v1791 = vpop.permute.xlu0 %1790
        %v1797 = vsel %vm810, %v1768, 0
        %v1800 = vsel %vm810, %v1769, 0
        %v1803 = vsel %vm810, %v1770, 0
        %v1806 = vsel %vm810, %v1771, 0
        %v1809 = vsel %vm810, %v1772, 0
        %v1812 = vsel %vm810, %v1773, 0
        %v1815 = vsel %vm810, %v1774, 0
        %v1818 = vsel %vm810, %v1775, 0
        %v1821 = vsel %vm810, %v1776, 0
        %v1824 = vsel %vm810, %v1777, 0
        %v1827 = vsel %vm810, %v1778, 0
        %v1830 = vsel %vm810, %v1779, 0
        %v1833 = vsel %vm810, %v1780, 0
        %v1836 = vsel %vm810, %v1781, 0
        %v1839 = vsel %vm810, %v1782, 0
        %v1842 = vsel %vm810, %v1783, 0
        %1844 = vmatprep.subr.bf16.mxu0 0
        %1845 = vmatpush1.bf16.msra.mxu0 0
        %1846 = vmatprep.subr.bf16.mxu0 0
        %1847 = vmatpush1.bf16.msra.mxu0 0
        %1848 = vmatprep.subr.bf16.mxu0 0
        %1849 = vmatpush1.bf16.msra.mxu0 0
        %1850 = vmatprep.subr.bf16.mxu0 0
        %1851 = vmatpush1.bf16.msra.mxu0 0
        %1852 = vmatprep.subr.bf16.mxu0 0
        %1853 = vmatpush1.bf16.msra.mxu0 %v1791
        %1854 = vmatprep.subr.bf16.mxu0 0
        %1855 = vmatpush1.bf16.msra.mxu0 %v1789
        %1856 = vmatprep.subr.bf16.mxu0 0
        %1857 = vmatpush1.bf16.msra.mxu0 %v1787
        %1858 = vmatprep.subr.bf16.mxu0 0
        %1859 = vmatpush1.bf16.msra.mxu0 %v1785
        %1860 = vmatprep.subr.bf16.mxu0 0
        %1861 = vmatpush2.bf16.msra.mxu0 0
        %1862 = vmatprep.subr.bf16.mxu0 0
        %1863 = vmatpush2.bf16.msra.mxu0 0
        %1864 = vmatprep.subr.bf16.mxu0 0
        %1865 = vmatpush2.bf16.msra.mxu0 0
        %1866 = vmatprep.subr.bf16.mxu0 0
        %1867 = vmatpush2.bf16.msra.mxu0 0
        %1868 = vmatprep.subr.bf16.mxu0 0
        %1869 = vmatpush2.bf16.msra.mxu0 0
        %1870 = vmatprep.subr.bf16.mxu0 0
        %1871 = vmatpush2.bf16.msra.mxu0 0
        %1872 = vmatprep.subr.bf16.mxu0 0
        %1873 = vmatpush2.bf16.msra.mxu0 0
        %1874 = vmatprep.subr.bf16.mxu0 0
        %1875 = vmatpush2.bf16.msra.mxu0 0
        %1876 = vmatprep.mubr.bf16.mxu0 0
        %1877 = vmatmul.mubr.bf16.gmra.mxu0 %v1797
        %v1878 = vpop.f32.mrf.mxu0
        %v1879 = vadd.f32 0.0, %v1878
        %v1880 = vpop.f32.mrf.mxu0
        %v1881 = vpop.f32.mrf.mxu0
        %v1882 = vadd.f32 0.0, %v1881
        %v1883 = vpop.f32.mrf.mxu0
        %1884 = vmatprep.mubr.bf16.mxu0 0
        %1885 = vmatmul.mubr.bf16.gmra.mxu0 %v1800
        %v1886 = vpop.f32.mrf.mxu0
        %v1887 = vadd.f32 0.0, %v1886
        %v1888 = vpop.f32.mrf.mxu0
        %v1889 = vpop.f32.mrf.mxu0
        %v1890 = vadd.f32 0.0, %v1889
        %v1891 = vpop.f32.mrf.mxu0
        %1892 = vmatprep.mubr.bf16.mxu0 0
        %1893 = vmatmul.mubr.bf16.gmra.mxu0 %v1803
        %v1894 = vpop.f32.mrf.mxu0
        %v1895 = vadd.f32 0.0, %v1894
        %v1896 = vpop.f32.mrf.mxu0
        %v1897 = vpop.f32.mrf.mxu0
        %v1898 = vadd.f32 0.0, %v1897
        %v1899 = vpop.f32.mrf.mxu0
        %1900 = vmatprep.mubr.bf16.mxu0 0
        %1901 = vmatmul.mubr.bf16.gmra.mxu0 %v1806
        %v1902 = vpop.f32.mrf.mxu0
        %v1903 = vadd.f32 0.0, %v1902
        %v1904 = vpop.f32.mrf.mxu0
        %v1905 = vpop.f32.mrf.mxu0
        %v1906 = vadd.f32 0.0, %v1905
        %v1907 = vpop.f32.mrf.mxu0
        %1908 = vmatprep.mubr.bf16.mxu0 0
        %1909 = vmatmul.mubr.bf16.gmra.mxu0 %v1809
        %v1910 = vpop.f32.mrf.mxu0
        %v1911 = vadd.f32 0.0, %v1910
        %v1912 = vpop.f32.mrf.mxu0
        %v1913 = vpop.f32.mrf.mxu0
        %v1914 = vadd.f32 0.0, %v1913
        %v1915 = vpop.f32.mrf.mxu0
        %1916 = vmatprep.mubr.bf16.mxu0 0
        %1917 = vmatmul.mubr.bf16.gmra.mxu0 %v1812
        %v1918 = vpop.f32.mrf.mxu0
        %v1919 = vadd.f32 0.0, %v1918
        %v1920 = vpop.f32.mrf.mxu0
        %v1921 = vpop.f32.mrf.mxu0
        %v1922 = vadd.f32 0.0, %v1921
        %v1923 = vpop.f32.mrf.mxu0
        %1924 = vmatprep.mubr.bf16.mxu0 0
        %1925 = vmatmul.mubr.bf16.gmra.mxu0 %v1815
        %v1926 = vpop.f32.mrf.mxu0
        %v1927 = vadd.f32 0.0, %v1926
        %v1928 = vpop.f32.mrf.mxu0
        %v1929 = vpop.f32.mrf.mxu0
        %v1930 = vadd.f32 0.0, %v1929
        %v1931 = vpop.f32.mrf.mxu0
        %1932 = vmatprep.mubr.bf16.mxu0 0
        %1933 = vmatmul.mubr.bf16.gmra.mxu0 %v1818
        %v1934 = vpop.f32.mrf.mxu0
        %v1935 = vadd.f32 0.0, %v1934
        %v1936 = vpop.f32.mrf.mxu0
        %v1937 = vpop.f32.mrf.mxu0
        %v1938 = vadd.f32 0.0, %v1937
        %v1939 = vpop.f32.mrf.mxu0
        %1940 = vmatprep.mubr.bf16.mxu0 0
        %1941 = vmatmul.mubr.bf16.gmra.mxu0 %v1821
        %v1942 = vpop.f32.mrf.mxu0
        %v1943 = vadd.f32 0.0, %v1942
        %v1944 = vpop.f32.mrf.mxu0
        %v1945 = vpop.f32.mrf.mxu0
        %v1946 = vadd.f32 0.0, %v1945
        %v1947 = vpop.f32.mrf.mxu0
        %1948 = vmatprep.mubr.bf16.mxu0 0
        %1949 = vmatmul.mubr.bf16.gmra.mxu0 %v1824
        %v1950 = vpop.f32.mrf.mxu0
        %v1951 = vadd.f32 0.0, %v1950
        %v1952 = vpop.f32.mrf.mxu0
        %v1953 = vpop.f32.mrf.mxu0
        %v1954 = vadd.f32 0.0, %v1953
        %v1955 = vpop.f32.mrf.mxu0
        %1956 = vmatprep.mubr.bf16.mxu0 0
        %1957 = vmatmul.mubr.bf16.gmra.mxu0 %v1827
        %v1958 = vpop.f32.mrf.mxu0
        %v1959 = vadd.f32 0.0, %v1958
        %v1960 = vpop.f32.mrf.mxu0
        %v1961 = vpop.f32.mrf.mxu0
        %v1962 = vadd.f32 0.0, %v1961
        %v1963 = vpop.f32.mrf.mxu0
        %1964 = vmatprep.mubr.bf16.mxu0 0
        %1965 = vmatmul.mubr.bf16.gmra.mxu0 %v1830
        %v1966 = vpop.f32.mrf.mxu0
        %v1967 = vadd.f32 0.0, %v1966
        %v1968 = vpop.f32.mrf.mxu0
        %v1969 = vpop.f32.mrf.mxu0
        %v1970 = vadd.f32 0.0, %v1969
        %v1971 = vpop.f32.mrf.mxu0
        %1972 = vmatprep.mubr.bf16.mxu0 0
        %1973 = vmatmul.mubr.bf16.gmra.mxu0 %v1833
        %v1974 = vpop.f32.mrf.mxu0
        %v1975 = vadd.f32 0.0, %v1974
        %v1976 = vpop.f32.mrf.mxu0
        %v1977 = vpop.f32.mrf.mxu0
        %v1978 = vadd.f32 0.0, %v1977
        %v1979 = vpop.f32.mrf.mxu0
        %1980 = vmatprep.mubr.bf16.mxu0 0
        %1981 = vmatmul.mubr.bf16.gmra.mxu0 %v1836
        %v1982 = vpop.f32.mrf.mxu0
        %v1983 = vadd.f32 0.0, %v1982
        %v1984 = vpop.f32.mrf.mxu0
        %v1985 = vpop.f32.mrf.mxu0
        %v1986 = vadd.f32 0.0, %v1985
        %v1987 = vpop.f32.mrf.mxu0
        %1988 = vmatprep.mubr.bf16.mxu0 0
        %1989 = vmatmul.mubr.bf16.gmra.mxu0 %v1839
        %v1990 = vpop.f32.mrf.mxu0
        %v1991 = vadd.f32 0.0, %v1990
        %v1992 = vpop.f32.mrf.mxu0
        %v1993 = vpop.f32.mrf.mxu0
        %v1994 = vadd.f32 0.0, %v1993
        %v1995 = vpop.f32.mrf.mxu0
        %1996 = vmatprep.mubr.bf16.mxu0 0
        %1997 = vmatmul.mubr.bf16.gmra.mxu0 %v1842
        %v1998 = vpop.f32.mrf.mxu0
        %v1999 = vadd.f32 0.0, %v1998
        %v2000 = vpop.f32.mrf.mxu0
        %v2001 = vpop.f32.mrf.mxu0
        %v2002 = vadd.f32 0.0, %v2001
        %v2003 = vpop.f32.mrf.mxu0
        %2004 = vdwg.mxu0
        %v2005 = vadd.f32 %v1546, %v1879
        %v2006 = vadd.f32 %v1549, %v1882
        %v2007 = vadd.f32 %v1554, %v1887
        %v2008 = vadd.f32 %v1557, %v1890
        %v2009 = vadd.f32 %v1562, %v1895
        %v2010 = vadd.f32 %v1565, %v1898
        %v2011 = vadd.f32 %v1570, %v1903
        %v2012 = vadd.f32 %v1573, %v1906
        %v2013 = vadd.f32 %v1578, %v1911
        %v2014 = vadd.f32 %v1581, %v1914
        %v2015 = vadd.f32 %v1586, %v1919
        %v2016 = vadd.f32 %v1589, %v1922
        %v2017 = vadd.f32 %v1594, %v1927
        %v2018 = vadd.f32 %v1597, %v1930
        %v2019 = vadd.f32 %v1602, %v1935
        %v2020 = vadd.f32 %v1605, %v1938
        %v2021 = vadd.f32 %v1610, %v1943
        %v2022 = vadd.f32 %v1613, %v1946
        %v2023 = vadd.f32 %v1618, %v1951
        %v2024 = vadd.f32 %v1621, %v1954
        %v2025 = vadd.f32 %v1626, %v1959
        %v2026 = vadd.f32 %v1629, %v1962
        %v2027 = vadd.f32 %v1634, %v1967
        %v2028 = vadd.f32 %v1637, %v1970
        %v2029 = vadd.f32 %v1642, %v1975
        %v2030 = vadd.f32 %v1645, %v1978
        %v2031 = vadd.f32 %v1650, %v1983
        %v2032 = vadd.f32 %v1653, %v1986
        %v2033 = vadd.f32 %v1658, %v1991
        %v2034 = vadd.f32 %v1661, %v1994
        %v2035 = vadd.f32 %v1666, %v1999
        %v2036 = vadd.f32 %v1669, %v2002
        %v2037 = vlaneseq
        %v2038 = vshrl.u32 %v2037, 7
        %v2039 = vsub.s32 0, %v2038
        %v2040 = vrot.slane %v1277, %v2039
        %v2041 = vadd.f32 %v2005, %v2040
        %v2042 = vadd.f32 %v2006, %v2040
        %v2043 = vadd.f32 %v2007, %v2040
        %v2044 = vadd.f32 %v2008, %v2040
        %v2045 = vadd.f32 %v2009, %v2040
        %v2046 = vadd.f32 %v2010, %v2040
        %v2047 = vadd.f32 %v2011, %v2040
        %v2048 = vadd.f32 %v2012, %v2040
        %v2049 = vadd.f32 %v2013, %v2040
        %v2050 = vadd.f32 %v2014, %v2040
        %v2051 = vadd.f32 %v2015, %v2040
        %v2052 = vadd.f32 %v2016, %v2040
        %v2053 = vadd.f32 %v2017, %v2040
        %v2054 = vadd.f32 %v2018, %v2040
        %v2055 = vadd.f32 %v2019, %v2040
        %v2056 = vadd.f32 %v2020, %v2040
        %v2057 = vadd.f32 %v2021, %v2040
        %v2058 = vadd.f32 %v2022, %v2040
        %v2059 = vadd.f32 %v2023, %v2040
        %v2060 = vadd.f32 %v2024, %v2040
        %v2061 = vadd.f32 %v2025, %v2040
        %v2062 = vadd.f32 %v2026, %v2040
        %v2063 = vadd.f32 %v2027, %v2040
        %v2064 = vadd.f32 %v2028, %v2040
        %v2065 = vadd.f32 %v2029, %v2040
        %v2066 = vadd.f32 %v2030, %v2040
        %v2067 = vadd.f32 %v2031, %v2040
        %v2068 = vadd.f32 %v2032, %v2040
        %v2069 = vadd.f32 %v2033, %v2040
        %v2070 = vadd.f32 %v2034, %v2040
        %v2071 = vadd.f32 %v2035, %v2040
        %v2072 = vadd.f32 %v2036, %v2040
        %v2073 = vmax.f32 %v2041, 0.0
        %v2074 = vmax.f32 %v2042, 0.0
        %v2075 = vmax.f32 %v2043, 0.0
        %v2076 = vmax.f32 %v2044, 0.0
        %v2077 = vmax.f32 %v2045, 0.0
        %v2078 = vmax.f32 %v2046, 0.0
        %v2079 = vmax.f32 %v2047, 0.0
        %v2080 = vmax.f32 %v2048, 0.0
        %v2081 = vmax.f32 %v2049, 0.0
        %v2082 = vmax.f32 %v2050, 0.0
        %v2083 = vmax.f32 %v2051, 0.0
        %v2084 = vmax.f32 %v2052, 0.0
        %v2085 = vmax.f32 %v2053, 0.0
        %v2086 = vmax.f32 %v2054, 0.0
        %v2087 = vmax.f32 %v2055, 0.0
        %v2088 = vmax.f32 %v2056, 0.0
        %v2089 = vmax.f32 %v2057, 0.0
        %v2090 = vmax.f32 %v2058, 0.0
        %v2091 = vmax.f32 %v2059, 0.0
        %v2092 = vmax.f32 %v2060, 0.0
        %v2093 = vmax.f32 %v2061, 0.0
        %v2094 = vmax.f32 %v2062, 0.0
        %v2095 = vmax.f32 %v2063, 0.0
        %v2096 = vmax.f32 %v2064, 0.0
        %v2097 = vmax.f32 %v2065, 0.0
        %v2098 = vmax.f32 %v2066, 0.0
        %v2099 = vmax.f32 %v2067, 0.0
        %v2100 = vmax.f32 %v2068, 0.0
        %v2101 = vmax.f32 %v2069, 0.0
        %v2102 = vmax.f32 %v2070, 0.0
        %v2103 = vmax.f32 %v2071, 0.0
        %v2104 = vmax.f32 %v2072, 0.0
        %v2105 = vpack.c.bf16 %v2074, %v2073
        %v2106 = vpack.c.bf16 %v2076, %v2075
        %v2107 = vpack.c.bf16 %v2078, %v2077
        %v2108 = vpack.c.bf16 %v2080, %v2079
        %v2109 = vpack.c.bf16 %v2082, %v2081
        %v2110 = vpack.c.bf16 %v2084, %v2083
        %v2111 = vpack.c.bf16 %v2086, %v2085
        %v2112 = vpack.c.bf16 %v2088, %v2087
        %v2113 = vpack.c.bf16 %v2090, %v2089
        %v2114 = vpack.c.bf16 %v2092, %v2091
        %v2115 = vpack.c.bf16 %v2094, %v2093
        %v2116 = vpack.c.bf16 %v2096, %v2095
        %v2117 = vpack.c.bf16 %v2098, %v2097
        %v2118 = vpack.c.bf16 %v2100, %v2099
        %v2119 = vpack.c.bf16 %v2102, %v2101
        %v2120 = vpack.c.bf16 %v2104, %v2103
        %v2121 = vld [vmem:[%s4] sm:$0xf]
        %v2122 = vld [vmem:[%s4 + $0x4] sm:$0xf]
        %v2123 = vlaneseq
        %v2124 = vshrl.u32 %v2123, 7
        %v2125 = vsub.s32 1, %v2124
        %v2126 = vrot.slane %v1277, %v2125
        %v2129 = vunpack.c.l.b16 %v2121
        %v2130 = vunpack.c.l.b16 %v2122
        %v2131 = vpack.c.b16 %v2130, %v2129
        %vm2133 = vcmask 130048
        %v2135 = vsel %vm2133, %v2105, 0
        %v2138 = vsel %vm2133, %v2106, 0
        %v2141 = vsel %vm2133, %v2107, 0
        %v2144 = vsel %vm2133, %v2108, 0
        %v2147 = vsel %vm2133, %v2109, 0
        %v2150 = vsel %vm2133, %v2110, 0
        %v2153 = vsel %vm2133, %v2111, 0
        %v2156 = vsel %vm2133, %v2112, 0
        %v2159 = vsel %vm2133, %v2113, 0
        %v2162 = vsel %vm2133, %v2114, 0
        %v2165 = vsel %vm2133, %v2115, 0
        %v2168 = vsel %vm2133, %v2116, 0
        %v2171 = vsel %vm2133, %v2117, 0
        %v2174 = vsel %vm2133, %v2118, 0
        %v2177 = vsel %vm2133, %v2119, 0
        %v2180 = vsel %vm2133, %v2120, 0
        %2182 = vmatprep.subr.bf16.mxu0 0
        %2183 = vmatpush1.bf16.msra.mxu0 0
        %2184 = vmatprep.subr.bf16.mxu0 0
        %2185 = vmatpush1.bf16.msra.mxu0 0
        %2186 = vmatprep.subr.bf16.mxu0 0
        %2187 = vmatpush1.bf16.msra.mxu0 0
        %2188 = vmatprep.subr.bf16.mxu0 0
        %2189 = vmatpush1.bf16.msra.mxu0 0
        %2190 = vmatprep.subr.bf16.mxu0 0
        %2191 = vmatpush1.bf16.msra.mxu0 0
        %2192 = vmatprep.subr.bf16.mxu0 0
        %2193 = vmatpush1.bf16.msra.mxu0 0
        %2194 = vmatprep.subr.bf16.mxu0 0
        %2195 = vmatpush1.bf16.msra.mxu0 0
        %2196 = vmatprep.subr.bf16.mxu0 0
        %2197 = vmatpush1.bf16.msra.mxu0 %v2131
        %2198 = vmatprep.subr.bf16.mxu0 0
        %2199 = vmatpush2.bf16.msra.mxu0 0
        %2200 = vmatprep.subr.bf16.mxu0 0
        %2201 = vmatpush2.bf16.msra.mxu0 0
        %2202 = vmatprep.subr.bf16.mxu0 0
        %2203 = vmatpush2.bf16.msra.mxu0 0
        %2204 = vmatprep.subr.bf16.mxu0 0
        %2205 = vmatpush2.bf16.msra.mxu0 0
        %2206 = vmatprep.subr.bf16.mxu0 0
        %2207 = vmatpush2.bf16.msra.mxu0 0
        %2208 = vmatprep.subr.bf16.mxu0 0
        %2209 = vmatpush2.bf16.msra.mxu0 0
        %2210 = vmatprep.subr.bf16.mxu0 0
        %2211 = vmatpush2.bf16.msra.mxu0 0
        %2212 = vmatprep.subr.bf16.mxu0 0
        %2213 = vmatpush2.bf16.msra.mxu0 0
        %2214 = vmatprep.mubr.bf16.mxu0 0
        %2215 = vmatmul.mubr.bf16.gmra.mxu0 %v2135
        %v2216 = vpop.f32.mrf.mxu0
        %v2217 = vadd.f32 %v2126, %v2216
        %v2218 = vpop.f32.mrf.mxu0
        %v2219 = vpop.f32.mrf.mxu0
        %v2220 = vadd.f32 %v2126, %v2219
        %v2221 = vpop.f32.mrf.mxu0
        %2222 = vmatprep.mubr.bf16.mxu0 0
        %2223 = vmatmul.mubr.bf16.gmra.mxu0 %v2138
        %v2224 = vpop.f32.mrf.mxu0
        %v2225 = vadd.f32 %v2126, %v2224
        %v2226 = vpop.f32.mrf.mxu0
        %v2227 = vpop.f32.mrf.mxu0
        %v2228 = vadd.f32 %v2126, %v2227
        %v2229 = vpop.f32.mrf.mxu0
        %2230 = vmatprep.mubr.bf16.mxu0 0
        %2231 = vmatmul.mubr.bf16.gmra.mxu0 %v2141
        %v2232 = vpop.f32.mrf.mxu0
        %v2233 = vadd.f32 %v2126, %v2232
        %v2234 = vpop.f32.mrf.mxu0
        %v2235 = vpop.f32.mrf.mxu0
        %v2236 = vadd.f32 %v2126, %v2235
        %v2237 = vpop.f32.mrf.mxu0
        %2238 = vmatprep.mubr.bf16.mxu0 0
        %2239 = vmatmul.mubr.bf16.gmra.mxu0 %v2144
        %v2240 = vpop.f32.mrf.mxu0
        %v2241 = vadd.f32 %v2126, %v2240
        %v2242 = vpop.f32.mrf.mxu0
        %v2243 = vpop.f32.mrf.mxu0
        %v2244 = vadd.f32 %v2126, %v2243
        %v2245 = vpop.f32.mrf.mxu0
        %2246 = vmatprep.mubr.bf16.mxu0 0
        %2247 = vmatmul.mubr.bf16.gmra.mxu0 %v2147
        %v2248 = vpop.f32.mrf.mxu0
        %v2249 = vadd.f32 %v2126, %v2248
        %v2250 = vpop.f32.mrf.mxu0
        %v2251 = vpop.f32.mrf.mxu0
        %v2252 = vadd.f32 %v2126, %v2251
        %v2253 = vpop.f32.mrf.mxu0
        %2254 = vmatprep.mubr.bf16.mxu0 0
        %2255 = vmatmul.mubr.bf16.gmra.mxu0 %v2150
        %v2256 = vpop.f32.mrf.mxu0
        %v2257 = vadd.f32 %v2126, %v2256
        %v2258 = vpop.f32.mrf.mxu0
        %v2259 = vpop.f32.mrf.mxu0
        %v2260 = vadd.f32 %v2126, %v2259
        %v2261 = vpop.f32.mrf.mxu0
        %2262 = vmatprep.mubr.bf16.mxu0 0
        %2263 = vmatmul.mubr.bf16.gmra.mxu0 %v2153
        %v2264 = vpop.f32.mrf.mxu0
        %v2265 = vadd.f32 %v2126, %v2264
        %v2266 = vpop.f32.mrf.mxu0
        %v2267 = vpop.f32.mrf.mxu0
        %v2268 = vadd.f32 %v2126, %v2267
        %v2269 = vpop.f32.mrf.mxu0
        %2270 = vmatprep.mubr.bf16.mxu0 0
        %2271 = vmatmul.mubr.bf16.gmra.mxu0 %v2156
        %v2272 = vpop.f32.mrf.mxu0
        %v2273 = vadd.f32 %v2126, %v2272
        %v2274 = vpop.f32.mrf.mxu0
        %v2275 = vpop.f32.mrf.mxu0
        %v2276 = vadd.f32 %v2126, %v2275
        %v2277 = vpop.f32.mrf.mxu0
        %2278 = vmatprep.mubr.bf16.mxu0 0
        %2279 = vmatmul.mubr.bf16.gmra.mxu0 %v2159
        %v2280 = vpop.f32.mrf.mxu0
        %v2281 = vadd.f32 %v2126, %v2280
        %v2282 = vpop.f32.mrf.mxu0
        %v2283 = vpop.f32.mrf.mxu0
        %v2284 = vadd.f32 %v2126, %v2283
        %v2285 = vpop.f32.mrf.mxu0
        %2286 = vmatprep.mubr.bf16.mxu0 0
        %2287 = vmatmul.mubr.bf16.gmra.mxu0 %v2162
        %v2288 = vpop.f32.mrf.mxu0
        %v2289 = vadd.f32 %v2126, %v2288
        %v2290 = vpop.f32.mrf.mxu0
        %v2291 = vpop.f32.mrf.mxu0
        %v2292 = vadd.f32 %v2126, %v2291
        %v2293 = vpop.f32.mrf.mxu0
        %2294 = vmatprep.mubr.bf16.mxu0 0
        %2295 = vmatmul.mubr.bf16.gmra.mxu0 %v2165
        %v2296 = vpop.f32.mrf.mxu0
        %v2297 = vadd.f32 %v2126, %v2296
        %v2298 = vpop.f32.mrf.mxu0
        %v2299 = vpop.f32.mrf.mxu0
        %v2300 = vadd.f32 %v2126, %v2299
        %v2301 = vpop.f32.mrf.mxu0
        %2302 = vmatprep.mubr.bf16.mxu0 0
        %2303 = vmatmul.mubr.bf16.gmra.mxu0 %v2168
        %v2304 = vpop.f32.mrf.mxu0
        %v2305 = vadd.f32 %v2126, %v2304
        %v2306 = vpop.f32.mrf.mxu0
        %v2307 = vpop.f32.mrf.mxu0
        %v2308 = vadd.f32 %v2126, %v2307
        %v2309 = vpop.f32.mrf.mxu0
        %2310 = vmatprep.mubr.bf16.mxu0 0
        %2311 = vmatmul.mubr.bf16.gmra.mxu0 %v2171
        %v2312 = vpop.f32.mrf.mxu0
        %v2313 = vadd.f32 %v2126, %v2312
        %v2314 = vpop.f32.mrf.mxu0
        %v2315 = vpop.f32.mrf.mxu0
        %v2316 = vadd.f32 %v2126, %v2315
        %v2317 = vpop.f32.mrf.mxu0
        %2318 = vmatprep.mubr.bf16.mxu0 0
        %2319 = vmatmul.mubr.bf16.gmra.mxu0 %v2174
        %v2320 = vpop.f32.mrf.mxu0
        %v2321 = vadd.f32 %v2126, %v2320
        %v2322 = vpop.f32.mrf.mxu0
        %v2323 = vpop.f32.mrf.mxu0
        %v2324 = vadd.f32 %v2126, %v2323
        %v2325 = vpop.f32.mrf.mxu0
        %2326 = vmatprep.mubr.bf16.mxu0 0
        %2327 = vmatmul.mubr.bf16.gmra.mxu0 %v2177
        %v2328 = vpop.f32.mrf.mxu0
        %v2329 = vadd.f32 %v2126, %v2328
        %v2330 = vpop.f32.mrf.mxu0
        %v2331 = vpop.f32.mrf.mxu0
        %v2332 = vadd.f32 %v2126, %v2331
        %v2333 = vpop.f32.mrf.mxu0
        %2334 = vmatprep.mubr.bf16.mxu0 0
        %2335 = vmatmul.mubr.bf16.gmra.mxu0 %v2180
        %v2336 = vpop.f32.mrf.mxu0
        %v2337 = vadd.f32 %v2126, %v2336
        %v2338 = vpop.f32.mrf.mxu0
        %v2339 = vpop.f32.mrf.mxu0
        %v2340 = vadd.f32 %v2126, %v2339
        %v2341 = vpop.f32.mrf.mxu0
        %2342 = vdwg.mxu0
        %v2343 = vmax.f32 %v2217, 0.0
        %v2344 = vmax.f32 %v2220, 0.0
        %v2345 = vmax.f32 %v2225, 0.0
        %v2346 = vmax.f32 %v2228, 0.0
        %v2347 = vmax.f32 %v2233, 0.0
        %v2348 = vmax.f32 %v2236, 0.0
        %v2349 = vmax.f32 %v2241, 0.0
        %v2350 = vmax.f32 %v2244, 0.0
        %v2351 = vmax.f32 %v2249, 0.0
        %v2352 = vmax.f32 %v2252, 0.0
        %v2353 = vmax.f32 %v2257, 0.0
        %v2354 = vmax.f32 %v2260, 0.0
        %v2355 = vmax.f32 %v2265, 0.0
        %v2356 = vmax.f32 %v2268, 0.0
        %v2357 = vmax.f32 %v2273, 0.0
        %v2358 = vmax.f32 %v2276, 0.0
        %v2359 = vmax.f32 %v2281, 0.0
        %v2360 = vmax.f32 %v2284, 0.0
        %v2361 = vmax.f32 %v2289, 0.0
        %v2362 = vmax.f32 %v2292, 0.0
        %v2363 = vmax.f32 %v2297, 0.0
        %v2364 = vmax.f32 %v2300, 0.0
        %v2365 = vmax.f32 %v2305, 0.0
        %v2366 = vmax.f32 %v2308, 0.0
        %v2367 = vmax.f32 %v2313, 0.0
        %v2368 = vmax.f32 %v2316, 0.0
        %v2369 = vmax.f32 %v2321, 0.0
        %v2370 = vmax.f32 %v2324, 0.0
        %v2371 = vmax.f32 %v2329, 0.0
        %v2372 = vmax.f32 %v2332, 0.0
        %v2373 = vmax.f32 %v2337, 0.0
        %v2374 = vmax.f32 %v2340, 0.0
        %v2375 = vpack.c.bf16 %v2344, %v2343
        %v2376 = vpack.c.bf16 %v2346, %v2345
        %v2377 = vpack.c.bf16 %v2348, %v2347
        %v2378 = vpack.c.bf16 %v2350, %v2349
        %v2379 = vpack.c.bf16 %v2352, %v2351
        %v2380 = vpack.c.bf16 %v2354, %v2353
        %v2381 = vpack.c.bf16 %v2356, %v2355
        %v2382 = vpack.c.bf16 %v2358, %v2357
        %v2383 = vpack.c.bf16 %v2360, %v2359
        %v2384 = vpack.c.bf16 %v2362, %v2361
        %v2385 = vpack.c.bf16 %v2364, %v2363
        %v2386 = vpack.c.bf16 %v2366, %v2365
        %v2387 = vpack.c.bf16 %v2368, %v2367
        %v2388 = vpack.c.bf16 %v2370, %v2369
        %v2389 = vpack.c.bf16 %v2372, %v2371
        %v2390 = vpack.c.bf16 %v2374, %v2373
        %v2391 = vld [vmem:[%s4 + $0x8] sm:$0xf]
        %v2392 = vld [vmem:[%s4 + $0xc] sm:$0xf]
        %v2393 = vld [vmem:[%s4 + $0x10] sm:$0xf]
        %v2394 = vld [vmem:[%s4 + $0x14] sm:$0xf]
        %v2395 = vld [vmem:[%s4 + $0x18] sm:$0xf]
        %v2396 = vld [vmem:[%s4 + $0x1c] sm:$0xf]
        %v2397 = vld [vmem:[%s4 + $0x20] sm:$0xf]
        %v2398 = vld [vmem:[%s4 + $0x24] sm:$0xf]
        %v2399 = vld [vmem:[%s4 + $0x28] sm:$0xf]
        %v2400 = vld [vmem:[%s4 + $0x2c] sm:$0xf]
        %v2401 = vld [vmem:[%s4 + $0x30] sm:$0xf]
        %v2402 = vld [vmem:[%s4 + $0x34] sm:$0xf]
        %v2403 = vld [vmem:[%s4 + $0x38] sm:$0xf]
        %v2404 = vld [vmem:[%s4 + $0x3c] sm:$0xf]
        %v2405 = vld [vmem:[%s4 + $0x40] sm:$0xf]
        %v2406 = vld [vmem:[%s4 + $0x44] sm:$0xf]
        %v2407 = vlaneseq
        %v2408 = vshrl.u32 %v2407, 7
        %v2409 = vsub.s32 2, %v2408
        %v2410 = vrot.slane %v1277, %v2409
        %v2427 = vunpack.c.l.b16 %v2391
        %v2428 = vunpack.c.l.b16 %v2392
        %v2429 = vunpack.c.l.b16 %v2393
        %v2430 = vunpack.c.l.b16 %v2394
        %v2431 = vunpack.c.l.b16 %v2395
        %v2432 = vunpack.c.l.b16 %v2396
        %v2433 = vunpack.c.l.b16 %v2397
        %v2434 = vunpack.c.l.b16 %v2398
        %v2435 = vunpack.c.l.b16 %v2399
        %v2436 = vunpack.c.l.b16 %v2400
        %v2437 = vunpack.c.l.b16 %v2401
        %v2438 = vunpack.c.l.b16 %v2402
        %v2439 = vunpack.c.l.b16 %v2403
        %v2440 = vunpack.c.l.b16 %v2404
        %v2441 = vunpack.c.l.b16 %v2405
        %v2442 = vunpack.c.l.b16 %v2406
        %v2443 = vpack.c.b16 %v2428, %v2427
        %v2444 = vpack.c.b16 %v2430, %v2429
        %v2445 = vpack.c.b16 %v2432, %v2431
        %v2446 = vpack.c.b16 %v2434, %v2433
        %v2447 = vpack.c.b16 %v2436, %v2435
        %v2448 = vpack.c.b16 %v2438, %v2437
        %v2449 = vpack.c.b16 %v2440, %v2439
        %v2450 = vpack.c.b16 %v2442, %v2441
        %2459 = vmatprep.subr.bf16.mxu0 0
        %2460 = vmatpush1.bf16.msra.mxu0 %v2450
        %2461 = vmatprep.subr.bf16.mxu0 0
        %2462 = vmatpush1.bf16.msra.mxu0 %v2449
        %2463 = vmatprep.subr.bf16.mxu0 0
        %2464 = vmatpush1.bf16.msra.mxu0 %v2448
        %2465 = vmatprep.subr.bf16.mxu0 0
        %2466 = vmatpush1.bf16.msra.mxu0 %v2447
        %2467 = vmatprep.subr.bf16.mxu0 0
        %2468 = vmatpush1.bf16.msra.mxu0 %v2446
        %2469 = vmatprep.subr.bf16.mxu0 0
        %2470 = vmatpush1.bf16.msra.mxu0 %v2445
        %2471 = vmatprep.subr.bf16.mxu0 0
        %2472 = vmatpush1.bf16.msra.mxu0 %v2444
        %2473 = vmatprep.subr.bf16.mxu0 0
        %2474 = vmatpush1.bf16.msra.mxu0 %v2443
        %2475 = vmatprep.subr.bf16.mxu0 0
        %2476 = vmatpush2.bf16.msra.mxu0 0
        %2477 = vmatprep.subr.bf16.mxu0 0
        %2478 = vmatpush2.bf16.msra.mxu0 0
        %2479 = vmatprep.subr.bf16.mxu0 0
        %2480 = vmatpush2.bf16.msra.mxu0 0
        %2481 = vmatprep.subr.bf16.mxu0 0
        %2482 = vmatpush2.bf16.msra.mxu0 0
        %2483 = vmatprep.subr.bf16.mxu0 0
        %2484 = vmatpush2.bf16.msra.mxu0 0
        %2485 = vmatprep.subr.bf16.mxu0 0
        %2486 = vmatpush2.bf16.msra.mxu0 0
        %2487 = vmatprep.subr.bf16.mxu0 0
        %2488 = vmatpush2.bf16.msra.mxu0 0
        %2489 = vmatprep.subr.bf16.mxu0 0
        %2490 = vmatpush2.bf16.msra.mxu0 0
        %2491 = vmatprep.mubr.bf16.mxu0 0
        %2492 = vmatmul.mubr.bf16.gmra.mxu0 %v2375
        %v2493 = vpop.f32.mrf.mxu0
        %v2494 = vadd.f32 %v2410, %v2493
        %v2495 = vpop.f32.mrf.mxu0
        %v2496 = vpop.f32.mrf.mxu0
        %v2497 = vadd.f32 %v2410, %v2496
        %v2498 = vpop.f32.mrf.mxu0
        %2499 = vmatprep.mubr.bf16.mxu0 0
        %2500 = vmatmul.mubr.bf16.gmra.mxu0 %v2376
        %v2501 = vpop.f32.mrf.mxu0
        %v2502 = vadd.f32 %v2410, %v2501
        %v2503 = vpop.f32.mrf.mxu0
        %v2504 = vpop.f32.mrf.mxu0
        %v2505 = vadd.f32 %v2410, %v2504
        %v2506 = vpop.f32.mrf.mxu0
        %2507 = vmatprep.mubr.bf16.mxu0 0
        %2508 = vmatmul.mubr.bf16.gmra.mxu0 %v2377
        %v2509 = vpop.f32.mrf.mxu0
        %v2510 = vadd.f32 %v2410, %v2509
        %v2511 = vpop.f32.mrf.mxu0
        %v2512 = vpop.f32.mrf.mxu0
        %v2513 = vadd.f32 %v2410, %v2512
        %v2514 = vpop.f32.mrf.mxu0
        %2515 = vmatprep.mubr.bf16.mxu0 0
        %2516 = vmatmul.mubr.bf16.gmra.mxu0 %v2378
        %v2517 = vpop.f32.mrf.mxu0
        %v2518 = vadd.f32 %v2410, %v2517
        %v2519 = vpop.f32.mrf.mxu0
        %v2520 = vpop.f32.mrf.mxu0
        %v2521 = vadd.f32 %v2410, %v2520
        %v2522 = vpop.f32.mrf.mxu0
        %2523 = vmatprep.mubr.bf16.mxu0 0
        %2524 = vmatmul.mubr.bf16.gmra.mxu0 %v2379
        %v2525 = vpop.f32.mrf.mxu0
        %v2526 = vadd.f32 %v2410, %v2525
        %v2527 = vpop.f32.mrf.mxu0
        %v2528 = vpop.f32.mrf.mxu0
        %v2529 = vadd.f32 %v2410, %v2528
        %v2530 = vpop.f32.mrf.mxu0
        %2531 = vmatprep.mubr.bf16.mxu0 0
        %2532 = vmatmul.mubr.bf16.gmra.mxu0 %v2380
        %v2533 = vpop.f32.mrf.mxu0
        %v2534 = vadd.f32 %v2410, %v2533
        %v2535 = vpop.f32.mrf.mxu0
        %v2536 = vpop.f32.mrf.mxu0
        %v2537 = vadd.f32 %v2410, %v2536
        %v2538 = vpop.f32.mrf.mxu0
        %2539 = vmatprep.mubr.bf16.mxu0 0
        %2540 = vmatmul.mubr.bf16.gmra.mxu0 %v2381
        %v2541 = vpop.f32.mrf.mxu0
        %v2542 = vadd.f32 %v2410, %v2541
        %v2543 = vpop.f32.mrf.mxu0
        %v2544 = vpop.f32.mrf.mxu0
        %v2545 = vadd.f32 %v2410, %v2544
        %v2546 = vpop.f32.mrf.mxu0
        %2547 = vmatprep.mubr.bf16.mxu0 0
        %2548 = vmatmul.mubr.bf16.gmra.mxu0 %v2382
        %v2549 = vpop.f32.mrf.mxu0
        %v2550 = vadd.f32 %v2410, %v2549
        %v2551 = vpop.f32.mrf.mxu0
        %v2552 = vpop.f32.mrf.mxu0
        %v2553 = vadd.f32 %v2410, %v2552
        %v2554 = vpop.f32.mrf.mxu0
        %2555 = vmatprep.mubr.bf16.mxu0 0
        %2556 = vmatmul.mubr.bf16.gmra.mxu0 %v2383
        %v2557 = vpop.f32.mrf.mxu0
        %v2558 = vadd.f32 %v2410, %v2557
        %v2559 = vpop.f32.mrf.mxu0
        %v2560 = vpop.f32.mrf.mxu0
        %v2561 = vadd.f32 %v2410, %v2560
        %v2562 = vpop.f32.mrf.mxu0
        %2563 = vmatprep.mubr.bf16.mxu0 0
        %2564 = vmatmul.mubr.bf16.gmra.mxu0 %v2384
        %v2565 = vpop.f32.mrf.mxu0
        %v2566 = vadd.f32 %v2410, %v2565
        %v2567 = vpop.f32.mrf.mxu0
        %v2568 = vpop.f32.mrf.mxu0
        %v2569 = vadd.f32 %v2410, %v2568
        %v2570 = vpop.f32.mrf.mxu0
        %2571 = vmatprep.mubr.bf16.mxu0 0
        %2572 = vmatmul.mubr.bf16.gmra.mxu0 %v2385
        %v2573 = vpop.f32.mrf.mxu0
        %v2574 = vadd.f32 %v2410, %v2573
        %v2575 = vpop.f32.mrf.mxu0
        %v2576 = vpop.f32.mrf.mxu0
        %v2577 = vadd.f32 %v2410, %v2576
        %v2578 = vpop.f32.mrf.mxu0
        %2579 = vmatprep.mubr.bf16.mxu0 0
        %2580 = vmatmul.mubr.bf16.gmra.mxu0 %v2386
        %v2581 = vpop.f32.mrf.mxu0
        %v2582 = vadd.f32 %v2410, %v2581
        %v2583 = vpop.f32.mrf.mxu0
        %v2584 = vpop.f32.mrf.mxu0
        %v2585 = vadd.f32 %v2410, %v2584
        %v2586 = vpop.f32.mrf.mxu0
        %2587 = vmatprep.mubr.bf16.mxu0 0
        %2588 = vmatmul.mubr.bf16.gmra.mxu0 %v2387
        %v2589 = vpop.f32.mrf.mxu0
        %v2590 = vadd.f32 %v2410, %v2589
        %v2591 = vpop.f32.mrf.mxu0
        %v2592 = vpop.f32.mrf.mxu0
        %v2593 = vadd.f32 %v2410, %v2592
        %v2594 = vpop.f32.mrf.mxu0
        %2595 = vmatprep.mubr.bf16.mxu0 0
        %2596 = vmatmul.mubr.bf16.gmra.mxu0 %v2388
        %v2597 = vpop.f32.mrf.mxu0
        %v2598 = vadd.f32 %v2410, %v2597
        %v2599 = vpop.f32.mrf.mxu0
        %v2600 = vpop.f32.mrf.mxu0
        %v2601 = vadd.f32 %v2410, %v2600
        %v2602 = vpop.f32.mrf.mxu0
        %2603 = vmatprep.mubr.bf16.mxu0 0
        %2604 = vmatmul.mubr.bf16.gmra.mxu0 %v2389
        %v2605 = vpop.f32.mrf.mxu0
        %v2606 = vadd.f32 %v2410, %v2605
        %v2607 = vpop.f32.mrf.mxu0
        %v2608 = vpop.f32.mrf.mxu0
        %v2609 = vadd.f32 %v2410, %v2608
        %v2610 = vpop.f32.mrf.mxu0
        %2611 = vmatprep.mubr.bf16.mxu0 0
        %2612 = vmatmul.mubr.bf16.gmra.mxu0 %v2390
        %v2613 = vpop.f32.mrf.mxu0
        %v2614 = vadd.f32 %v2410, %v2613
        %v2615 = vpop.f32.mrf.mxu0
        %v2616 = vpop.f32.mrf.mxu0
        %v2617 = vadd.f32 %v2410, %v2616
        %v2618 = vpop.f32.mrf.mxu0
        %2619 = vdwg.mxu0
        %v2620 = vpack.c.bf16 %v2497, %v2494
        %v2621 = vpack.c.bf16 %v2505, %v2502
        %v2622 = vpack.c.bf16 %v2513, %v2510
        %v2623 = vpack.c.bf16 %v2521, %v2518
        %v2624 = vpack.c.bf16 %v2529, %v2526
        %v2625 = vpack.c.bf16 %v2537, %v2534
        %v2626 = vpack.c.bf16 %v2545, %v2542
        %v2627 = vpack.c.bf16 %v2553, %v2550
        %v2628 = vpack.c.bf16 %v2561, %v2558
        %v2629 = vpack.c.bf16 %v2569, %v2566
        %v2630 = vpack.c.bf16 %v2577, %v2574
        %v2631 = vpack.c.bf16 %v2585, %v2582
        %v2632 = vpack.c.bf16 %v2593, %v2590
        %v2633 = vpack.c.bf16 %v2601, %v2598
        %v2634 = vpack.c.bf16 %v2609, %v2606
        %v2635 = vpack.c.bf16 %v2617, %v2614
        %v2636 = vadd.s32 %v336, 64
        %v2637 = vadd.s32 %v337, 64
        %v2638 = vadd.s32 %v338, 64
        %v2639 = vadd.s32 %v339, 64
        %v2640 = vadd.s32 %v340, 64
        %v2641 = vadd.s32 %v341, 64
        %v2642 = vadd.s32 %v342, 64
        %v2643 = vadd.s32 %v343, 64
        %v2644 = vadd.s32 %v344, 64
        %v2645 = vadd.s32 %v345, 64
        %v2646 = vadd.s32 %v346, 64
        %v2647 = vadd.s32 %v347, 64
        %v2648 = vadd.s32 %v348, 64
        %v2649 = vadd.s32 %v349, 64
        %v2650 = vadd.s32 %v350, 64
        %v2651 = vadd.s32 %v351, 64
        %v2652 = vadd.s32 %v352, 64
        %v2653 = vadd.s32 %v353, 64
        %v2654 = vadd.s32 %v354, 64
        %v2655 = vadd.s32 %v355, 64
        %v2656 = vadd.s32 %v356, 64
        %v2657 = vadd.s32 %v357, 64
        %v2658 = vadd.s32 %v358, 64
        %v2659 = vadd.s32 %v359, 64
        %v2660 = vadd.s32 %v360, 64
        %v2661 = vadd.s32 %v361, 64
        %v2662 = vadd.s32 %v362, 64
        %v2663 = vadd.s32 %v363, 64
        %v2664 = vadd.s32 %v364, 64
        %v2665 = vadd.s32 %v365, 64
        %v2666 = vadd.s32 %v366, 64
        %v2667 = vadd.s32 %v367, 64
        %2668 = vset.pattern.permute.xlu0 0
        %2669 = vperm.xlu0 %2668, %v2636
        %v2670 = vpop.permute.xlu0 %2669
        %2671 = vset.pattern.permute.xlu0 0
        %2672 = vperm.xlu0 %2671, %v2637
        %v2673 = vpop.permute.xlu0 %2672
        %2674 = vset.pattern.permute.xlu0 0
        %2675 = vperm.xlu0 %2674, %v2638
        %v2676 = vpop.permute.xlu0 %2675
        %2677 = vset.pattern.permute.xlu0 0
        %2678 = vperm.xlu0 %2677, %v2639
        %v2679 = vpop.permute.xlu0 %2678
        %2680 = vset.pattern.permute.xlu0 0
        %2681 = vperm.xlu0 %2680, %v2640
        %v2682 = vpop.permute.xlu0 %2681
        %2683 = vset.pattern.permute.xlu0 0
        %2684 = vperm.xlu0 %2683, %v2641
        %v2685 = vpop.permute.xlu0 %2684
        %2686 = vset.pattern.permute.xlu0 0
        %2687 = vperm.xlu0 %2686, %v2642
        %v2688 = vpop.permute.xlu0 %2687
        %2689 = vset.pattern.permute.xlu0 0
        %2690 = vperm.xlu0 %2689, %v2643
        %v2691 = vpop.permute.xlu0 %2690
        %2692 = vset.pattern.permute.xlu0 0
        %2693 = vperm.xlu0 %2692, %v2644
        %v2694 = vpop.permute.xlu0 %2693
        %2695 = vset.pattern.permute.xlu0 0
        %2696 = vperm.xlu0 %2695, %v2645
        %v2697 = vpop.permute.xlu0 %2696
        %2698 = vset.pattern.permute.xlu0 0
        %2699 = vperm.xlu0 %2698, %v2646
        %v2700 = vpop.permute.xlu0 %2699
        %2701 = vset.pattern.permute.xlu0 0
        %2702 = vperm.xlu0 %2701, %v2647
        %v2703 = vpop.permute.xlu0 %2702
        %2704 = vset.pattern.permute.xlu0 0
        %2705 = vperm.xlu0 %2704, %v2648
        %v2706 = vpop.permute.xlu0 %2705
        %2707 = vset.pattern.permute.xlu0 0
        %2708 = vperm.xlu0 %2707, %v2649
        %v2709 = vpop.permute.xlu0 %2708
        %2710 = vset.pattern.permute.xlu0 0
        %2711 = vperm.xlu0 %2710, %v2650
        %v2712 = vpop.permute.xlu0 %2711
        %2713 = vset.pattern.permute.xlu0 0
        %2714 = vperm.xlu0 %2713, %v2651
        %v2715 = vpop.permute.xlu0 %2714
        %2716 = vset.pattern.permute.xlu0 0
        %2717 = vperm.xlu0 %2716, %v2652
        %v2718 = vpop.permute.xlu0 %2717
        %2719 = vset.pattern.permute.xlu0 0
        %2720 = vperm.xlu0 %2719, %v2653
        %v2721 = vpop.permute.xlu0 %2720
        %2722 = vset.pattern.permute.xlu0 0
        %2723 = vperm.xlu0 %2722, %v2654
        %v2724 = vpop.permute.xlu0 %2723
        %2725 = vset.pattern.permute.xlu0 0
        %2726 = vperm.xlu0 %2725, %v2655
        %v2727 = vpop.permute.xlu0 %2726
        %2728 = vset.pattern.permute.xlu0 0
        %2729 = vperm.xlu0 %2728, %v2656
        %v2730 = vpop.permute.xlu0 %2729
        %2731 = vset.pattern.permute.xlu0 0
        %2732 = vperm.xlu0 %2731, %v2657
        %v2733 = vpop.permute.xlu0 %2732
        %2734 = vset.pattern.permute.xlu0 0
        %2735 = vperm.xlu0 %2734, %v2658
        %v2736 = vpop.permute.xlu0 %2735
        %2737 = vset.pattern.permute.xlu0 0
        %2738 = vperm.xlu0 %2737, %v2659
        %v2739 = vpop.permute.xlu0 %2738
        %2740 = vset.pattern.permute.xlu0 0
        %2741 = vperm.xlu0 %2740, %v2660
        %v2742 = vpop.permute.xlu0 %2741
        %2743 = vset.pattern.permute.xlu0 0
        %2744 = vperm.xlu0 %2743, %v2661
        %v2745 = vpop.permute.xlu0 %2744
        %2746 = vset.pattern.permute.xlu0 0
        %2747 = vperm.xlu0 %2746, %v2662
        %v2748 = vpop.permute.xlu0 %2747
        %2749 = vset.pattern.permute.xlu0 0
        %2750 = vperm.xlu0 %2749, %v2663
        %v2751 = vpop.permute.xlu0 %2750
        %2752 = vset.pattern.permute.xlu0 0
        %2753 = vperm.xlu0 %2752, %v2664
        %v2754 = vpop.permute.xlu0 %2753
        %2755 = vset.pattern.permute.xlu0 0
        %2756 = vperm.xlu0 %2755, %v2665
        %v2757 = vpop.permute.xlu0 %2756
        %2758 = vset.pattern.permute.xlu0 0
        %2759 = vperm.xlu0 %2758, %v2666
        %v2760 = vpop.permute.xlu0 %2759
        %2761 = vset.pattern.permute.xlu0 0
        %2762 = vperm.xlu0 %2761, %v2667
        %v2763 = vpop.permute.xlu0 %2762
        %vm2764 = vcmp.eq.s32.totalorder %v369, %v2670
        %vm2765 = vcmp.eq.s32.totalorder %v369, %v2673
        %vm2766 = vcmp.eq.s32.totalorder %v369, %v2676
        %vm2767 = vcmp.eq.s32.totalorder %v369, %v2679
        %vm2768 = vcmp.eq.s32.totalorder %v369, %v2682
        %vm2769 = vcmp.eq.s32.totalorder %v369, %v2685
        %vm2770 = vcmp.eq.s32.totalorder %v369, %v2688
        %vm2771 = vcmp.eq.s32.totalorder %v369, %v2691
        %vm2772 = vcmp.eq.s32.totalorder %v369, %v2694
        %vm2773 = vcmp.eq.s32.totalorder %v369, %v2697
        %vm2774 = vcmp.eq.s32.totalorder %v369, %v2700
        %vm2775 = vcmp.eq.s32.totalorder %v369, %v2703
        %vm2776 = vcmp.eq.s32.totalorder %v369, %v2706
        %vm2777 = vcmp.eq.s32.totalorder %v369, %v2709
        %vm2778 = vcmp.eq.s32.totalorder %v369, %v2712
        %vm2779 = vcmp.eq.s32.totalorder %v369, %v2715
        %vm2780 = vcmp.eq.s32.totalorder %v369, %v2718
        %vm2781 = vcmp.eq.s32.totalorder %v369, %v2721
        %vm2782 = vcmp.eq.s32.totalorder %v369, %v2724
        %vm2783 = vcmp.eq.s32.totalorder %v369, %v2727
        %vm2784 = vcmp.eq.s32.totalorder %v369, %v2730
        %vm2785 = vcmp.eq.s32.totalorder %v369, %v2733
        %vm2786 = vcmp.eq.s32.totalorder %v369, %v2736
        %vm2787 = vcmp.eq.s32.totalorder %v369, %v2739
        %vm2788 = vcmp.eq.s32.totalorder %v369, %v2742
        %vm2789 = vcmp.eq.s32.totalorder %v369, %v2745
        %vm2790 = vcmp.eq.s32.totalorder %v369, %v2748
        %vm2791 = vcmp.eq.s32.totalorder %v369, %v2751
        %vm2792 = vcmp.eq.s32.totalorder %v369, %v2754
        %vm2793 = vcmp.eq.s32.totalorder %v369, %v2757
        %vm2794 = vcmp.eq.s32.totalorder %v369, %v2760
        %vm2795 = vcmp.eq.s32.totalorder %v369, %v2763
        %vm2796 = vmor %vm674, %vm2764
        %vm2797 = vmor %vm675, %vm2765
        %vm2798 = vmor %vm676, %vm2766
        %vm2799 = vmor %vm677, %vm2767
        %vm2800 = vmor %vm678, %vm2768
        %vm2801 = vmor %vm679, %vm2769
        %vm2802 = vmor %vm680, %vm2770
        %vm2803 = vmor %vm681, %vm2771
        %vm2804 = vmor %vm682, %vm2772
        %vm2805 = vmor %vm683, %vm2773
        %vm2806 = vmor %vm684, %vm2774
        %vm2807 = vmor %vm685, %vm2775
        %vm2808 = vmor %vm686, %vm2776
        %vm2809 = vmor %vm687, %vm2777
        %vm2810 = vmor %vm688, %vm2778
        %vm2811 = vmor %vm689, %vm2779
        %vm2812 = vmor %vm690, %vm2780
        %vm2813 = vmor %vm691, %vm2781
        %vm2814 = vmor %vm692, %vm2782
        %vm2815 = vmor %vm693, %vm2783
        %vm2816 = vmor %vm694, %vm2784
        %vm2817 = vmor %vm695, %vm2785
        %vm2818 = vmor %vm696, %vm2786
        %vm2819 = vmor %vm697, %vm2787
        %vm2820 = vmor %vm698, %vm2788
        %vm2821 = vmor %vm699, %vm2789
        %vm2822 = vmor %vm700, %vm2790
        %vm2823 = vmor %vm701, %vm2791
        %vm2824 = vmor %vm702, %vm2792
        %vm2825 = vmor %vm703, %vm2793
        %vm2826 = vmor %vm704, %vm2794
        %vm2827 = vmor %vm705, %vm2795
        %v2828 = vsel %vm2796, 1, 0
        %v2829 = vsel %vm2797, 1, 0
        %v2830 = vsel %vm2798, 1, 0
        %v2831 = vsel %vm2799, 1, 0
        %v2832 = vsel %vm2800, 1, 0
        %v2833 = vsel %vm2801, 1, 0
        %v2834 = vsel %vm2802, 1, 0
        %v2835 = vsel %vm2803, 1, 0
        %v2836 = vsel %vm2804, 1, 0
        %v2837 = vsel %vm2805, 1, 0
        %v2838 = vsel %vm2806, 1, 0
        %v2839 = vsel %vm2807, 1, 0
        %v2840 = vsel %vm2808, 1, 0
        %v2841 = vsel %vm2809, 1, 0
        %v2842 = vsel %vm2810, 1, 0
        %v2843 = vsel %vm2811, 1, 0
        %v2844 = vsel %vm2812, 1, 0
        %v2845 = vsel %vm2813, 1, 0
        %v2846 = vsel %vm2814, 1, 0
        %v2847 = vsel %vm2815, 1, 0
        %v2848 = vsel %vm2816, 1, 0
        %v2849 = vsel %vm2817, 1, 0
        %v2850 = vsel %vm2818, 1, 0
        %v2851 = vsel %vm2819, 1, 0
        %v2852 = vsel %vm2820, 1, 0
        %v2853 = vsel %vm2821, 1, 0
        %v2854 = vsel %vm2822, 1, 0
        %v2855 = vsel %vm2823, 1, 0
        %v2856 = vsel %vm2824, 1, 0
        %v2857 = vsel %vm2825, 1, 0
        %v2858 = vsel %vm2826, 1, 0
        %v2859 = vsel %vm2827, 1, 0
        %v2860 = vcvt.s32.f32 %v2828
        %v2861 = vcvt.s32.f32 %v2829
        %v2862 = vcvt.s32.f32 %v2830
        %v2863 = vcvt.s32.f32 %v2831
        %v2864 = vcvt.s32.f32 %v2832
        %v2865 = vcvt.s32.f32 %v2833
        %v2866 = vcvt.s32.f32 %v2834
        %v2867 = vcvt.s32.f32 %v2835
        %v2868 = vcvt.s32.f32 %v2836
        %v2869 = vcvt.s32.f32 %v2837
        %v2870 = vcvt.s32.f32 %v2838
        %v2871 = vcvt.s32.f32 %v2839
        %v2872 = vcvt.s32.f32 %v2840
        %v2873 = vcvt.s32.f32 %v2841
        %v2874 = vcvt.s32.f32 %v2842
        %v2875 = vcvt.s32.f32 %v2843
        %v2876 = vcvt.s32.f32 %v2844
        %v2877 = vcvt.s32.f32 %v2845
        %v2878 = vcvt.s32.f32 %v2846
        %v2879 = vcvt.s32.f32 %v2847
        %v2880 = vcvt.s32.f32 %v2848
        %v2881 = vcvt.s32.f32 %v2849
        %v2882 = vcvt.s32.f32 %v2850
        %v2883 = vcvt.s32.f32 %v2851
        %v2884 = vcvt.s32.f32 %v2852
        %v2885 = vcvt.s32.f32 %v2853
        %v2886 = vcvt.s32.f32 %v2854
        %v2887 = vcvt.s32.f32 %v2855
        %v2888 = vcvt.s32.f32 %v2856
        %v2889 = vcvt.s32.f32 %v2857
        %v2890 = vcvt.s32.f32 %v2858
        %v2891 = vcvt.s32.f32 %v2859
        %v2892 = vpack.c.bf16 %v2861, %v2860
        %v2893 = vpack.c.bf16 %v2863, %v2862
        %v2894 = vpack.c.bf16 %v2865, %v2864
        %v2895 = vpack.c.bf16 %v2867, %v2866
        %v2896 = vpack.c.bf16 %v2869, %v2868
        %v2897 = vpack.c.bf16 %v2871, %v2870
        %v2898 = vpack.c.bf16 %v2873, %v2872
        %v2899 = vpack.c.bf16 %v2875, %v2874
        %v2900 = vpack.c.bf16 %v2877, %v2876
        %v2901 = vpack.c.bf16 %v2879, %v2878
        %v2902 = vpack.c.bf16 %v2881, %v2880
        %v2903 = vpack.c.bf16 %v2883, %v2882
        %v2904 = vpack.c.bf16 %v2885, %v2884
        %v2905 = vpack.c.bf16 %v2887, %v2886
        %v2906 = vpack.c.bf16 %v2889, %v2888
        %v2907 = vpack.c.bf16 %v2891, %v2890
        %v2908 = vld [vmem:[#allocation2] sm:$0xff]
        %v2909 = vld [vmem:[#allocation2 + $0x8] sm:$0xff]
        %v2910 = vld [vmem:[#allocation2 + $0x10] sm:$0xff]
        %v2911 = vld [vmem:[#allocation2 + $0x18] sm:$0xff]
        %v2912 = vld [vmem:[#allocation2 + $0x20] sm:$0xff]
        %v2913 = vld [vmem:[#allocation2 + $0x28] sm:$0xff]
        %v2914 = vld [vmem:[#allocation2 + $0x30] sm:$0xff]
        %v2915 = vld [vmem:[#allocation2 + $0x38] sm:$0xff]
        %v2916 = vld [vmem:[#allocation2 + $0x40] sm:$0xff]
        %v2917 = vld [vmem:[#allocation2 + $0x48] sm:$0xff]
        %v2918 = vld [vmem:[#allocation2 + $0x50] sm:$0xff]
        %v2919 = vld [vmem:[#allocation2 + $0x58] sm:$0xff]
        %v2920 = vld [vmem:[#allocation2 + $0x60] sm:$0xff]
        %v2921 = vld [vmem:[#allocation2 + $0x68] sm:$0xff]
        %v2922 = vld [vmem:[#allocation2 + $0x70] sm:$0xff]
        %v2923 = vld [vmem:[#allocation2 + $0x78] sm:$0xff]
        %2924 = vxpose.xlu0.c.b16.start [1/8] %v2892, 128
        %2925 = vxpose.xlu0.c.b16.cont [2/8] %v2893, 128
        %2926 = vxpose.xlu0.c.b16.cont [3/8] %v2894, 128
        %2927 = vxpose.xlu0.c.b16.cont [4/8] %v2895, 128
        %2928 = vxpose.xlu0.c.b16.cont [5/8] %v2896, 128
        %2929 = vxpose.xlu0.c.b16.cont [6/8] %v2897, 128
        %2930 = vxpose.xlu0.c.b16.cont [7/8] %v2898, 128
        %2931 = vxpose.xlu0.c.b16.end [8/8] %v2899, 128
        %v2932 = vpop.trf.xlu0
        %v2933 = vpop.trf.xlu0
        %v2934 = vpop.trf.xlu0
        %v2935 = vpop.trf.xlu0
        %v2936 = vpop.trf.xlu0
        %v2937 = vpop.trf.xlu0
        %v2938 = vpop.trf.xlu0
        %v2939 = vpop.trf.xlu0
        %2940 = vxpose.xlu0.c.b16.start [1/8] %v2900, 128
        %2941 = vxpose.xlu0.c.b16.cont [2/8] %v2901, 128
        %2942 = vxpose.xlu0.c.b16.cont [3/8] %v2902, 128
        %2943 = vxpose.xlu0.c.b16.cont [4/8] %v2903, 128
        %2944 = vxpose.xlu0.c.b16.cont [5/8] %v2904, 128
        %2945 = vxpose.xlu0.c.b16.cont [6/8] %v2905, 128
        %2946 = vxpose.xlu0.c.b16.cont [7/8] %v2906, 128
        %2947 = vxpose.xlu0.c.b16.end [8/8] %v2907, 128
        %v2948 = vpop.trf.xlu0
        %v2949 = vpop.trf.xlu0
        %v2950 = vpop.trf.xlu0
        %v2951 = vpop.trf.xlu0
        %v2952 = vpop.trf.xlu0
        %v2953 = vpop.trf.xlu0
        %v2954 = vpop.trf.xlu0
        %v2955 = vpop.trf.xlu0
        %2956 = vmatprep.subr.bf16.mxu0 0
        %2957 = vmatpush1.bf16.msra.mxu0 %v2627
        %2958 = vmatprep.subr.bf16.mxu0 0
        %2959 = vmatpush1.bf16.msra.mxu0 %v2626
        %2960 = vmatprep.subr.bf16.mxu0 0
        %2961 = vmatpush1.bf16.msra.mxu0 %v2625
        %2962 = vmatprep.subr.bf16.mxu0 0
        %2963 = vmatpush1.bf16.msra.mxu0 %v2624
        %2964 = vmatprep.subr.bf16.mxu0 0
        %2965 = vmatpush1.bf16.msra.mxu0 %v2623
        %2966 = vmatprep.subr.bf16.mxu0 0
        %2967 = vmatpush1.bf16.msra.mxu0 %v2622
        %2968 = vmatprep.subr.bf16.mxu0 0
        %2969 = vmatpush1.bf16.msra.mxu0 %v2621
        %2970 = vmatprep.subr.bf16.mxu0 0
        %2971 = vmatpush1.bf16.msra.mxu0 %v2620
        %2972 = vmatprep.subr.bf16.mxu0 0
        %2973 = vmatpush2.bf16.msra.mxu0 %v2635
        %2974 = vmatprep.subr.bf16.mxu0 0
        %2975 = vmatpush2.bf16.msra.mxu0 %v2634
        %2976 = vmatprep.subr.bf16.mxu0 0
        %2977 = vmatpush2.bf16.msra.mxu0 %v2633
        %2978 = vmatprep.subr.bf16.mxu0 0
        %2979 = vmatpush2.bf16.msra.mxu0 %v2632
        %2980 = vmatprep.subr.bf16.mxu0 0
        %2981 = vmatpush2.bf16.msra.mxu0 %v2631
        %2982 = vmatprep.subr.bf16.mxu0 0
        %2983 = vmatpush2.bf16.msra.mxu0 %v2630
        %2984 = vmatprep.subr.bf16.mxu0 0
        %2985 = vmatpush2.bf16.msra.mxu0 %v2629
        %2986 = vmatprep.subr.bf16.mxu0 0
        %2987 = vmatpush2.bf16.msra.mxu0 %v2628
        %2988 = vmatprep.mubr.bf16.mxu0 %v2948
        %2989 = vmatmul.mubr.bf16.gmra.mxu0 %v2932
        %v2990 = vpop.f32.mrf.mxu0
        %v2991 = vadd.f32 0.0, %v2990
        %v2992 = vpop.f32.mrf.mxu0
        %v2993 = vpop.f32.mrf.mxu0
        %v2994 = vadd.f32 0.0, %v2993
        %v2995 = vpop.f32.mrf.mxu0
        %2996 = vmatprep.mubr.bf16.mxu0 %v2949
        %2997 = vmatmul.mubr.bf16.gmra.mxu0 %v2933
        %v2998 = vpop.f32.mrf.mxu0
        %v2999 = vadd.f32 0.0, %v2998
        %v3000 = vpop.f32.mrf.mxu0
        %v3001 = vpop.f32.mrf.mxu0
        %v3002 = vadd.f32 0.0, %v3001
        %v3003 = vpop.f32.mrf.mxu0
        %3004 = vmatprep.mubr.bf16.mxu0 %v2950
        %3005 = vmatmul.mubr.bf16.gmra.mxu0 %v2934
        %v3006 = vpop.f32.mrf.mxu0
        %v3007 = vadd.f32 0.0, %v3006
        %v3008 = vpop.f32.mrf.mxu0
        %v3009 = vpop.f32.mrf.mxu0
        %v3010 = vadd.f32 0.0, %v3009
        %v3011 = vpop.f32.mrf.mxu0
        %3012 = vmatprep.mubr.bf16.mxu0 %v2951
        %3013 = vmatmul.mubr.bf16.gmra.mxu0 %v2935
        %v3014 = vpop.f32.mrf.mxu0
        %v3015 = vadd.f32 0.0, %v3014
        %v3016 = vpop.f32.mrf.mxu0
        %v3017 = vpop.f32.mrf.mxu0
        %v3018 = vadd.f32 0.0, %v3017
        %v3019 = vpop.f32.mrf.mxu0
        %3020 = vmatprep.mubr.bf16.mxu0 %v2952
        %3021 = vmatmul.mubr.bf16.gmra.mxu0 %v2936
        %v3022 = vpop.f32.mrf.mxu0
        %v3023 = vadd.f32 0.0, %v3022
        %v3024 = vpop.f32.mrf.mxu0
        %v3025 = vpop.f32.mrf.mxu0
        %v3026 = vadd.f32 0.0, %v3025
        %v3027 = vpop.f32.mrf.mxu0
        %3028 = vmatprep.mubr.bf16.mxu0 %v2953
        %3029 = vmatmul.mubr.bf16.gmra.mxu0 %v2937
        %v3030 = vpop.f32.mrf.mxu0
        %v3031 = vadd.f32 0.0, %v3030
        %v3032 = vpop.f32.mrf.mxu0
        %v3033 = vpop.f32.mrf.mxu0
        %v3034 = vadd.f32 0.0, %v3033
        %v3035 = vpop.f32.mrf.mxu0
        %3036 = vmatprep.mubr.bf16.mxu0 %v2954
        %3037 = vmatmul.mubr.bf16.gmra.mxu0 %v2938
        %v3038 = vpop.f32.mrf.mxu0
        %v3039 = vadd.f32 0.0, %v3038
        %v3040 = vpop.f32.mrf.mxu0
        %v3041 = vpop.f32.mrf.mxu0
        %v3042 = vadd.f32 0.0, %v3041
        %v3043 = vpop.f32.mrf.mxu0
        %3044 = vmatprep.mubr.bf16.mxu0 %v2955
        %3045 = vmatmul.mubr.bf16.gmra.mxu0 %v2939
        %v3046 = vpop.f32.mrf.mxu0
        %v3047 = vadd.f32 0.0, %v3046
        %v3048 = vpop.f32.mrf.mxu0
        %v3049 = vpop.f32.mrf.mxu0
        %v3050 = vadd.f32 0.0, %v3049
        %v3051 = vpop.f32.mrf.mxu0
        %3052 = vdwg.mxu0
        %v3053 = vadd.f32 %v2908, %v2991
        %v3054 = vadd.f32 %v2909, %v2994
        %v3055 = vadd.f32 %v2910, %v2999
        %v3056 = vadd.f32 %v2911, %v3002
        %v3057 = vadd.f32 %v2912, %v3007
        %v3058 = vadd.f32 %v2913, %v3010
        %v3059 = vadd.f32 %v2914, %v3015
        %v3060 = vadd.f32 %v2915, %v3018
        %v3061 = vadd.f32 %v2916, %v3023
        %v3062 = vadd.f32 %v2917, %v3026
        %v3063 = vadd.f32 %v2918, %v3031
        %v3064 = vadd.f32 %v2919, %v3034
        %v3065 = vadd.f32 %v2920, %v3039
        %v3066 = vadd.f32 %v2921, %v3042
        %v3067 = vadd.f32 %v2922, %v3047
        %v3068 = vadd.f32 %v2923, %v3050
        %3069 = vst [vmem:[#allocation2] sm:$0xff] %v3053
        %3070 = vst [vmem:[#allocation2 + $0x8] sm:$0xff] %v3054
        %3071 = vst [vmem:[#allocation2 + $0x10] sm:$0xff] %v3055
        %3072 = vst [vmem:[#allocation2 + $0x18] sm:$0xff] %v3056
        %3073 = vst [vmem:[#allocation2 + $0x20] sm:$0xff] %v3057
        %3074 = vst [vmem:[#allocation2 + $0x28] sm:$0xff] %v3058
        %3075 = vst [vmem:[#allocation2 + $0x30] sm:$0xff] %v3059
        %3076 = vst [vmem:[#allocation2 + $0x38] sm:$0xff] %v3060
        %3077 = vst [vmem:[#allocation2 + $0x40] sm:$0xff] %v3061
        %3078 = vst [vmem:[#allocation2 + $0x48] sm:$0xff] %v3062
        %3079 = vst [vmem:[#allocation2 + $0x50] sm:$0xff] %v3063
        %3080 = vst [vmem:[#allocation2 + $0x58] sm:$0xff] %v3064
        %3081 = vst [vmem:[#allocation2 + $0x60] sm:$0xff] %v3065
        %3082 = vst [vmem:[#allocation2 + $0x68] sm:$0xff] %v3066
        %3083 = vst [vmem:[#allocation2 + $0x70] sm:$0xff] %v3067
        %3084 = vst [vmem:[#allocation2 + $0x78] sm:$0xff] %v3068
      $region52: #{graph_prop_layer.1} parent=43 // pred_fallthru
        _
      // Predicated region
      $region53: #{graph_prop_layer.1} parent=43 // pred_check
        %p3085 = pneg %p303
      $region54: #{graph_prop_layer.1} parent=43 // pred_check_branch
        %3087 = sbr.rel (%p3085) target = $region56
      $region55: #{graph_prop_layer.1} parent=43 // pred_region
        %v3088 = vld [vmem:[#allocation2] sm:$0xff]
        %v3089 = vld [vmem:[#allocation2 + $0x8] sm:$0xff]
        %v3090 = vld [vmem:[#allocation2 + $0x10] sm:$0xff]
        %v3091 = vld [vmem:[#allocation2 + $0x18] sm:$0xff]
        %v3092 = vld [vmem:[#allocation2 + $0x20] sm:$0xff]
        %v3093 = vld [vmem:[#allocation2 + $0x28] sm:$0xff]
        %v3094 = vld [vmem:[#allocation2 + $0x30] sm:$0xff]
        %v3095 = vld [vmem:[#allocation2 + $0x38] sm:$0xff]
        %v3096 = vld [vmem:[#allocation2 + $0x40] sm:$0xff]
        %v3097 = vld [vmem:[#allocation2 + $0x48] sm:$0xff]
        %v3098 = vld [vmem:[#allocation2 + $0x50] sm:$0xff]
        %v3099 = vld [vmem:[#allocation2 + $0x58] sm:$0xff]
        %v3100 = vld [vmem:[#allocation2 + $0x60] sm:$0xff]
        %v3101 = vld [vmem:[#allocation2 + $0x68] sm:$0xff]
        %v3102 = vld [vmem:[#allocation2 + $0x70] sm:$0xff]
        %v3103 = vld [vmem:[#allocation2 + $0x78] sm:$0xff]
        %3104 = vst [vmem:[%s301] sm:$0xff] %v3088
        %3105 = vst [vmem:[%s301 + $0x8] sm:$0xff] %v3089
        %3106 = vst [vmem:[%s301 + $0x10] sm:$0xff] %v3090
        %3107 = vst [vmem:[%s301 + $0x18] sm:$0xff] %v3091
        %3108 = vst [vmem:[%s301 + $0x20] sm:$0xff] %v3092
        %3109 = vst [vmem:[%s301 + $0x28] sm:$0xff] %v3093
        %3110 = vst [vmem:[%s301 + $0x30] sm:$0xff] %v3094
        %3111 = vst [vmem:[%s301 + $0x38] sm:$0xff] %v3095
        %3112 = vst [vmem:[%s301 + $0x40] sm:$0xff] %v3096
        %3113 = vst [vmem:[%s301 + $0x48] sm:$0xff] %v3097
        %3114 = vst [vmem:[%s301 + $0x50] sm:$0xff] %v3098
        %3115 = vst [vmem:[%s301 + $0x58] sm:$0xff] %v3099
        %3116 = vst [vmem:[%s301 + $0x60] sm:$0xff] %v3100
        %3117 = vst [vmem:[%s301 + $0x68] sm:$0xff] %v3101
        %3118 = vst [vmem:[%s301 + $0x70] sm:$0xff] %v3102
        %3119 = vst [vmem:[%s301 + $0x78] sm:$0xff] %v3103
      $region56: #{graph_prop_layer.1} parent=43 // pred_fallthru
        _
      %p3120 = scmp.lt.s32.totalorder %s21, 1
      %s3121 = scalar_select %p3120, %s21, 1
      %s3122 = smul.addr %s3121, 16
      %s3123 = smul.addr %s3122, 8
      %s3124 = scalar_lea.vmem %s6, %s3123
      // Predicated region
      $region57: #{graph_prop_layer.1} parent=43 // pred_check
        %p3125 = pneg %p187
      $region58: #{graph_prop_layer.1} parent=43 // pred_check_branch
        %3127 = sbr.rel (%p3125) target = $region60
      $region59: #{graph_prop_layer.1} parent=43 // pred_region
        _
      $region60: #{graph_prop_layer.1} parent=43 // pred_fallthru
        _
    $region44: #{graph_prop_layer.1} parent=5 // pred_fallthru
      _
    %p3128 = scmp.le.s32.totalorder 2, %s12
    // Predicated region
    $region61: #{graph_prop_layer.1} parent=5 // pred_check
      %p3129 = pneg %p3128
    $region62: #{graph_prop_layer.1} parent=5 // pred_check_branch
      %3131 = sbr.rel (%p3129) target = $region64
    $region63: #{graph_prop_layer.1} parent=5 // pred_region
      %s3132 = ssub.s32 %s12, 2
      // Predicated region
      $region65: #{graph_prop_layer.1} parent=63 // pred_check
        %p3133 = pneg %p193
      $region66: #{graph_prop_layer.1} parent=63 // pred_check_branch
        %3135 = sbr.rel (%p3133) target = $region68
      $region67: #{graph_prop_layer.1} parent=63 // pred_region
        %p3136 = scmp.lt.s32.totalorder %s23, 1
        %s3137 = scalar_select %p3136, %s23, 1
        %s3138 = smul.addr %s3137, 16
        %s3139 = smul.addr %s3138, 8
        %s3140 = scalar_lea.vmem %s6, %s3139
      $region68: #{graph_prop_layer.1} parent=63 // pred_fallthru
        _
    $region64: #{graph_prop_layer.1} parent=5 // pred_fallthru
      _
  $region6: #{graph_prop_layer.1} parent=0 // loop_footer
    %s16 = sadd.s32 1, %s12
  $region7: #{graph_prop_layer.1} parent=0 // loop_footer_branch
    %11 = sbr.rel target = $region3
  $region8: #{graph_prop_layer.1} parent=0 // loop_exit
    _

</llo_original>
